<compile_context>
chip_gen: v7x
topology: tpu7x:2x2x1
jax: 0.10.0
libtpu: 0.0.40
codegen_flags: <defaults>
</compile_context>

<pallas_src>
import functools

import numpy as np
import jax
import jax.numpy as jnp
from jax import lax
from jax.experimental import pallas as pl
from jax.experimental.pallas import tpu as pltpu


# ----------------------------- Pallas kernel --------------------------------
def transformer_readout_kernel(
    x_ref,      # [1, S, D]   padded (cls + nodes) sequence for this graph
    bias_ref,   # [1, 1, S]   additive key-padding mask (0 valid / -1e9 pad)
    wqkv_ref,   # [D, 3D]
    bqkv_ref,   # [1, 3D]
    wo_ref,     # [D, D]
    bo_ref,     # [1, D]
    ln1_w_ref,  # [1, D]
    ln1_b_ref,  # [1, D]
    w1_ref,     # [D, F]
    b1_ref,     # [1, F]
    w2_ref,     # [F, D]
    b2_ref,     # [1, D]
    ln2_w_ref,  # [1, D]
    ln2_b_ref,  # [1, D]
    fc_w_ref,   # [D, OUT_PAD]  (readout Linear, zero-padded to 128 lanes)
    fc_b_ref,   # [1, OUT_PAD]
    o_ref,      # [1, 1, OUT_PAD]
    *,
    nhead,
):
    x = x_ref[0]                                   # [S, D] f32
    s_len, d_model = x.shape
    hd = d_model // nhead
    scale = 1.0 / (hd ** 0.5)
    bias = bias_ref[0]                             # [1, S] additive mask

    # ---- multi-head self-attention (batch_first, post-norm encoder layer) ----
    qkv = jnp.dot(x, wqkv_ref[...], preferred_element_type=jnp.float32) + bqkv_ref[...]
    q = qkv[:, :d_model]
    k = qkv[:, d_model:2 * d_model]
    v = qkv[:, 2 * d_model:]

    wo = wo_ref[...]                               # [D, D]
    attn = jnp.zeros((s_len, d_model), jnp.float32)
    for h in range(nhead):                         # static unroll over heads
        lo, hi = h * hd, (h + 1) * hd
        qh, kh, vh = q[:, lo:hi], k[:, lo:hi], v[:, lo:hi]
        # q @ k^T without an explicit transpose (contract on the head dim)
        s = lax.dot_general(qh, kh, (((1,), (1,)), ((), ())),
                            preferred_element_type=jnp.float32) * scale
        s = s + bias                               # mask padded key columns
        s = s - jnp.max(s, axis=-1, keepdims=True)
        p = jnp.exp(s)
        p = p / jnp.sum(p, axis=-1, keepdims=True)
        head = jnp.dot(p, vh, preferred_element_type=jnp.float32)       # [S, hd]
        # concat(heads) @ Wo  ==  sum_h head_h @ Wo[rows of head h]
        attn = attn + jnp.dot(head, wo[lo:hi, :],
                              preferred_element_type=jnp.float32)
    attn = attn + bo_ref[...]

    # residual + LayerNorm1 (eps = 1e-5, PyTorch default)
    h1 = x + attn
    mu1 = jnp.mean(h1, axis=-1, keepdims=True)
    var1 = jnp.mean(jnp.square(h1 - mu1), axis=-1, keepdims=True)
    h1 = (h1 - mu1) * lax.rsqrt(var1 + 1e-5) * ln1_w_ref[...] + ln1_b_ref[...]

    # feed-forward (ReLU), residual + LayerNorm2
    ff = jnp.maximum(
        jnp.dot(h1, w1_ref[...], preferred_element_type=jnp.float32) + b1_ref[...],
        0.0)
    ff = jnp.dot(ff, w2_ref[...], preferred_element_type=jnp.float32) + b2_ref[...]
    h2 = h1 + ff
    mu2 = jnp.mean(h2, axis=-1, keepdims=True)
    var2 = jnp.mean(jnp.square(h2 - mu2), axis=-1, keepdims=True)
    h2 = (h2 - mu2) * lax.rsqrt(var2 + 1e-5) * ln2_w_ref[...] + ln2_b_ref[...]

    # cls readout + (lane-padded) out_fc
    cls = h2[0:1, :]                                                    # [1, D]
    logits = jnp.dot(cls, fc_w_ref[...],
                     preferred_element_type=jnp.float32) + fc_b_ref[...]
    o_ref[0] = logits


# ----------------------------- pallas_call wrapper ---------------------------
def transformer_readout_pallas(x_pad, bias, params, *, nhead, out_dim):
    n_graphs, s_len, d_model = x_pad.shape
    dim_ff = params["w1"].shape[1]
    out_pad = ((out_dim + 127) // 128) * 128       # lane-dense output stores

    fc_w = jnp.zeros((d_model, out_pad), jnp.float32).at[:, :out_dim].set(params["fc_w"])
    fc_b = jnp.zeros((1, out_pad), jnp.float32).at[:, :out_dim].set(params["fc_b"][None, :])

    args = (
        x_pad, bias,
        params["wqkv"], params["bqkv"][None, :],
        params["wo"], params["bo"][None, :],
        params["ln1_w"][None, :], params["ln1_b"][None, :],
        params["w1"], params["b1"][None, :],
        params["w2"], params["b2"][None, :],
        params["ln2_w"][None, :], params["ln2_b"][None, :],
        fc_w, fc_b,
    )

    def shared_spec(a):
        nd = a.ndim
        # full-array block, same block for every grid step -> stays VMEM-resident
        return pl.BlockSpec(a.shape, lambda g, nd=nd: (0,) * nd)

    in_specs = [
        pl.BlockSpec((1, s_len, d_model), lambda g: (g, 0, 0)),   # x_pad
        pl.BlockSpec((1, 1, s_len), lambda g: (g, 0, 0)),         # key-pad mask
    ] + [shared_spec(a) for a in args[2:]]

    kernel = functools.partial(transformer_readout_kernel, nhead=nhead)

    out = pl.pallas_call(
        kernel,
        out_shape=jax.ShapeDtypeStruct((n_graphs, 1, out_pad), jnp.float32),
        grid_spec=pltpu.PrefetchScalarGridSpec(
            num_scalar_prefetch=0,
            grid=(n_graphs,),
            in_specs=in_specs,
            out_specs=pl.BlockSpec((1, 1, out_pad), lambda g: (g, 0, 0)),
        ),
        compiler_params=pltpu.CompilerParams(
            dimension_semantics=("parallel",),      # independent graphs -> 2 TCs on v7x
        ),
    )(*args)
    return out[:, 0, :out_dim]


# ------------------------------ host-side glue --------------------------------
def transformer_readout_forward(params, x, batch, *, nhead, out_dim):
    """Mirrors TransformerReadout.forward: group nodes by `batch`, prepend the
    cls token per graph, run the fused encoder+readout kernel, stack outputs."""
    x_np = np.asarray(jax.device_get(x), np.float32)
    batch_np = np.asarray(jax.device_get(batch))
    n_graphs = int(batch_np.max()) + 1
    d_model = x_np.shape[1]
    cls = np.asarray(jax.device_get(params["cls_token"]), np.float32)

    sizes = [int((batch_np == g).sum()) for g in range(n_graphs)]
    s_max = max(max(sizes) + 1, 8)                 # +1 for cls token
    s_max = ((s_max + 7) // 8) * 8                 # sublane-friendly padding

    x_pad = np.zeros((n_graphs, s_max, d_model), np.float32)
    bias = np.full((n_graphs, 1, s_max), -1e9, np.float32)
    for g in range(n_graphs):
        xg = x_np[batch_np == g]
        length = xg.shape[0] + 1
        x_pad[g, 0, :] = cls
        if xg.shape[0] > 0:
            x_pad[g, 1:length, :] = xg
        bias[g, 0, :length] = 0.0

    logits = transformer_readout_pallas(
        jnp.asarray(x_pad), jnp.asarray(bias), params,
        nhead=nhead, out_dim=out_dim)

    # empty graphs -> zeros (matches the PyTorch reference)
    sizes_arr = jnp.asarray(sizes, jnp.int32)
    return jnp.where(sizes_arr[:, None] > 0, logits, 0.0)


def init_params(key, d_model, out_dim, dim_ff):
    """Deterministic init with the same parameter shapes as the PyTorch module
    (weights stored pre-transposed as [in, out] for x @ W)."""
    ks = jax.random.split(key, 6)

    def uni(k, shape, fan_in):
        lim = 1.0 / float(np.sqrt(fan_in))
        return jax.random.uniform(k, shape, jnp.float32, -lim, lim)

    return {
        "cls_token": jnp.zeros((d_model,), jnp.float32),       # nn.Parameter(zeros)
        "wqkv": uni(ks[0], (d_model, 3 * d_model), d_model),
        "bqkv": jnp.zeros((3 * d_model,), jnp.float32),
        "wo": uni(ks[1], (d_model, d_model), d_model),
        "bo": jnp.zeros((d_model,), jnp.float32),
        "ln1_w": jnp.ones((d_model,), jnp.float32),
        "ln1_b": jnp.zeros((d_model,), jnp.float32),
        "w1": uni(ks[2], (d_model, dim_ff), d_model),
        "b1": uni(ks[3], (dim_ff,), d_model),
        "w2": uni(ks[4], (dim_ff, d_model), dim_ff),
        "b2": jnp.zeros((d_model,), jnp.float32),
        "ln2_w": jnp.ones((d_model,), jnp.float32),
        "ln2_b": jnp.zeros((d_model,), jnp.float32),
        "fc_w": uni(ks[5], (d_model, out_dim), d_model),
        "fc_b": jnp.zeros((out_dim,), jnp.float32),
    }


# -------------------------------- main ----------------------------------------
if __name__ == "__main__":
    key = jax.random.PRNGKey(0)
    k_x, k_p = jax.random.split(key)

    d_model = 32
    nhead = 4
    out_dim = 8
    dim_ff = 2048        # nn.TransformerEncoderLayer default dim_feedforward

    # 3 graphs with 7, 5, 3 nodes (PyG-style `batch` assignment vector)
    sizes = [7, 5, 3]
    num_nodes = sum(sizes)
    batch = np.repeat(np.arange(len(sizes)), sizes).astype(np.int32)
    x = jax.random.normal(k_x, (num_nodes, d_model), jnp.float32)

    params = init_params(k_p, d_model, out_dim, dim_ff)

    out = transformer_readout_forward(params, x, batch, nhead=nhead, out_dim=out_dim)
    jax.block_until_ready(out)

    assert out.shape == (len(sizes), out_dim)
    assert bool(jnp.all(jnp.isfinite(out)))
    print("KERNEL_OK")
</pallas_src>

<mosaic_0001>
module attributes {stable_mosaic.version = 11 : i64} {
  func.func @transformer_readout_kernel(%arg0: i32, %arg1: memref<1x8x32xf32, #tpu.memory_space<vmem>>, %arg2: memref<1x1x8xf32, #tpu.memory_space<vmem>>, %arg3: memref<32x96xf32, #tpu.memory_space<vmem>>, %arg4: memref<1x96xf32, #tpu.memory_space<vmem>>, %arg5: memref<32x32xf32, #tpu.memory_space<vmem>>, %arg6: memref<1x32xf32, #tpu.memory_space<vmem>>, %arg7: memref<1x32xf32, #tpu.memory_space<vmem>>, %arg8: memref<1x32xf32, #tpu.memory_space<vmem>>, %arg9: memref<32x2048xf32, #tpu.memory_space<vmem>>, %arg10: memref<1x2048xf32, #tpu.memory_space<vmem>>, %arg11: memref<2048x32xf32, #tpu.memory_space<vmem>>, %arg12: memref<1x32xf32, #tpu.memory_space<vmem>>, %arg13: memref<1x32xf32, #tpu.memory_space<vmem>>, %arg14: memref<1x32xf32, #tpu.memory_space<vmem>>, %arg15: memref<32x128xf32, #tpu.memory_space<vmem>>, %arg16: memref<1x128xf32, #tpu.memory_space<vmem>>, %arg17: memref<1x1x128xf32, #tpu.memory_space<vmem>>) attributes {dimension_semantics = [#tpu.dimension_semantics<parallel>], iteration_bounds = array<i64: 3>, scalar_prefetch = 0 : i64, scratch_operands = 0 : i64, tpu.core_type = #tpu.core_type<tc>, window_params = [{transform_indices = @transform_0, window_bounds = array<i64: 1, 8, 32>}, {transform_indices = @transform_1, window_bounds = array<i64: 1, 1, 8>}, {pipeline_mode = #tpu.pipeline_mode<synchronous>, transform_indices = @transform_2, window_bounds = array<i64: 32, 96>}, {pipeline_mode = #tpu.pipeline_mode<synchronous>, transform_indices = @transform_3, window_bounds = array<i64: 1, 96>}, {pipeline_mode = #tpu.pipeline_mode<synchronous>, transform_indices = @transform_4, window_bounds = array<i64: 32, 32>}, {pipeline_mode = #tpu.pipeline_mode<synchronous>, transform_indices = @transform_5, window_bounds = array<i64: 1, 32>}, {pipeline_mode = #tpu.pipeline_mode<synchronous>, transform_indices = @transform_6, window_bounds = array<i64: 1, 32>}, {pipeline_mode = #tpu.pipeline_mode<synchronous>, transform_indices = @transform_7, window_bounds = array<i64: 1, 32>}, {pipeline_mode = #tpu.pipeline_mode<synchronous>, transform_indices = @transform_8, window_bounds = array<i64: 32, 2048>}, {pipeline_mode = #tpu.pipeline_mode<synchronous>, transform_indices = @transform_9, window_bounds = array<i64: 1, 2048>}, {pipeline_mode = #tpu.pipeline_mode<synchronous>, transform_indices = @transform_10, window_bounds = array<i64: 2048, 32>}, {pipeline_mode = #tpu.pipeline_mode<synchronous>, transform_indices = @transform_11, window_bounds = array<i64: 1, 32>}, {pipeline_mode = #tpu.pipeline_mode<synchronous>, transform_indices = @transform_12, window_bounds = array<i64: 1, 32>}, {pipeline_mode = #tpu.pipeline_mode<synchronous>, transform_indices = @transform_13, window_bounds = array<i64: 1, 32>}, {pipeline_mode = #tpu.pipeline_mode<synchronous>, transform_indices = @transform_14, window_bounds = array<i64: 32, 128>}, {pipeline_mode = #tpu.pipeline_mode<synchronous>, transform_indices = @transform_15, window_bounds = array<i64: 1, 128>}, {transform_indices = @transform_16, window_bounds = array<i64: 1, 1, 128>}]} {
    %c0 = arith.constant 0 : index
    %c0_0 = arith.constant 0 : index
    %c0_1 = arith.constant 0 : index
    %0 = vector.load %arg1[%c0, %c0_0, %c0_1] : memref<1x8x32xf32, #tpu.memory_space<vmem>>, vector<1x8x32xf32>
    %1 = vector.shape_cast %0 : vector<1x8x32xf32> to vector<8x32xf32>
    %c0_2 = arith.constant 0 : index
    %c0_3 = arith.constant 0 : index
    %c0_4 = arith.constant 0 : index
    %2 = vector.load %arg2[%c0_2, %c0_3, %c0_4] : memref<1x1x8xf32, #tpu.memory_space<vmem>>, vector<1x1x8xf32>
    %3 = vector.shape_cast %2 : vector<1x1x8xf32> to vector<1x8xf32>
    %c0_5 = arith.constant 0 : index
    %c0_6 = arith.constant 0 : index
    %4 = vector.load %arg3[%c0_5, %c0_6] : memref<32x96xf32, #tpu.memory_space<vmem>>, vector<32x96xf32>
    %cst = arith.constant dense<0.000000e+00> : vector<8x96xf32>
    %5 = tpu.matmul %1, %4, %cst {dimension_numbers = #tpu.dot_dimension_numbers<[1], [0], [0], [1], [0, 0, 1, 1], [], []>} : vector<8x32xf32>, vector<32x96xf32>, vector<8x96xf32> -> vector<8x96xf32>
    %c0_7 = arith.constant 0 : index
    %c0_8 = arith.constant 0 : index
    %6 = vector.load %arg4[%c0_7, %c0_8] : memref<1x96xf32, #tpu.memory_space<vmem>>, vector<1x96xf32>
    %7 = vector.broadcast %6 : vector<1x96xf32> to vector<8x96xf32>
    %8 = arith.addf %5, %7 : vector<8x96xf32>
    %9 = vector.extract_strided_slice %8 {offsets = [0, 0], sizes = [8, 32], strides = [1, 1]} : vector<8x96xf32> to vector<8x32xf32>
    %10 = vector.extract_strided_slice %8 {offsets = [0, 32], sizes = [8, 32], strides = [1, 1]} : vector<8x96xf32> to vector<8x32xf32>
    %11 = vector.extract_strided_slice %8 {offsets = [0, 64], sizes = [8, 32], strides = [1, 1]} : vector<8x96xf32> to vector<8x32xf32>
    %c0_9 = arith.constant 0 : index
    %c0_10 = arith.constant 0 : index
    %12 = vector.load %arg5[%c0_9, %c0_10] : memref<32x32xf32, #tpu.memory_space<vmem>>, vector<32x32xf32>
    %cst_11 = arith.constant 0.000000e+00 : f32
    %13 = vector.broadcast %cst_11 : f32 to vector<8x32xf32>
    %14 = vector.extract_strided_slice %9 {offsets = [0, 0], sizes = [8, 8], strides = [1, 1]} : vector<8x32xf32> to vector<8x8xf32>
    %15 = vector.extract_strided_slice %10 {offsets = [0, 0], sizes = [8, 8], strides = [1, 1]} : vector<8x32xf32> to vector<8x8xf32>
    %16 = vector.extract_strided_slice %11 {offsets = [0, 0], sizes = [8, 8], strides = [1, 1]} : vector<8x32xf32> to vector<8x8xf32>
    %cst_12 = arith.constant dense<0.000000e+00> : vector<8x8xf32>
    %17 = tpu.matmul %14, %15, %cst_12 {dimension_numbers = #tpu.dot_dimension_numbers<[1], [1], [0], [0], [0, 0, 1, 0], [], []>} : vector<8x8xf32>, vector<8x8xf32>, vector<8x8xf32> -> vector<8x8xf32>
    %cst_13 = arith.constant 0.353553385 : f32
    %18 = vector.broadcast %cst_13 : f32 to vector<8x8xf32>
    %19 = arith.mulf %17, %18 : vector<8x8xf32>
    %20 = vector.broadcast %3 : vector<1x8xf32> to vector<8x8xf32>
    %21 = arith.addf %19, %20 : vector<8x8xf32>
    %cst_14 = arith.constant dense<0xFF800000> : vector<8xf32>
    %22 = vector.multi_reduction <maximumf>, %21, %cst_14 [1] : vector<8x8xf32> to vector<8xf32>
    %23 = vector.shape_cast %22 : vector<8xf32> to vector<8x1xf32>
    %24 = vector.broadcast %23 : vector<8x1xf32> to vector<8x8xf32>
    %25 = arith.subf %21, %24 : vector<8x8xf32>
    %26 = math.exp %25 : vector<8x8xf32>
    %cst_15 = arith.constant dense<0.000000e+00> : vector<8xf32>
    %27 = vector.multi_reduction <add>, %26, %cst_15 [1] : vector<8x8xf32> to vector<8xf32>
    %28 = vector.shape_cast %27 : vector<8xf32> to vector<8x1xf32>
    %29 = vector.broadcast %28 : vector<8x1xf32> to vector<8x8xf32>
    %30 = arith.divf %26, %29 : vector<8x8xf32>
    %cst_16 = arith.constant dense<0.000000e+00> : vector<8x8xf32>
    %31 = tpu.matmul %30, %16, %cst_16 {dimension_numbers = #tpu.dot_dimension_numbers<[1], [0], [0], [1], [0, 0, 1, 1], [], []>} : vector<8x8xf32>, vector<8x8xf32>, vector<8x8xf32> -> vector<8x8xf32>
    %32 = vector.extract_strided_slice %12 {offsets = [0, 0], sizes = [8, 32], strides = [1, 1]} : vector<32x32xf32> to vector<8x32xf32>
    %cst_17 = arith.constant dense<0.000000e+00> : vector<8x32xf32>
    %33 = tpu.matmul %31, %32, %cst_17 {dimension_numbers = #tpu.dot_dimension_numbers<[1], [0], [0], [1], [0, 0, 1, 1], [], []>} : vector<8x8xf32>, vector<8x32xf32>, vector<8x32xf32> -> vector<8x32xf32>
    %34 = arith.addf %13, %33 : vector<8x32xf32>
    %35 = vector.extract_strided_slice %9 {offsets = [0, 8], sizes = [8, 8], strides = [1, 1]} : vector<8x32xf32> to vector<8x8xf32>
    %36 = vector.extract_strided_slice %10 {offsets = [0, 8], sizes = [8, 8], strides = [1, 1]} : vector<8x32xf32> to vector<8x8xf32>
    %37 = vector.extract_strided_slice %11 {offsets = [0, 8], sizes = [8, 8], strides = [1, 1]} : vector<8x32xf32> to vector<8x8xf32>
    %cst_18 = arith.constant dense<0.000000e+00> : vector<8x8xf32>
    %38 = tpu.matmul %35, %36, %cst_18 {dimension_numbers = #tpu.dot_dimension_numbers<[1], [1], [0], [0], [0, 0, 1, 0], [], []>} : vector<8x8xf32>, vector<8x8xf32>, vector<8x8xf32> -> vector<8x8xf32>
    %cst_19 = arith.constant 0.353553385 : f32
    %39 = vector.broadcast %cst_19 : f32 to vector<8x8xf32>
    %40 = arith.mulf %38, %39 : vector<8x8xf32>
    %41 = vector.broadcast %3 : vector<1x8xf32> to vector<8x8xf32>
    %42 = arith.addf %40, %41 : vector<8x8xf32>
    %cst_20 = arith.constant dense<0xFF800000> : vector<8xf32>
    %43 = vector.multi_reduction <maximumf>, %42, %cst_20 [1] : vector<8x8xf32> to vector<8xf32>
    %44 = vector.shape_cast %43 : vector<8xf32> to vector<8x1xf32>
    %45 = vector.broadcast %44 : vector<8x1xf32> to vector<8x8xf32>
    %46 = arith.subf %42, %45 : vector<8x8xf32>
    %47 = math.exp %46 : vector<8x8xf32>
    %cst_21 = arith.constant dense<0.000000e+00> : vector<8xf32>
    %48 = vector.multi_reduction <add>, %47, %cst_21 [1] : vector<8x8xf32> to vector<8xf32>
    %49 = vector.shape_cast %48 : vector<8xf32> to vector<8x1xf32>
    %50 = vector.broadcast %49 : vector<8x1xf32> to vector<8x8xf32>
    %51 = arith.divf %47, %50 : vector<8x8xf32>
    %cst_22 = arith.constant dense<0.000000e+00> : vector<8x8xf32>
    %52 = tpu.matmul %51, %37, %cst_22 {dimension_numbers = #tpu.dot_dimension_numbers<[1], [0], [0], [1], [0, 0, 1, 1], [], []>} : vector<8x8xf32>, vector<8x8xf32>, vector<8x8xf32> -> vector<8x8xf32>
    %53 = vector.extract_strided_slice %12 {offsets = [8, 0], sizes = [8, 32], strides = [1, 1]} : vector<32x32xf32> to vector<8x32xf32>
    %cst_23 = arith.constant dense<0.000000e+00> : vector<8x32xf32>
    %54 = tpu.matmul %52, %53, %cst_23 {dimension_numbers = #tpu.dot_dimension_numbers<[1], [0], [0], [1], [0, 0, 1, 1], [], []>} : vector<8x8xf32>, vector<8x32xf32>, vector<8x32xf32> -> vector<8x32xf32>
    %55 = arith.addf %34, %54 : vector<8x32xf32>
    %56 = vector.extract_strided_slice %9 {offsets = [0, 16], sizes = [8, 8], strides = [1, 1]} : vector<8x32xf32> to vector<8x8xf32>
    %57 = vector.extract_strided_slice %10 {offsets = [0, 16], sizes = [8, 8], strides = [1, 1]} : vector<8x32xf32> to vector<8x8xf32>
    %58 = vector.extract_strided_slice %11 {offsets = [0, 16], sizes = [8, 8], strides = [1, 1]} : vector<8x32xf32> to vector<8x8xf32>
    %cst_24 = arith.constant dense<0.000000e+00> : vector<8x8xf32>
    %59 = tpu.matmul %56, %57, %cst_24 {dimension_numbers = #tpu.dot_dimension_numbers<[1], [1], [0], [0], [0, 0, 1, 0], [], []>} : vector<8x8xf32>, vector<8x8xf32>, vector<8x8xf32> -> vector<8x8xf32>
    %cst_25 = arith.constant 0.353553385 : f32
    %60 = vector.broadcast %cst_25 : f32 to vector<8x8xf32>
    %61 = arith.mulf %59, %60 : vector<8x8xf32>
    %62 = vector.broadcast %3 : vector<1x8xf32> to vector<8x8xf32>
    %63 = arith.addf %61, %62 : vector<8x8xf32>
    %cst_26 = arith.constant dense<0xFF800000> : vector<8xf32>
    %64 = vector.multi_reduction <maximumf>, %63, %cst_26 [1] : vector<8x8xf32> to vector<8xf32>
    %65 = vector.shape_cast %64 : vector<8xf32> to vector<8x1xf32>
    %66 = vector.broadcast %65 : vector<8x1xf32> to vector<8x8xf32>
    %67 = arith.subf %63, %66 : vector<8x8xf32>
    %68 = math.exp %67 : vector<8x8xf32>
    %cst_27 = arith.constant dense<0.000000e+00> : vector<8xf32>
    %69 = vector.multi_reduction <add>, %68, %cst_27 [1] : vector<8x8xf32> to vector<8xf32>
    %70 = vector.shape_cast %69 : vector<8xf32> to vector<8x1xf32>
    %71 = vector.broadcast %70 : vector<8x1xf32> to vector<8x8xf32>
    %72 = arith.divf %68, %71 : vector<8x8xf32>
    %cst_28 = arith.constant dense<0.000000e+00> : vector<8x8xf32>
    %73 = tpu.matmul %72, %58, %cst_28 {dimension_numbers = #tpu.dot_dimension_numbers<[1], [0], [0], [1], [0, 0, 1, 1], [], []>} : vector<8x8xf32>, vector<8x8xf32>, vector<8x8xf32> -> vector<8x8xf32>
    %74 = vector.extract_strided_slice %12 {offsets = [16, 0], sizes = [8, 32], strides = [1, 1]} : vector<32x32xf32> to vector<8x32xf32>
    %cst_29 = arith.constant dense<0.000000e+00> : vector<8x32xf32>
    %75 = tpu.matmul %73, %74, %cst_29 {dimension_numbers = #tpu.dot_dimension_numbers<[1], [0], [0], [1], [0, 0, 1, 1], [], []>} : vector<8x8xf32>, vector<8x32xf32>, vector<8x32xf32> -> vector<8x32xf32>
    %76 = arith.addf %55, %75 : vector<8x32xf32>
    %77 = vector.extract_strided_slice %9 {offsets = [0, 24], sizes = [8, 8], strides = [1, 1]} : vector<8x32xf32> to vector<8x8xf32>
    %78 = vector.extract_strided_slice %10 {offsets = [0, 24], sizes = [8, 8], strides = [1, 1]} : vector<8x32xf32> to vector<8x8xf32>
    %79 = vector.extract_strided_slice %11 {offsets = [0, 24], sizes = [8, 8], strides = [1, 1]} : vector<8x32xf32> to vector<8x8xf32>
    %cst_30 = arith.constant dense<0.000000e+00> : vector<8x8xf32>
    %80 = tpu.matmul %77, %78, %cst_30 {dimension_numbers = #tpu.dot_dimension_numbers<[1], [1], [0], [0], [0, 0, 1, 0], [], []>} : vector<8x8xf32>, vector<8x8xf32>, vector<8x8xf32> -> vector<8x8xf32>
    %cst_31 = arith.constant 0.353553385 : f32
    %81 = vector.broadcast %cst_31 : f32 to vector<8x8xf32>
    %82 = arith.mulf %80, %81 : vector<8x8xf32>
    %83 = vector.broadcast %3 : vector<1x8xf32> to vector<8x8xf32>
    %84 = arith.addf %82, %83 : vector<8x8xf32>
    %cst_32 = arith.constant dense<0xFF800000> : vector<8xf32>
    %85 = vector.multi_reduction <maximumf>, %84, %cst_32 [1] : vector<8x8xf32> to vector<8xf32>
    %86 = vector.shape_cast %85 : vector<8xf32> to vector<8x1xf32>
    %87 = vector.broadcast %86 : vector<8x1xf32> to vector<8x8xf32>
    %88 = arith.subf %84, %87 : vector<8x8xf32>
    %89 = math.exp %88 : vector<8x8xf32>
    %cst_33 = arith.constant dense<0.000000e+00> : vector<8xf32>
    %90 = vector.multi_reduction <add>, %89, %cst_33 [1] : vector<8x8xf32> to vector<8xf32>
    %91 = vector.shape_cast %90 : vector<8xf32> to vector<8x1xf32>
    %92 = vector.broadcast %91 : vector<8x1xf32> to vector<8x8xf32>
    %93 = arith.divf %89, %92 : vector<8x8xf32>
    %cst_34 = arith.constant dense<0.000000e+00> : vector<8x8xf32>
    %94 = tpu.matmul %93, %79, %cst_34 {dimension_numbers = #tpu.dot_dimension_numbers<[1], [0], [0], [1], [0, 0, 1, 1], [], []>} : vector<8x8xf32>, vector<8x8xf32>, vector<8x8xf32> -> vector<8x8xf32>
    %95 = vector.extract_strided_slice %12 {offsets = [24, 0], sizes = [8, 32], strides = [1, 1]} : vector<32x32xf32> to vector<8x32xf32>
    %cst_35 = arith.constant dense<0.000000e+00> : vector<8x32xf32>
    %96 = tpu.matmul %94, %95, %cst_35 {dimension_numbers = #tpu.dot_dimension_numbers<[1], [0], [0], [1], [0, 0, 1, 1], [], []>} : vector<8x8xf32>, vector<8x32xf32>, vector<8x32xf32> -> vector<8x32xf32>
    %97 = arith.addf %76, %96 : vector<8x32xf32>
    %c0_36 = arith.constant 0 : index
    %c0_37 = arith.constant 0 : index
    %98 = vector.load %arg6[%c0_36, %c0_37] : memref<1x32xf32, #tpu.memory_space<vmem>>, vector<1x32xf32>
    %99 = vector.broadcast %98 : vector<1x32xf32> to vector<8x32xf32>
    %100 = arith.addf %97, %99 : vector<8x32xf32>
    %101 = arith.addf %1, %100 : vector<8x32xf32>
    %cst_38 = arith.constant dense<0.000000e+00> : vector<8xf32>
    %102 = vector.multi_reduction <add>, %101, %cst_38 [1] : vector<8x32xf32> to vector<8xf32>
    %103 = vector.shape_cast %102 : vector<8xf32> to vector<8x1xf32>
    %cst_39 = arith.constant 3.200000e+01 : f32
    %104 = vector.broadcast %cst_39 : f32 to vector<8x1xf32>
    %105 = arith.divf %103, %104 : vector<8x1xf32>
    %106 = vector.broadcast %105 : vector<8x1xf32> to vector<8x32xf32>
    %107 = arith.subf %101, %106 : vector<8x32xf32>
    %108 = arith.mulf %107, %107 : vector<8x32xf32>
    %cst_40 = arith.constant dense<0.000000e+00> : vector<8xf32>
    %109 = vector.multi_reduction <add>, %108, %cst_40 [1] : vector<8x32xf32> to vector<8xf32>
    %110 = vector.shape_cast %109 : vector<8xf32> to vector<8x1xf32>
    %cst_41 = arith.constant 3.200000e+01 : f32
    %111 = vector.broadcast %cst_41 : f32 to vector<8x1xf32>
    %112 = arith.divf %110, %111 : vector<8x1xf32>
    %113 = vector.broadcast %105 : vector<8x1xf32> to vector<8x32xf32>
    %114 = arith.subf %101, %113 : vector<8x32xf32>
    %cst_42 = arith.constant 9.99999974E-6 : f32
    %115 = vector.broadcast %cst_42 : f32 to vector<8x1xf32>
    %116 = arith.addf %112, %115 : vector<8x1xf32>
    %117 = math.rsqrt %116 : vector<8x1xf32>
    %118 = vector.broadcast %117 : vector<8x1xf32> to vector<8x32xf32>
    %119 = arith.mulf %114, %118 : vector<8x32xf32>
    %c0_43 = arith.constant 0 : index
    %c0_44 = arith.constant 0 : index
    %120 = vector.load %arg7[%c0_43, %c0_44] : memref<1x32xf32, #tpu.memory_space<vmem>>, vector<1x32xf32>
    %121 = vector.broadcast %120 : vector<1x32xf32> to vector<8x32xf32>
    %122 = arith.mulf %119, %121 : vector<8x32xf32>
    %c0_45 = arith.constant 0 : index
    %c0_46 = arith.constant 0 : index
    %123 = vector.load %arg8[%c0_45, %c0_46] : memref<1x32xf32, #tpu.memory_space<vmem>>, vector<1x32xf32>
    %124 = vector.broadcast %123 : vector<1x32xf32> to vector<8x32xf32>
    %125 = arith.addf %122, %124 : vector<8x32xf32>
    %c0_47 = arith.constant 0 : index
    %c0_48 = arith.constant 0 : index
    %126 = vector.load %arg9[%c0_47, %c0_48] : memref<32x2048xf32, #tpu.memory_space<vmem>>, vector<32x2048xf32>
    %cst_49 = arith.constant dense<0.000000e+00> : vector<8x2048xf32>
    %127 = tpu.matmul %125, %126, %cst_49 {dimension_numbers = #tpu.dot_dimension_numbers<[1], [0], [0], [1], [0, 0, 1, 1], [], []>} : vector<8x32xf32>, vector<32x2048xf32>, vector<8x2048xf32> -> vector<8x2048xf32>
    %c0_50 = arith.constant 0 : index
    %c0_51 = arith.constant 0 : index
    %128 = vector.load %arg10[%c0_50, %c0_51] : memref<1x2048xf32, #tpu.memory_space<vmem>>, vector<1x2048xf32>
    %129 = vector.broadcast %128 : vector<1x2048xf32> to vector<8x2048xf32>
    %130 = arith.addf %127, %129 : vector<8x2048xf32>
    %cst_52 = arith.constant 0.000000e+00 : f32
    %131 = vector.broadcast %cst_52 : f32 to vector<8x2048xf32>
    %132 = arith.maximumf %130, %131 : vector<8x2048xf32>
    %c0_53 = arith.constant 0 : index
    %c0_54 = arith.constant 0 : index
    %133 = vector.load %arg11[%c0_53, %c0_54] : memref<2048x32xf32, #tpu.memory_space<vmem>>, vector<2048x32xf32>
    %cst_55 = arith.constant dense<0.000000e+00> : vector<8x32xf32>
    %134 = tpu.matmul %132, %133, %cst_55 {dimension_numbers = #tpu.dot_dimension_numbers<[1], [0], [0], [1], [0, 0, 1, 1], [], []>} : vector<8x2048xf32>, vector<2048x32xf32>, vector<8x32xf32> -> vector<8x32xf32>
    %c0_56 = arith.constant 0 : index
    %c0_57 = arith.constant 0 : index
    %135 = vector.load %arg12[%c0_56, %c0_57] : memref<1x32xf32, #tpu.memory_space<vmem>>, vector<1x32xf32>
    %136 = vector.broadcast %135 : vector<1x32xf32> to vector<8x32xf32>
    %137 = arith.addf %134, %136 : vector<8x32xf32>
    %138 = arith.addf %125, %137 : vector<8x32xf32>
    %cst_58 = arith.constant dense<0.000000e+00> : vector<8xf32>
    %139 = vector.multi_reduction <add>, %138, %cst_58 [1] : vector<8x32xf32> to vector<8xf32>
    %140 = vector.shape_cast %139 : vector<8xf32> to vector<8x1xf32>
    %cst_59 = arith.constant 3.200000e+01 : f32
    %141 = vector.broadcast %cst_59 : f32 to vector<8x1xf32>
    %142 = arith.divf %140, %141 : vector<8x1xf32>
    %143 = vector.broadcast %142 : vector<8x1xf32> to vector<8x32xf32>
    %144 = arith.subf %138, %143 : vector<8x32xf32>
    %145 = arith.mulf %144, %144 : vector<8x32xf32>
    %cst_60 = arith.constant dense<0.000000e+00> : vector<8xf32>
    %146 = vector.multi_reduction <add>, %145, %cst_60 [1] : vector<8x32xf32> to vector<8xf32>
    %147 = vector.shape_cast %146 : vector<8xf32> to vector<8x1xf32>
    %cst_61 = arith.constant 3.200000e+01 : f32
    %148 = vector.broadcast %cst_61 : f32 to vector<8x1xf32>
    %149 = arith.divf %147, %148 : vector<8x1xf32>
    %150 = vector.broadcast %142 : vector<8x1xf32> to vector<8x32xf32>
    %151 = arith.subf %138, %150 : vector<8x32xf32>
    %cst_62 = arith.constant 9.99999974E-6 : f32
    %152 = vector.broadcast %cst_62 : f32 to vector<8x1xf32>
    %153 = arith.addf %149, %152 : vector<8x1xf32>
    %154 = math.rsqrt %153 : vector<8x1xf32>
    %155 = vector.broadcast %154 : vector<8x1xf32> to vector<8x32xf32>
    %156 = arith.mulf %151, %155 : vector<8x32xf32>
    %c0_63 = arith.constant 0 : index
    %c0_64 = arith.constant 0 : index
    %157 = vector.load %arg13[%c0_63, %c0_64] : memref<1x32xf32, #tpu.memory_space<vmem>>, vector<1x32xf32>
    %158 = vector.broadcast %157 : vector<1x32xf32> to vector<8x32xf32>
    %159 = arith.mulf %156, %158 : vector<8x32xf32>
    %c0_65 = arith.constant 0 : index
    %c0_66 = arith.constant 0 : index
    %160 = vector.load %arg14[%c0_65, %c0_66] : memref<1x32xf32, #tpu.memory_space<vmem>>, vector<1x32xf32>
    %161 = vector.broadcast %160 : vector<1x32xf32> to vector<8x32xf32>
    %162 = arith.addf %159, %161 : vector<8x32xf32>
    %163 = vector.extract_strided_slice %162 {offsets = [0, 0], sizes = [1, 32], strides = [1, 1]} : vector<8x32xf32> to vector<1x32xf32>
    %c0_67 = arith.constant 0 : index
    %c0_68 = arith.constant 0 : index
    %164 = vector.load %arg15[%c0_67, %c0_68] : memref<32x128xf32, #tpu.memory_space<vmem>>, vector<32x128xf32>
    %cst_69 = arith.constant dense<0.000000e+00> : vector<1x128xf32>
    %165 = tpu.matmul %163, %164, %cst_69 {dimension_numbers = #tpu.dot_dimension_numbers<[1], [0], [0], [1], [0, 0, 1, 1], [], []>} : vector<1x32xf32>, vector<32x128xf32>, vector<1x128xf32> -> vector<1x128xf32>
    %c0_70 = arith.constant 0 : index
    %c0_71 = arith.constant 0 : index
    %166 = vector.load %arg16[%c0_70, %c0_71] : memref<1x128xf32, #tpu.memory_space<vmem>>, vector<1x128xf32>
    %167 = arith.addf %165, %166 : vector<1x128xf32>
    %c0_72 = arith.constant 0 : index
    %c0_73 = arith.constant 0 : index
    %c0_74 = arith.constant 0 : index
    %168 = vector.load %arg17[%c0_72, %c0_73, %c0_74] : memref<1x1x128xf32, #tpu.memory_space<vmem>>, vector<1x1x128xf32>
    %169 = vector.shape_cast %168 : vector<1x1x128xf32> to vector<1x128xf32>
    %170 = vector.shape_cast %167 : vector<1x128xf32> to vector<1x1x128xf32>
    tpu.vector_store %arg17[%c0_72, %c0_73, %c0_74], %170 {strides = array<i32>} : memref<1x1x128xf32, #tpu.memory_space<vmem>>, vector<1x1x128xf32>,
    return
  }
  func.func @transform_0(%arg0: i32) -> (i32, i32, i32) {
    %c0_i32 = arith.constant 0 : i32
    %c0_i32_0 = arith.constant 0 : i32
    %c0_i32_1 = arith.constant 0 : i32
    return %arg0, %c0_i32, %c0_i32_0 : i32, i32, i32
  }
  func.func @transform_1(%arg0: i32) -> (i32, i32, i32) {
    %c0_i32 = arith.constant 0 : i32
    %c0_i32_0 = arith.constant 0 : i32
    %c0_i32_1 = arith.constant 0 : i32
    return %arg0, %c0_i32, %c0_i32_0 : i32, i32, i32
  }
  func.func @transform_2(%arg0: i32) -> (i32, i32) {
    %c0_i32 = arith.constant 0 : i32
    %c0_i32_0 = arith.constant 0 : i32
    %c0_i32_1 = arith.constant 0 : i32
    return %c0_i32, %c0_i32_0 : i32, i32
  }
  func.func @transform_3(%arg0: i32) -> (i32, i32) {
    %c0_i32 = arith.constant 0 : i32
    %c0_i32_0 = arith.constant 0 : i32
    %c0_i32_1 = arith.constant 0 : i32
    return %c0_i32, %c0_i32_0 : i32, i32
  }
  func.func @transform_4(%arg0: i32) -> (i32, i32) {
    %c0_i32 = arith.constant 0 : i32
    %c0_i32_0 = arith.constant 0 : i32
    %c0_i32_1 = arith.constant 0 : i32
    return %c0_i32, %c0_i32_0 : i32, i32
  }
  func.func @transform_5(%arg0: i32) -> (i32, i32) {
    %c0_i32 = arith.constant 0 : i32
    %c0_i32_0 = arith.constant 0 : i32
    %c0_i32_1 = arith.constant 0 : i32
    return %c0_i32, %c0_i32_0 : i32, i32
  }
  func.func @transform_6(%arg0: i32) -> (i32, i32) {
    %c0_i32 = arith.constant 0 : i32
    %c0_i32_0 = arith.constant 0 : i32
    %c0_i32_1 = arith.constant 0 : i32
    return %c0_i32, %c0_i32_0 : i32, i32
  }
  func.func @transform_7(%arg0: i32) -> (i32, i32) {
    %c0_i32 = arith.constant 0 : i32
    %c0_i32_0 = arith.constant 0 : i32
    %c0_i32_1 = arith.constant 0 : i32
    return %c0_i32, %c0_i32_0 : i32, i32
  }
  func.func @transform_8(%arg0: i32) -> (i32, i32) {
    %c0_i32 = arith.constant 0 : i32
    %c0_i32_0 = arith.constant 0 : i32
    %c0_i32_1 = arith.constant 0 : i32
    return %c0_i32, %c0_i32_0 : i32, i32
  }
  func.func @transform_9(%arg0: i32) -> (i32, i32) {
    %c0_i32 = arith.constant 0 : i32
    %c0_i32_0 = arith.constant 0 : i32
    %c0_i32_1 = arith.constant 0 : i32
    return %c0_i32, %c0_i32_0 : i32, i32
  }
  func.func @transform_10(%arg0: i32) -> (i32, i32) {
    %c0_i32 = arith.constant 0 : i32
    %c0_i32_0 = arith.constant 0 : i32
    %c0_i32_1 = arith.constant 0 : i32
    return %c0_i32, %c0_i32_0 : i32, i32
  }
  func.func @transform_11(%arg0: i32) -> (i32, i32) {
    %c0_i32 = arith.constant 0 : i32
    %c0_i32_0 = arith.constant 0 : i32
    %c0_i32_1 = arith.constant 0 : i32
    return %c0_i32, %c0_i32_0 : i32, i32
  }
  func.func @transform_12(%arg0: i32) -> (i32, i32) {
    %c0_i32 = arith.constant 0 : i32
    %c0_i32_0 = arith.constant 0 : i32
    %c0_i32_1 = arith.constant 0 : i32
    return %c0_i32, %c0_i32_0 : i32, i32
  }
  func.func @transform_13(%arg0: i32) -> (i32, i32) {
    %c0_i32 = arith.constant 0 : i32
    %c0_i32_0 = arith.constant 0 : i32
    %c0_i32_1 = arith.constant 0 : i32
    return %c0_i32, %c0_i32_0 : i32, i32
  }
  func.func @transform_14(%arg0: i32) -> (i32, i32) {
    %c0_i32 = arith.constant 0 : i32
    %c0_i32_0 = arith.constant 0 : i32
    %c0_i32_1 = arith.constant 0 : i32
    return %c0_i32, %c0_i32_0 : i32, i32
  }
  func.func @transform_15(%arg0: i32) -> (i32, i32) {
    %c0_i32 = arith.constant 0 : i32
    %c0_i32_0 = arith.constant 0 : i32
    %c0_i32_1 = arith.constant 0 : i32
    return %c0_i32, %c0_i32_0 : i32, i32
  }
  func.func @transform_16(%arg0: i32) -> (i32, i32, i32) {
    %c0_i32 = arith.constant 0 : i32
    %c0_i32_0 = arith.constant 0 : i32
    %c0_i32_1 = arith.constant 0 : i32
    return %arg0, %c0_i32, %c0_i32_0 : i32, i32, i32
  }
}

</mosaic_0001>

<llo_original>
// kernel: tpu_custom_call.1
$region0: #{tpu_custom_call.1}
  #allocation0 [shape = 'u32[]', space=smem, size = 0x4, offset = 0x4, fixed_abs, tag = 'smem constant byte address 0x4 - core index']
  #allocation1 [shape = 'u32[144,128]{1,0:T(1,128)}', space=vmem, size = 0x12000, scoped, tag = 'internal scratch']
  %s0 = inlined_call_operand.vmem [shape: f32[3,8,32], index: 0, kind: input, shape index: {}]
  %s1 = inlined_call_operand.vmem [shape: f32[3,1,8], index: 1, kind: input, shape index: {}]
  %s2 = inlined_call_operand.vmem [shape: f32[32,96], index: 2, kind: input, shape index: {}]
  %s3 = inlined_call_operand.vmem [shape: f32[1,96], index: 3, kind: input, shape index: {}]
  %s4 = inlined_call_operand.vmem [shape: f32[32,32], index: 4, kind: input, shape index: {}]
  %s5 = inlined_call_operand.vmem [shape: f32[1,32], index: 5, kind: input, shape index: {}]
  %s6 = inlined_call_operand.vmem [shape: f32[1,32], index: 6, kind: input, shape index: {}]
  %s7 = inlined_call_operand.vmem [shape: f32[1,32], index: 7, kind: input, shape index: {}]
  %s8 = inlined_call_operand.vmem [shape: f32[32,2048], index: 8, kind: input, shape index: {}]
  %s9 = inlined_call_operand.vmem [shape: f32[1,2048], index: 9, kind: input, shape index: {}]
  %s10 = inlined_call_operand.vmem [shape: f32[2048,32], index: 10, kind: input, shape index: {}]
  %s11 = inlined_call_operand.vmem [shape: f32[1,32], index: 11, kind: input, shape index: {}]
  %s12 = inlined_call_operand.vmem [shape: f32[1,32], index: 12, kind: input, shape index: {}]
  %s13 = inlined_call_operand.vmem [shape: f32[1,32], index: 13, kind: input, shape index: {}]
  %s14 = inlined_call_operand.vmem [shape: f32[32,128], index: 14, kind: input, shape index: {}]
  %s15 = inlined_call_operand.vmem [shape: f32[1,128], index: 15, kind: input, shape index: {}]
  %s16 = inlined_call_operand.hbm [shape: f32[3,1,128], index: 16, kind: output, shape index: {}]
  %s17 = sld [smem:[#allocation0]]
  $region97: #{tpu_custom_call.1} parent=0
    _
  %s19 = ssub.s32 1, %s17
  %s20 = scalar_select 0, %s19, %s17
  $region1: #{tpu_custom_call.1} parent=0
    #allocation2 [shape = 'u8[1024]{0}', space=vmem, size = 0x400, scoped, tag = 'output window, operand 0']
    #allocation3 [shape = 's32[2]{0}', space=sflag, size = 0x8, scoped, tag = 'scoped memory for tpu_custom_call.1']
    %21 = vsyncpa [#allocation3], 0
    %s22 = scalar_lea.sflag [#allocation3], 1
    %23 = vsyncpa %s22, 0
    loop: start=0, step=1, limit=5
    $region2: #{tpu_custom_call.1} parent=1 // loop_pre_header
      _
    $region3: #{tpu_custom_call.1} parent=1 // loop_header
      %s25 = sphi 0, %s29
      %p26 = scmp.ge.s32.totalorder %s25, 5
      %s35 = sphi 0, %s37
      %s38 = sphi 0, %s35
      %s39 = sphi 0, %s38
      %s55 = sphi 0, %s39
      %s61 = sphi 0, %s63
      %s64 = sphi 0, %s61
      %s65 = sphi 0, %s64
      %s81 = sphi 0, %s65
      %s85 = sphi 0, %s85
      %s87 = sphi 0, %s85
      %s88 = sphi 0, %s87
      %s102 = sphi 0, %s88
      %s106 = sphi 0, %s106
      %s108 = sphi 0, %s106
      %s109 = sphi 0, %s108
      %s123 = sphi 0, %s109
      %s127 = sphi 0, %s127
      %s129 = sphi 0, %s127
      %s130 = sphi 0, %s129
      %s144 = sphi 0, %s130
      %s148 = sphi 0, %s148
      %s150 = sphi 0, %s148
      %s151 = sphi 0, %s150
      %s165 = sphi 0, %s151
      %s169 = sphi 0, %s169
      %s171 = sphi 0, %s169
      %s172 = sphi 0, %s171
      %s186 = sphi 0, %s172
      %s190 = sphi 0, %s190
      %s192 = sphi 0, %s190
      %s193 = sphi 0, %s192
      %s207 = sphi 0, %s193
      %s211 = sphi 0, %s211
      %s213 = sphi 0, %s211
      %s214 = sphi 0, %s213
      %s228 = sphi 0, %s214
      %s232 = sphi 0, %s232
      %s234 = sphi 0, %s232
      %s235 = sphi 0, %s234
      %s249 = sphi 0, %s235
      %s253 = sphi 0, %s253
      %s255 = sphi 0, %s253
      %s256 = sphi 0, %s255
      %s270 = sphi 0, %s256
      %s274 = sphi 0, %s274
      %s276 = sphi 0, %s274
      %s277 = sphi 0, %s276
      %s291 = sphi 0, %s277
      %s295 = sphi 0, %s295
      %s297 = sphi 0, %s295
      %s298 = sphi 0, %s297
      %s312 = sphi 0, %s298
      %s316 = sphi 0, %s316
      %s318 = sphi 0, %s316
      %s319 = sphi 0, %s318
      %s333 = sphi 0, %s319
      %s337 = sphi 0, %s337
      %s339 = sphi 0, %s337
      %s340 = sphi 0, %s339
      %s354 = sphi 0, %s340
      %s358 = sphi 0, %s358
      %s360 = sphi 0, %s358
      %s361 = sphi 0, %s360
      %s375 = sphi 0, %s361
      %s381 = sphi 0, %s383
      %s384 = sphi 0, %s381
      %s385 = sphi 0, %s384
      %s401 = sphi 0, %s385
    $region4: #{tpu_custom_call.1} parent=1 // loop_header_branch
      %28 = sbr.rel (%p26) target = $region8
    $region5: #{tpu_custom_call.1} parent=1 // loop_body
      %s30 = ssub.s32 %s25, 1
      %s31 = ssub.s32 %s25, 2
      %s32 = sadd.s32 %s25, 1
      %s33 = ssub.s32 %s25, %s32
      %p34 = scmp.eq.s32.totalorder %s33, 0
      %s36 = sadd.s32 %s35, 1
      %s37 = scalar_select %p34, %s35, %s36
      %p40 = pneg %p34
      %p41 = scmp.eq.s32.totalorder %s25, 2
      %p42 = por %p40, %p41
      %p43 = scmp.ne.s32.totalorder %s35, %s38
      %p44 = scmp.eq.s32.totalorder %s25, 0
      %p45 = por %p43, %p44
      %p46 = scmp.ne.s32.totalorder %s35, %s38
      %p47 = scmp.eq.s32.totalorder %s30, 2
      %p48 = por %p46, %p47
      %p49 = scmp.ne.s32.totalorder %s38, %s39
      %p50 = scmp.eq.s32.totalorder %s30, 0
      %p51 = por %p49, %p50
      %p52 = scmp.ne.s32.totalorder %s38, %s39
      %p53 = scmp.eq.s32.totalorder %s31, 2
      %p54 = por %p52, %p53
      %p56 = scmp.ne.s32.totalorder %s39, %s55
      %p57 = scmp.eq.s32.totalorder %s31, 0
      %p58 = por %p56, %p57
      %s59 = ssub.s32 %s25, %s32
      %p60 = scmp.eq.s32.totalorder %s59, 0
      %s62 = sadd.s32 %s61, 1
      %s63 = scalar_select %p60, %s61, %s62
      %p66 = pneg %p60
      %p67 = scmp.eq.s32.totalorder %s25, 2
      %p68 = por %p66, %p67
      %p69 = scmp.ne.s32.totalorder %s61, %s64
      %p70 = scmp.eq.s32.totalorder %s25, 0
      %p71 = por %p69, %p70
      %p72 = scmp.ne.s32.totalorder %s61, %s64
      %p73 = scmp.eq.s32.totalorder %s30, 2
      %p74 = por %p72, %p73
      %p75 = scmp.ne.s32.totalorder %s64, %s65
      %p76 = scmp.eq.s32.totalorder %s30, 0
      %p77 = por %p75, %p76
      %p78 = scmp.ne.s32.totalorder %s64, %s65
      %p79 = scmp.eq.s32.totalorder %s31, 2
      %p80 = por %p78, %p79
      %p82 = scmp.ne.s32.totalorder %s65, %s81
      %p83 = scmp.eq.s32.totalorder %s31, 0
      %p84 = por %p82, %p83
      %s86 = sadd.s32 %s85, 1
      %p89 = scmp.eq.s32.totalorder %s25, 2
      %p90 = scmp.ne.s32.totalorder %s85, %s87
      %p91 = scmp.eq.s32.totalorder %s25, 0
      %p92 = por %p90, %p91
      %p93 = scmp.ne.s32.totalorder %s85, %s87
      %p94 = scmp.eq.s32.totalorder %s30, 2
      %p95 = por %p93, %p94
      %p96 = scmp.ne.s32.totalorder %s87, %s88
      %p97 = scmp.eq.s32.totalorder %s30, 0
      %p98 = por %p96, %p97
      %p99 = scmp.ne.s32.totalorder %s87, %s88
      %p100 = scmp.eq.s32.totalorder %s31, 2
      %p101 = por %p99, %p100
      %p103 = scmp.ne.s32.totalorder %s88, %s102
      %p104 = scmp.eq.s32.totalorder %s31, 0
      %p105 = por %p103, %p104
      %s107 = sadd.s32 %s106, 1
      %p110 = scmp.eq.s32.totalorder %s25, 2
      %p111 = scmp.ne.s32.totalorder %s106, %s108
      %p112 = scmp.eq.s32.totalorder %s25, 0
      %p113 = por %p111, %p112
      %p114 = scmp.ne.s32.totalorder %s106, %s108
      %p115 = scmp.eq.s32.totalorder %s30, 2
      %p116 = por %p114, %p115
      %p117 = scmp.ne.s32.totalorder %s108, %s109
      %p118 = scmp.eq.s32.totalorder %s30, 0
      %p119 = por %p117, %p118
      %p120 = scmp.ne.s32.totalorder %s108, %s109
      %p121 = scmp.eq.s32.totalorder %s31, 2
      %p122 = por %p120, %p121
      %p124 = scmp.ne.s32.totalorder %s109, %s123
      %p125 = scmp.eq.s32.totalorder %s31, 0
      %p126 = por %p124, %p125
      %s128 = sadd.s32 %s127, 1
      %p131 = scmp.eq.s32.totalorder %s25, 2
      %p132 = scmp.ne.s32.totalorder %s127, %s129
      %p133 = scmp.eq.s32.totalorder %s25, 0
      %p134 = por %p132, %p133
      %p135 = scmp.ne.s32.totalorder %s127, %s129
      %p136 = scmp.eq.s32.totalorder %s30, 2
      %p137 = por %p135, %p136
      %p138 = scmp.ne.s32.totalorder %s129, %s130
      %p139 = scmp.eq.s32.totalorder %s30, 0
      %p140 = por %p138, %p139
      %p141 = scmp.ne.s32.totalorder %s129, %s130
      %p142 = scmp.eq.s32.totalorder %s31, 2
      %p143 = por %p141, %p142
      %p145 = scmp.ne.s32.totalorder %s130, %s144
      %p146 = scmp.eq.s32.totalorder %s31, 0
      %p147 = por %p145, %p146
      %s149 = sadd.s32 %s148, 1
      %p152 = scmp.eq.s32.totalorder %s25, 2
      %p153 = scmp.ne.s32.totalorder %s148, %s150
      %p154 = scmp.eq.s32.totalorder %s25, 0
      %p155 = por %p153, %p154
      %p156 = scmp.ne.s32.totalorder %s148, %s150
      %p157 = scmp.eq.s32.totalorder %s30, 2
      %p158 = por %p156, %p157
      %p159 = scmp.ne.s32.totalorder %s150, %s151
      %p160 = scmp.eq.s32.totalorder %s30, 0
      %p161 = por %p159, %p160
      %p162 = scmp.ne.s32.totalorder %s150, %s151
      %p163 = scmp.eq.s32.totalorder %s31, 2
      %p164 = por %p162, %p163
      %p166 = scmp.ne.s32.totalorder %s151, %s165
      %p167 = scmp.eq.s32.totalorder %s31, 0
      %p168 = por %p166, %p167
      %s170 = sadd.s32 %s169, 1
      %p173 = scmp.eq.s32.totalorder %s25, 2
      %p174 = scmp.ne.s32.totalorder %s169, %s171
      %p175 = scmp.eq.s32.totalorder %s25, 0
      %p176 = por %p174, %p175
      %p177 = scmp.ne.s32.totalorder %s169, %s171
      %p178 = scmp.eq.s32.totalorder %s30, 2
      %p179 = por %p177, %p178
      %p180 = scmp.ne.s32.totalorder %s171, %s172
      %p181 = scmp.eq.s32.totalorder %s30, 0
      %p182 = por %p180, %p181
      %p183 = scmp.ne.s32.totalorder %s171, %s172
      %p184 = scmp.eq.s32.totalorder %s31, 2
      %p185 = por %p183, %p184
      %p187 = scmp.ne.s32.totalorder %s172, %s186
      %p188 = scmp.eq.s32.totalorder %s31, 0
      %p189 = por %p187, %p188
      %s191 = sadd.s32 %s190, 1
      %p194 = scmp.eq.s32.totalorder %s25, 2
      %p195 = scmp.ne.s32.totalorder %s190, %s192
      %p196 = scmp.eq.s32.totalorder %s25, 0
      %p197 = por %p195, %p196
      %p198 = scmp.ne.s32.totalorder %s190, %s192
      %p199 = scmp.eq.s32.totalorder %s30, 2
      %p200 = por %p198, %p199
      %p201 = scmp.ne.s32.totalorder %s192, %s193
      %p202 = scmp.eq.s32.totalorder %s30, 0
      %p203 = por %p201, %p202
      %p204 = scmp.ne.s32.totalorder %s192, %s193
      %p205 = scmp.eq.s32.totalorder %s31, 2
      %p206 = por %p204, %p205
      %p208 = scmp.ne.s32.totalorder %s193, %s207
      %p209 = scmp.eq.s32.totalorder %s31, 0
      %p210 = por %p208, %p209
      %s212 = sadd.s32 %s211, 1
      %p215 = scmp.eq.s32.totalorder %s25, 2
      %p216 = scmp.ne.s32.totalorder %s211, %s213
      %p217 = scmp.eq.s32.totalorder %s25, 0
      %p218 = por %p216, %p217
      %p219 = scmp.ne.s32.totalorder %s211, %s213
      %p220 = scmp.eq.s32.totalorder %s30, 2
      %p221 = por %p219, %p220
      %p222 = scmp.ne.s32.totalorder %s213, %s214
      %p223 = scmp.eq.s32.totalorder %s30, 0
      %p224 = por %p222, %p223
      %p225 = scmp.ne.s32.totalorder %s213, %s214
      %p226 = scmp.eq.s32.totalorder %s31, 2
      %p227 = por %p225, %p226
      %p229 = scmp.ne.s32.totalorder %s214, %s228
      %p230 = scmp.eq.s32.totalorder %s31, 0
      %p231 = por %p229, %p230
      %s233 = sadd.s32 %s232, 1
      %p236 = scmp.eq.s32.totalorder %s25, 2
      %p237 = scmp.ne.s32.totalorder %s232, %s234
      %p238 = scmp.eq.s32.totalorder %s25, 0
      %p239 = por %p237, %p238
      %p240 = scmp.ne.s32.totalorder %s232, %s234
      %p241 = scmp.eq.s32.totalorder %s30, 2
      %p242 = por %p240, %p241
      %p243 = scmp.ne.s32.totalorder %s234, %s235
      %p244 = scmp.eq.s32.totalorder %s30, 0
      %p245 = por %p243, %p244
      %p246 = scmp.ne.s32.totalorder %s234, %s235
      %p247 = scmp.eq.s32.totalorder %s31, 2
      %p248 = por %p246, %p247
      %p250 = scmp.ne.s32.totalorder %s235, %s249
      %p251 = scmp.eq.s32.totalorder %s31, 0
      %p252 = por %p250, %p251
      %s254 = sadd.s32 %s253, 1
      %p257 = scmp.eq.s32.totalorder %s25, 2
      %p258 = scmp.ne.s32.totalorder %s253, %s255
      %p259 = scmp.eq.s32.totalorder %s25, 0
      %p260 = por %p258, %p259
      %p261 = scmp.ne.s32.totalorder %s253, %s255
      %p262 = scmp.eq.s32.totalorder %s30, 2
      %p263 = por %p261, %p262
      %p264 = scmp.ne.s32.totalorder %s255, %s256
      %p265 = scmp.eq.s32.totalorder %s30, 0
      %p266 = por %p264, %p265
      %p267 = scmp.ne.s32.totalorder %s255, %s256
      %p268 = scmp.eq.s32.totalorder %s31, 2
      %p269 = por %p267, %p268
      %p271 = scmp.ne.s32.totalorder %s256, %s270
      %p272 = scmp.eq.s32.totalorder %s31, 0
      %p273 = por %p271, %p272
      %s275 = sadd.s32 %s274, 1
      %p278 = scmp.eq.s32.totalorder %s25, 2
      %p279 = scmp.ne.s32.totalorder %s274, %s276
      %p280 = scmp.eq.s32.totalorder %s25, 0
      %p281 = por %p279, %p280
      %p282 = scmp.ne.s32.totalorder %s274, %s276
      %p283 = scmp.eq.s32.totalorder %s30, 2
      %p284 = por %p282, %p283
      %p285 = scmp.ne.s32.totalorder %s276, %s277
      %p286 = scmp.eq.s32.totalorder %s30, 0
      %p287 = por %p285, %p286
      %p288 = scmp.ne.s32.totalorder %s276, %s277
      %p289 = scmp.eq.s32.totalorder %s31, 2
      %p290 = por %p288, %p289
      %p292 = scmp.ne.s32.totalorder %s277, %s291
      %p293 = scmp.eq.s32.totalorder %s31, 0
      %p294 = por %p292, %p293
      %s296 = sadd.s32 %s295, 1
      %p299 = scmp.eq.s32.totalorder %s25, 2
      %p300 = scmp.ne.s32.totalorder %s295, %s297
      %p301 = scmp.eq.s32.totalorder %s25, 0
      %p302 = por %p300, %p301
      %p303 = scmp.ne.s32.totalorder %s295, %s297
      %p304 = scmp.eq.s32.totalorder %s30, 2
      %p305 = por %p303, %p304
      %p306 = scmp.ne.s32.totalorder %s297, %s298
      %p307 = scmp.eq.s32.totalorder %s30, 0
      %p308 = por %p306, %p307
      %p309 = scmp.ne.s32.totalorder %s297, %s298
      %p310 = scmp.eq.s32.totalorder %s31, 2
      %p311 = por %p309, %p310
      %p313 = scmp.ne.s32.totalorder %s298, %s312
      %p314 = scmp.eq.s32.totalorder %s31, 0
      %p315 = por %p313, %p314
      %s317 = sadd.s32 %s316, 1
      %p320 = scmp.eq.s32.totalorder %s25, 2
      %p321 = scmp.ne.s32.totalorder %s316, %s318
      %p322 = scmp.eq.s32.totalorder %s25, 0
      %p323 = por %p321, %p322
      %p324 = scmp.ne.s32.totalorder %s316, %s318
      %p325 = scmp.eq.s32.totalorder %s30, 2
      %p326 = por %p324, %p325
      %p327 = scmp.ne.s32.totalorder %s318, %s319
      %p328 = scmp.eq.s32.totalorder %s30, 0
      %p329 = por %p327, %p328
      %p330 = scmp.ne.s32.totalorder %s318, %s319
      %p331 = scmp.eq.s32.totalorder %s31, 2
      %p332 = por %p330, %p331
      %p334 = scmp.ne.s32.totalorder %s319, %s333
      %p335 = scmp.eq.s32.totalorder %s31, 0
      %p336 = por %p334, %p335
      %s338 = sadd.s32 %s337, 1
      %p341 = scmp.eq.s32.totalorder %s25, 2
      %p342 = scmp.ne.s32.totalorder %s337, %s339
      %p343 = scmp.eq.s32.totalorder %s25, 0
      %p344 = por %p342, %p343
      %p345 = scmp.ne.s32.totalorder %s337, %s339
      %p346 = scmp.eq.s32.totalorder %s30, 2
      %p347 = por %p345, %p346
      %p348 = scmp.ne.s32.totalorder %s339, %s340
      %p349 = scmp.eq.s32.totalorder %s30, 0
      %p350 = por %p348, %p349
      %p351 = scmp.ne.s32.totalorder %s339, %s340
      %p352 = scmp.eq.s32.totalorder %s31, 2
      %p353 = por %p351, %p352
      %p355 = scmp.ne.s32.totalorder %s340, %s354
      %p356 = scmp.eq.s32.totalorder %s31, 0
      %p357 = por %p355, %p356
      %s359 = sadd.s32 %s358, 1
      %p362 = scmp.eq.s32.totalorder %s25, 2
      %p363 = scmp.ne.s32.totalorder %s358, %s360
      %p364 = scmp.eq.s32.totalorder %s25, 0
      %p365 = por %p363, %p364
      %p366 = scmp.ne.s32.totalorder %s358, %s360
      %p367 = scmp.eq.s32.totalorder %s30, 2
      %p368 = por %p366, %p367
      %p369 = scmp.ne.s32.totalorder %s360, %s361
      %p370 = scmp.eq.s32.totalorder %s30, 0
      %p371 = por %p369, %p370
      %p372 = scmp.ne.s32.totalorder %s360, %s361
      %p373 = scmp.eq.s32.totalorder %s31, 2
      %p374 = por %p372, %p373
      %p376 = scmp.ne.s32.totalorder %s361, %s375
      %p377 = scmp.eq.s32.totalorder %s31, 0
      %p378 = por %p376, %p377
      %s379 = ssub.s32 %s25, %s32
      %p380 = scmp.eq.s32.totalorder %s379, 0
      %s382 = sadd.s32 %s381, 1
      %s383 = scalar_select %p380, %s381, %s382
      %p386 = pneg %p380
      %p387 = scmp.eq.s32.totalorder %s25, 2
      %p388 = por %p386, %p387
      %p389 = scmp.ne.s32.totalorder %s381, %s384
      %p390 = scmp.eq.s32.totalorder %s25, 0
      %p391 = por %p389, %p390
      %p392 = scmp.ne.s32.totalorder %s381, %s384
      %p393 = scmp.eq.s32.totalorder %s30, 2
      %p394 = por %p392, %p393
      %p395 = scmp.ne.s32.totalorder %s384, %s385
      %p396 = scmp.eq.s32.totalorder %s30, 0
      %p397 = por %p395, %p396
      %p398 = scmp.ne.s32.totalorder %s384, %s385
      %p399 = scmp.eq.s32.totalorder %s31, 2
      %p400 = por %p398, %p399
      %p402 = scmp.ne.s32.totalorder %s385, %s401
      %p403 = scmp.eq.s32.totalorder %s31, 0
      %p404 = por %p402, %p403
      %p405 = scmp.le.s32.totalorder 1, %s25
      %p406 = scmp.lt.s32.totalorder %s25, 4
      %p407 = pnand %p405, %p406
      %p408 = pneg %p407
      // Predicated region
      $region9: #{tpu_custom_call.1} parent=5 // pred_check
        _
      $region10: #{tpu_custom_call.1} parent=5 // pred_check_branch
        %410 = sbr.rel (%p407) target = $region12
      $region11: #{tpu_custom_call.1} parent=5 // pred_region
        %s411 = ssub.s32 %s25, 1
        // Predicated region
        $region13: #{tpu_custom_call.1} parent=11 // pred_check
          %p412 = pneg %p98
        $region14: #{tpu_custom_call.1} parent=11 // pred_check_branch
          %414 = sbr.rel (%p412) target = $region16
        $region15: #{tpu_custom_call.1} parent=11 // pred_region
          _
        $region16: #{tpu_custom_call.1} parent=11 // pred_fallthru
          _
        // Predicated region
        $region17: #{tpu_custom_call.1} parent=11 // pred_check
          %p415 = pneg %p119
        $region18: #{tpu_custom_call.1} parent=11 // pred_check_branch
          %417 = sbr.rel (%p415) target = $region20
        $region19: #{tpu_custom_call.1} parent=11 // pred_region
          _
        $region20: #{tpu_custom_call.1} parent=11 // pred_fallthru
          _
        // Predicated region
        $region21: #{tpu_custom_call.1} parent=11 // pred_check
          %p418 = pneg %p140
        $region22: #{tpu_custom_call.1} parent=11 // pred_check_branch
          %420 = sbr.rel (%p418) target = $region24
        $region23: #{tpu_custom_call.1} parent=11 // pred_region
          _
        $region24: #{tpu_custom_call.1} parent=11 // pred_fallthru
          _
        // Predicated region
        $region25: #{tpu_custom_call.1} parent=11 // pred_check
          %p421 = pneg %p161
        $region26: #{tpu_custom_call.1} parent=11 // pred_check_branch
          %423 = sbr.rel (%p421) target = $region28
        $region27: #{tpu_custom_call.1} parent=11 // pred_region
          _
        $region28: #{tpu_custom_call.1} parent=11 // pred_fallthru
          _
        // Predicated region
        $region29: #{tpu_custom_call.1} parent=11 // pred_check
          %p424 = pneg %p182
        $region30: #{tpu_custom_call.1} parent=11 // pred_check_branch
          %426 = sbr.rel (%p424) target = $region32
        $region31: #{tpu_custom_call.1} parent=11 // pred_region
          _
        $region32: #{tpu_custom_call.1} parent=11 // pred_fallthru
          _
        // Predicated region
        $region33: #{tpu_custom_call.1} parent=11 // pred_check
          %p427 = pneg %p203
        $region34: #{tpu_custom_call.1} parent=11 // pred_check_branch
          %429 = sbr.rel (%p427) target = $region36
        $region35: #{tpu_custom_call.1} parent=11 // pred_region
          _
        $region36: #{tpu_custom_call.1} parent=11 // pred_fallthru
          _
        // Predicated region
        $region37: #{tpu_custom_call.1} parent=11 // pred_check
          %p430 = pneg %p224
        $region38: #{tpu_custom_call.1} parent=11 // pred_check_branch
          %432 = sbr.rel (%p430) target = $region40
        $region39: #{tpu_custom_call.1} parent=11 // pred_region
          _
        $region40: #{tpu_custom_call.1} parent=11 // pred_fallthru
          _
        // Predicated region
        $region41: #{tpu_custom_call.1} parent=11 // pred_check
          %p433 = pneg %p245
        $region42: #{tpu_custom_call.1} parent=11 // pred_check_branch
          %435 = sbr.rel (%p433) target = $region44
        $region43: #{tpu_custom_call.1} parent=11 // pred_region
          _
        $region44: #{tpu_custom_call.1} parent=11 // pred_fallthru
          _
        // Predicated region
        $region45: #{tpu_custom_call.1} parent=11 // pred_check
          %p436 = pneg %p266
        $region46: #{tpu_custom_call.1} parent=11 // pred_check_branch
          %438 = sbr.rel (%p436) target = $region48
        $region47: #{tpu_custom_call.1} parent=11 // pred_region
          _
        $region48: #{tpu_custom_call.1} parent=11 // pred_fallthru
          _
        // Predicated region
        $region49: #{tpu_custom_call.1} parent=11 // pred_check
          %p439 = pneg %p287
        $region50: #{tpu_custom_call.1} parent=11 // pred_check_branch
          %441 = sbr.rel (%p439) target = $region52
        $region51: #{tpu_custom_call.1} parent=11 // pred_region
          _
        $region52: #{tpu_custom_call.1} parent=11 // pred_fallthru
          _
        // Predicated region
        $region53: #{tpu_custom_call.1} parent=11 // pred_check
          %p442 = pneg %p308
        $region54: #{tpu_custom_call.1} parent=11 // pred_check_branch
          %444 = sbr.rel (%p442) target = $region56
        $region55: #{tpu_custom_call.1} parent=11 // pred_region
          _
        $region56: #{tpu_custom_call.1} parent=11 // pred_fallthru
          _
        // Predicated region
        $region57: #{tpu_custom_call.1} parent=11 // pred_check
          %p445 = pneg %p329
        $region58: #{tpu_custom_call.1} parent=11 // pred_check_branch
          %447 = sbr.rel (%p445) target = $region60
        $region59: #{tpu_custom_call.1} parent=11 // pred_region
          _
        $region60: #{tpu_custom_call.1} parent=11 // pred_fallthru
          _
        // Predicated region
        $region61: #{tpu_custom_call.1} parent=11 // pred_check
          %p448 = pneg %p350
        $region62: #{tpu_custom_call.1} parent=11 // pred_check_branch
          %450 = sbr.rel (%p448) target = $region64
        $region63: #{tpu_custom_call.1} parent=11 // pred_region
          _
        $region64: #{tpu_custom_call.1} parent=11 // pred_fallthru
          _
        // Predicated region
        $region65: #{tpu_custom_call.1} parent=11 // pred_check
          %p451 = pneg %p371
        $region66: #{tpu_custom_call.1} parent=11 // pred_check_branch
          %453 = sbr.rel (%p451) target = $region68
        $region67: #{tpu_custom_call.1} parent=11 // pred_region
          _
        $region68: #{tpu_custom_call.1} parent=11 // pred_fallthru
          _
      $region12: #{tpu_custom_call.1} parent=5 // pred_fallthru
        _
      %p454 = scmp.lt.s32.totalorder %s25, 3
      // Predicated region
      $region69: #{tpu_custom_call.1} parent=5 // pred_check
        %p455 = pneg %p454
      $region70: #{tpu_custom_call.1} parent=5 // pred_check_branch
        %457 = sbr.rel (%p455) target = $region72
      $region71: #{tpu_custom_call.1} parent=5 // pred_region
        // Predicated region
        $region73: #{tpu_custom_call.1} parent=71 // pred_check
          %p458 = pneg %p45
        $region74: #{tpu_custom_call.1} parent=71 // pred_check_branch
          %460 = sbr.rel (%p458) target = $region76
        $region75: #{tpu_custom_call.1} parent=71 // pred_region
          %p461 = scmp.lt.s32.totalorder %s25, 2
          %s462 = scalar_select %p461, %s25, 2
          %s463 = smul.addr %s462, 8
          %s464 = scalar_lea.vmem %s0, %s463
        $region76: #{tpu_custom_call.1} parent=71 // pred_fallthru
          _
        // Predicated region
        $region77: #{tpu_custom_call.1} parent=71 // pred_check
          %p465 = pneg %p71
        $region78: #{tpu_custom_call.1} parent=71 // pred_check_branch
          %467 = sbr.rel (%p465) target = $region80
        $region79: #{tpu_custom_call.1} parent=71 // pred_region
          %p468 = scmp.lt.s32.totalorder %s25, 2
          %s469 = scalar_select %p468, %s25, 2
          %s470 = scalar_lea.vmem %s1, %s469
        $region80: #{tpu_custom_call.1} parent=71 // pred_fallthru
          _
      $region72: #{tpu_custom_call.1} parent=5 // pred_fallthru
        _
      %p471 = scmp.le.s32.totalorder 1, %s25
      %p472 = scmp.lt.s32.totalorder %s25, 4
      %p473 = pnand %p471, %p472
      %p474 = pneg %p473
      // Predicated region
      $region81: #{tpu_custom_call.1} parent=5 // pred_check
        _
      $region82: #{tpu_custom_call.1} parent=5 // pred_check_branch
        %476 = sbr.rel (%p473) target = $region84
      $region83: #{tpu_custom_call.1} parent=5 // pred_region
        %s477 = ssub.s32 %s25, 1
        %p478 = scmp.lt.s32.totalorder %s30, 2
        %s479 = scalar_select %p478, %s30, 2
        %s480 = smul.addr %s479, 8
        %s481 = scalar_lea.vmem %s0, %s480
        %p482 = pneg %p51
        %p483 = pneg %p48
        %p484 = scmp.lt.s32.totalorder %s30, 2
        %s485 = scalar_select %p484, %s30, 2
        %s486 = scalar_lea.vmem %s1, %s485
        %p487 = pneg %p77
        %p488 = pneg %p74
        %p489 = pneg %p98
        %p490 = pneg %p95
        %p491 = pneg %p119
        %p492 = pneg %p116
        %p493 = pneg %p140
        %p494 = pneg %p137
        %p495 = pneg %p161
        %p496 = pneg %p158
        %p497 = pneg %p182
        %p498 = pneg %p179
        %p499 = pneg %p203
        %p500 = pneg %p200
        %p501 = pneg %p224
        %p502 = pneg %p221
        %p503 = pneg %p245
        %p504 = pneg %p242
        %p505 = pneg %p266
        %p506 = pneg %p263
        %p507 = pneg %p287
        %p508 = pneg %p284
        %p509 = pneg %p308
        %p510 = pneg %p305
        %p511 = pneg %p329
        %p512 = pneg %p326
        %p513 = pneg %p350
        %p514 = pneg %p347
        %p515 = pneg %p371
        %p516 = pneg %p368
        %p517 = pneg %p397
        %p518 = pneg %p394
        %s519 = sand.u32 %s384, 1
        %s520 = scalar_lea.sflag [#allocation3], %s519
        %s521 = sand.u32 %s384, 1
        %s522 = scalar_lea.vmem [#allocation2], %s521
        %p523 = scmp.lt.s32.totalorder %s30, 2
        %s524 = scalar_select %p523, %s30, 2
        %s525 = smul.addr %s524, 8
        %s526 = scalar_lea.vmem %s0, %s525
        %p527 = scmp.lt.s32.totalorder %s30, 2
        %s528 = scalar_select %p527, %s30, 2
        %s529 = scalar_lea.vmem %s1, %s528
        %v530 = vld [vmem:[%s526] sm:$0xff]
        %v531 = vld [vmem:[%s529] sm:$0x1]
        %v532 = vld [vmem:[%s2] sm:$0xff]
        %v533 = vld [vmem:[%s2 + $0x8] sm:$0xff]
        %v534 = vld [vmem:[%s2 + $0x10] sm:$0xff]
        %v535 = vld [vmem:[%s2 + $0x18] sm:$0xff]
        %v536 = vld [vmem:[%s3] sm:$0x1]
        %v538 = vlaneseq
        %v539 = vshrl.u32 %v538, 7
        %v540 = vsub.s32 0, %v539
        %v541 = vrot.slane %v536, %v540
        %vm543 = vcmask 261120
        %v545 = vsel %vm543, %v530, 0
        %547 = vmatprep.subr.mxu0 0.0
        %548 = vmatpush1.msra.mxu0 %v532
        %549 = vmatprep.subr.mxu0 0.0
        %550 = vmatpush1.msra.mxu0 %v533
        %551 = vmatprep.subr.mxu0 0.0
        %552 = vmatpush1.msra.mxu0 %v534
        %553 = vmatprep.subr.mxu0 0.0
        %554 = vmatpush1.msra.mxu0 %v535
        %555 = vmatprep.subr.mxu0 0.0
        %556 = vmatpush1.msra.mxu0 0.0
        %557 = vmatprep.subr.mxu0 0.0
        %558 = vmatpush1.msra.mxu0 0.0
        %559 = vmatprep.subr.mxu0 0.0
        %560 = vmatpush1.msra.mxu0 0.0
        %561 = vmatprep.subr.mxu0 0.0
        %562 = vmatpush1.msra.mxu0 0.0
        %563 = vmatprep.subr.mxu0 0.0
        %564 = vmatpush1.msra.mxu0 0.0
        %565 = vmatprep.subr.mxu0 0.0
        %566 = vmatpush1.msra.mxu0 0.0
        %567 = vmatprep.subr.mxu0 0.0
        %568 = vmatpush1.msra.mxu0 0.0
        %569 = vmatprep.subr.mxu0 0.0
        %570 = vmatpush1.msra.mxu0 0.0
        %571 = vmatprep.subr.mxu0 0.0
        %572 = vmatpush1.msra.mxu0 0.0
        %573 = vmatprep.subr.mxu0 0.0
        %574 = vmatpush1.msra.mxu0 0.0
        %575 = vmatprep.subr.mxu0 0.0
        %576 = vmatpush1.msra.mxu0 0.0
        %577 = vmatprep.subr.mxu0 0.0
        %578 = vmatpush1.msra.mxu0 0.0
        %579 = vmatprep.subr.mxu0 0.0
        %580 = vmatpush1.msra.mxu0 0.0
        %581 = vmatprep.subr.mxu0 0.0
        %582 = vmatpush1.msra.mxu0 0.0
        %583 = vmatprep.subr.mxu0 0.0
        %584 = vmatpush1.msra.mxu0 0.0
        %585 = vmatprep.subr.mxu0 0.0
        %586 = vmatpush1.msra.mxu0 0.0
        %587 = vmatprep.subr.mxu0 0.0
        %588 = vmatpush1.msra.mxu0 0.0
        %589 = vmatprep.subr.mxu0 0.0
        %590 = vmatpush1.msra.mxu0 0.0
        %591 = vmatprep.subr.mxu0 0.0
        %592 = vmatpush1.msra.mxu0 0.0
        %593 = vmatprep.subr.mxu0 0.0
        %594 = vmatpush1.msra.mxu0 0.0
        %595 = vmatprep.subr.mxu0 0.0
        %596 = vmatpush1.msra.mxu0 0.0
        %597 = vmatprep.subr.mxu0 0.0
        %598 = vmatpush1.msra.mxu0 0.0
        %599 = vmatprep.subr.mxu0 0.0
        %600 = vmatpush1.msra.mxu0 0.0
        %601 = vmatprep.subr.mxu0 0.0
        %602 = vmatpush1.msra.mxu0 0.0
        %603 = vmatprep.subr.mxu0 0.0
        %604 = vmatpush1.msra.mxu0 0.0
        %605 = vmatprep.subr.mxu0 0.0
        %606 = vmatpush1.msra.mxu0 0.0
        %607 = vmatprep.subr.mxu0 0.0
        %608 = vmatpush1.msra.mxu0 0.0
        %609 = vmatprep.subr.mxu0 0.0
        %610 = vmatpush1.msra.mxu0 0.0
        %611 = vmatprep.mubr.f32.mxu0 0.0
        %612 = vmatmul.mubr.f32.gmra.mrb[0].mxu0 %v545
        %v613 = vpop.f32.mrb[0].mxu0
        %v614 = vadd.f32 %v541, %v613
        %v615 = vpop.f32.mrb[0].mxu0
        %616 = vdwg.mxu0
        %v617 = vld [vmem:[%s4] sm:$0xff]
        %v618 = vld [vmem:[%s4 + $0x8] sm:$0xff]
        %v619 = vld [vmem:[%s4 + $0x10] sm:$0xff]
        %v620 = vld [vmem:[%s4 + $0x18] sm:$0xff]
        %622 = vrot.lane.b32.xlu0 %v614, 96
        %v623 = vpop.permute.xlu0 %622
        %vm624 = vcmask 64512
        %v625 = vsel %vm624, %v614, 0
        %v627 = vsel %vm624, %v623, 0
        %629 = vmatprep.subr.mxu0 0.0
        %630 = vmatpush1.xpose.msra.mxu0 %v627
        %631 = vmatprep.subr.mxu0 0.0
        %632 = vmatpush1.xpose.msra.mxu0 0.0
        %633 = vmatprep.subr.mxu0 0.0
        %634 = vmatpush1.xpose.msra.mxu0 0.0
        %635 = vmatprep.subr.mxu0 0.0
        %636 = vmatpush1.xpose.msra.mxu0 0.0
        %637 = vmatprep.subr.mxu0 0.0
        %638 = vmatpush1.xpose.msra.mxu0 0.0
        %639 = vmatprep.subr.mxu0 0.0
        %640 = vmatpush1.xpose.msra.mxu0 0.0
        %641 = vmatprep.subr.mxu0 0.0
        %642 = vmatpush1.xpose.msra.mxu0 0.0
        %643 = vmatprep.subr.mxu0 0.0
        %644 = vmatpush1.xpose.msra.mxu0 0.0
        %645 = vmatprep.subr.mxu0 0.0
        %646 = vmatpush1.xpose.msra.mxu0 0.0
        %647 = vmatprep.subr.mxu0 0.0
        %648 = vmatpush1.xpose.msra.mxu0 0.0
        %649 = vmatprep.subr.mxu0 0.0
        %650 = vmatpush1.xpose.msra.mxu0 0.0
        %651 = vmatprep.subr.mxu0 0.0
        %652 = vmatpush1.xpose.msra.mxu0 0.0
        %653 = vmatprep.subr.mxu0 0.0
        %654 = vmatpush1.xpose.msra.mxu0 0.0
        %655 = vmatprep.subr.mxu0 0.0
        %656 = vmatpush1.xpose.msra.mxu0 0.0
        %657 = vmatprep.subr.mxu0 0.0
        %658 = vmatpush1.xpose.msra.mxu0 0.0
        %659 = vmatprep.subr.mxu0 0.0
        %660 = vmatpush1.xpose.msra.mxu0 0.0
        %661 = vmatprep.subr.mxu0 0.0
        %662 = vmatpush1.xpose.msra.mxu0 0.0
        %663 = vmatprep.subr.mxu0 0.0
        %664 = vmatpush1.xpose.msra.mxu0 0.0
        %665 = vmatprep.subr.mxu0 0.0
        %666 = vmatpush1.xpose.msra.mxu0 0.0
        %667 = vmatprep.subr.mxu0 0.0
        %668 = vmatpush1.xpose.msra.mxu0 0.0
        %669 = vmatprep.subr.mxu0 0.0
        %670 = vmatpush1.xpose.msra.mxu0 0.0
        %671 = vmatprep.subr.mxu0 0.0
        %672 = vmatpush1.xpose.msra.mxu0 0.0
        %673 = vmatprep.subr.mxu0 0.0
        %674 = vmatpush1.xpose.msra.mxu0 0.0
        %675 = vmatprep.subr.mxu0 0.0
        %676 = vmatpush1.xpose.msra.mxu0 0.0
        %677 = vmatprep.subr.mxu0 0.0
        %678 = vmatpush1.xpose.msra.mxu0 0.0
        %679 = vmatprep.subr.mxu0 0.0
        %680 = vmatpush1.xpose.msra.mxu0 0.0
        %681 = vmatprep.subr.mxu0 0.0
        %682 = vmatpush1.xpose.msra.mxu0 0.0
        %683 = vmatprep.subr.mxu0 0.0
        %684 = vmatpush1.xpose.msra.mxu0 0.0
        %685 = vmatprep.subr.mxu0 0.0
        %686 = vmatpush1.xpose.msra.mxu0 0.0
        %687 = vmatprep.subr.mxu0 0.0
        %688 = vmatpush1.xpose.msra.mxu0 0.0
        %689 = vmatprep.subr.mxu0 0.0
        %690 = vmatpush1.xpose.msra.mxu0 0.0
        %691 = vmatprep.subr.mxu0 0.0
        %692 = vmatpush1.xpose.msra.mxu0 0.0
        %693 = vmatprep.mubr.f32.mxu0 0.0
        %694 = vmatmul.mubr.f32.gmra.mrb[0].mxu0 %v625
        %v695 = vpop.f32.mrb[0].mxu0
        %v696 = vadd.f32 0.0, %v695
        %v697 = vpop.f32.mrb[0].mxu0
        %698 = vdwg.mxu0
        %v699 = vmul.f32 %v696, 0.35355338
        %v701 = vlaneseq
        %v702 = vshrl.u32 %v701, 7
        %v703 = vsub.s32 0, %v702
        %v704 = vrot.slane %v531, %v703
        %v706 = vadd.f32 %v699, %v704
        %v707 = vsel %vm624, %v706, -inf
        %708 = vmax.xlane.f32.xlu0 %v707
        %v709 = vpop.xlane.xlu0 %708
        %v710 = vsub.f32 %v706, %v709
        %v711 = vmul.f32 %v710, 1.442695
        %v712 = vpow.pop %v711
        %v713 = vsel %vm624, %v712, 0.0
        %714 = vadd.xlane.f32.xlu0 %v713
        %v715 = vpop.xlane.xlu0 %714
        %v716 = vrcp.pop %v715
        %v717 = vmul.f32 %v712, %v716
        %718 = vrot.lane.b32.xlu0 %v614, 64
        %v719 = vpop.permute.xlu0 %718
        %v722 = vsel %vm624, %v717, 0
        %724 = vmatprep.subr.mxu0 0.0
        %725 = vmatpush1.msra.mxu0 %v719
        %726 = vmatprep.subr.mxu0 0.0
        %727 = vmatpush1.msra.mxu0 0.0
        %728 = vmatprep.subr.mxu0 0.0
        %729 = vmatpush1.msra.mxu0 0.0
        %730 = vmatprep.subr.mxu0 0.0
        %731 = vmatpush1.msra.mxu0 0.0
        %732 = vmatprep.subr.mxu0 0.0
        %733 = vmatpush1.msra.mxu0 0.0
        %734 = vmatprep.subr.mxu0 0.0
        %735 = vmatpush1.msra.mxu0 0.0
        %736 = vmatprep.subr.mxu0 0.0
        %737 = vmatpush1.msra.mxu0 0.0
        %738 = vmatprep.subr.mxu0 0.0
        %739 = vmatpush1.msra.mxu0 0.0
        %740 = vmatprep.subr.mxu0 0.0
        %741 = vmatpush1.msra.mxu0 0.0
        %742 = vmatprep.subr.mxu0 0.0
        %743 = vmatpush1.msra.mxu0 0.0
        %744 = vmatprep.subr.mxu0 0.0
        %745 = vmatpush1.msra.mxu0 0.0
        %746 = vmatprep.subr.mxu0 0.0
        %747 = vmatpush1.msra.mxu0 0.0
        %748 = vmatprep.subr.mxu0 0.0
        %749 = vmatpush1.msra.mxu0 0.0
        %750 = vmatprep.subr.mxu0 0.0
        %751 = vmatpush1.msra.mxu0 0.0
        %752 = vmatprep.subr.mxu0 0.0
        %753 = vmatpush1.msra.mxu0 0.0
        %754 = vmatprep.subr.mxu0 0.0
        %755 = vmatpush1.msra.mxu0 0.0
        %756 = vmatprep.subr.mxu0 0.0
        %757 = vmatpush1.msra.mxu0 0.0
        %758 = vmatprep.subr.mxu0 0.0
        %759 = vmatpush1.msra.mxu0 0.0
        %760 = vmatprep.subr.mxu0 0.0
        %761 = vmatpush1.msra.mxu0 0.0
        %762 = vmatprep.subr.mxu0 0.0
        %763 = vmatpush1.msra.mxu0 0.0
        %764 = vmatprep.subr.mxu0 0.0
        %765 = vmatpush1.msra.mxu0 0.0
        %766 = vmatprep.subr.mxu0 0.0
        %767 = vmatpush1.msra.mxu0 0.0
        %768 = vmatprep.subr.mxu0 0.0
        %769 = vmatpush1.msra.mxu0 0.0
        %770 = vmatprep.subr.mxu0 0.0
        %771 = vmatpush1.msra.mxu0 0.0
        %772 = vmatprep.subr.mxu0 0.0
        %773 = vmatpush1.msra.mxu0 0.0
        %774 = vmatprep.subr.mxu0 0.0
        %775 = vmatpush1.msra.mxu0 0.0
        %776 = vmatprep.subr.mxu0 0.0
        %777 = vmatpush1.msra.mxu0 0.0
        %778 = vmatprep.subr.mxu0 0.0
        %779 = vmatpush1.msra.mxu0 0.0
        %780 = vmatprep.subr.mxu0 0.0
        %781 = vmatpush1.msra.mxu0 0.0
        %782 = vmatprep.subr.mxu0 0.0
        %783 = vmatpush1.msra.mxu0 0.0
        %784 = vmatprep.subr.mxu0 0.0
        %785 = vmatpush1.msra.mxu0 0.0
        %786 = vmatprep.subr.mxu0 0.0
        %787 = vmatpush1.msra.mxu0 0.0
        %788 = vmatprep.mubr.f32.mxu0 0.0
        %789 = vmatmul.mubr.f32.gmra.mrb[0].mxu0 %v722
        %v790 = vpop.f32.mrb[0].mxu0
        %v791 = vadd.f32 0.0, %v790
        %v792 = vpop.f32.mrb[0].mxu0
        %793 = vdwg.mxu0
        %794 = vrot.lane.b32.xlu0 %v614, 120
        %v795 = vpop.permute.xlu0 %794
        %796 = vrot.lane.b32.xlu0 %v614, 88
        %v797 = vpop.permute.xlu0 %796
        %v798 = vsel %vm624, %v795, 0
        %v800 = vsel %vm624, %v797, 0
        %802 = vmatprep.subr.mxu0 0.0
        %803 = vmatpush1.xpose.msra.mxu0 %v800
        %804 = vmatprep.subr.mxu0 0.0
        %805 = vmatpush1.xpose.msra.mxu0 0.0
        %806 = vmatprep.subr.mxu0 0.0
        %807 = vmatpush1.xpose.msra.mxu0 0.0
        %808 = vmatprep.subr.mxu0 0.0
        %809 = vmatpush1.xpose.msra.mxu0 0.0
        %810 = vmatprep.subr.mxu0 0.0
        %811 = vmatpush1.xpose.msra.mxu0 0.0
        %812 = vmatprep.subr.mxu0 0.0
        %813 = vmatpush1.xpose.msra.mxu0 0.0
        %814 = vmatprep.subr.mxu0 0.0
        %815 = vmatpush1.xpose.msra.mxu0 0.0
        %816 = vmatprep.subr.mxu0 0.0
        %817 = vmatpush1.xpose.msra.mxu0 0.0
        %818 = vmatprep.subr.mxu0 0.0
        %819 = vmatpush1.xpose.msra.mxu0 0.0
        %820 = vmatprep.subr.mxu0 0.0
        %821 = vmatpush1.xpose.msra.mxu0 0.0
        %822 = vmatprep.subr.mxu0 0.0
        %823 = vmatpush1.xpose.msra.mxu0 0.0
        %824 = vmatprep.subr.mxu0 0.0
        %825 = vmatpush1.xpose.msra.mxu0 0.0
        %826 = vmatprep.subr.mxu0 0.0
        %827 = vmatpush1.xpose.msra.mxu0 0.0
        %828 = vmatprep.subr.mxu0 0.0
        %829 = vmatpush1.xpose.msra.mxu0 0.0
        %830 = vmatprep.subr.mxu0 0.0
        %831 = vmatpush1.xpose.msra.mxu0 0.0
        %832 = vmatprep.subr.mxu0 0.0
        %833 = vmatpush1.xpose.msra.mxu0 0.0
        %834 = vmatprep.subr.mxu0 0.0
        %835 = vmatpush1.xpose.msra.mxu0 0.0
        %836 = vmatprep.subr.mxu0 0.0
        %837 = vmatpush1.xpose.msra.mxu0 0.0
        %838 = vmatprep.subr.mxu0 0.0
        %839 = vmatpush1.xpose.msra.mxu0 0.0
        %840 = vmatprep.subr.mxu0 0.0
        %841 = vmatpush1.xpose.msra.mxu0 0.0
        %842 = vmatprep.subr.mxu0 0.0
        %843 = vmatpush1.xpose.msra.mxu0 0.0
        %844 = vmatprep.subr.mxu0 0.0
        %845 = vmatpush1.xpose.msra.mxu0 0.0
        %846 = vmatprep.subr.mxu0 0.0
        %847 = vmatpush1.xpose.msra.mxu0 0.0
        %848 = vmatprep.subr.mxu0 0.0
        %849 = vmatpush1.xpose.msra.mxu0 0.0
        %850 = vmatprep.subr.mxu0 0.0
        %851 = vmatpush1.xpose.msra.mxu0 0.0
        %852 = vmatprep.subr.mxu0 0.0
        %853 = vmatpush1.xpose.msra.mxu0 0.0
        %854 = vmatprep.subr.mxu0 0.0
        %855 = vmatpush1.xpose.msra.mxu0 0.0
        %856 = vmatprep.subr.mxu0 0.0
        %857 = vmatpush1.xpose.msra.mxu0 0.0
        %858 = vmatprep.subr.mxu0 0.0
        %859 = vmatpush1.xpose.msra.mxu0 0.0
        %860 = vmatprep.subr.mxu0 0.0
        %861 = vmatpush1.xpose.msra.mxu0 0.0
        %862 = vmatprep.subr.mxu0 0.0
        %863 = vmatpush1.xpose.msra.mxu0 0.0
        %864 = vmatprep.subr.mxu0 0.0
        %865 = vmatpush1.xpose.msra.mxu0 0.0
        %866 = vmatprep.mubr.f32.mxu0 0.0
        %867 = vmatmul.mubr.f32.gmra.mrb[0].mxu0 %v798
        %v868 = vpop.f32.mrb[0].mxu0
        %v869 = vadd.f32 0.0, %v868
        %v870 = vpop.f32.mrb[0].mxu0
        %871 = vdwg.mxu0
        %v872 = vmul.f32 %v869, 0.35355338
        %v873 = vadd.f32 %v872, %v704
        %v874 = vsel %vm624, %v873, -inf
        %875 = vmax.xlane.f32.xlu0 %v874
        %v876 = vpop.xlane.xlu0 %875
        %v877 = vsub.f32 %v873, %v876
        %v878 = vmul.f32 %v877, 1.442695
        %v879 = vpow.pop %v878
        %v880 = vsel %vm624, %v879, 0.0
        %881 = vadd.xlane.f32.xlu0 %v880
        %v882 = vpop.xlane.xlu0 %881
        %v883 = vrcp.pop %v882
        %v884 = vmul.f32 %v879, %v883
        %885 = vrot.lane.b32.xlu0 %v614, 56
        %v886 = vpop.permute.xlu0 %885
        %v889 = vsel %vm624, %v884, 0
        %891 = vmatprep.subr.mxu0 0.0
        %892 = vmatpush1.msra.mxu0 %v886
        %893 = vmatprep.subr.mxu0 0.0
        %894 = vmatpush1.msra.mxu0 0.0
        %895 = vmatprep.subr.mxu0 0.0
        %896 = vmatpush1.msra.mxu0 0.0
        %897 = vmatprep.subr.mxu0 0.0
        %898 = vmatpush1.msra.mxu0 0.0
        %899 = vmatprep.subr.mxu0 0.0
        %900 = vmatpush1.msra.mxu0 0.0
        %901 = vmatprep.subr.mxu0 0.0
        %902 = vmatpush1.msra.mxu0 0.0
        %903 = vmatprep.subr.mxu0 0.0
        %904 = vmatpush1.msra.mxu0 0.0
        %905 = vmatprep.subr.mxu0 0.0
        %906 = vmatpush1.msra.mxu0 0.0
        %907 = vmatprep.subr.mxu0 0.0
        %908 = vmatpush1.msra.mxu0 0.0
        %909 = vmatprep.subr.mxu0 0.0
        %910 = vmatpush1.msra.mxu0 0.0
        %911 = vmatprep.subr.mxu0 0.0
        %912 = vmatpush1.msra.mxu0 0.0
        %913 = vmatprep.subr.mxu0 0.0
        %914 = vmatpush1.msra.mxu0 0.0
        %915 = vmatprep.subr.mxu0 0.0
        %916 = vmatpush1.msra.mxu0 0.0
        %917 = vmatprep.subr.mxu0 0.0
        %918 = vmatpush1.msra.mxu0 0.0
        %919 = vmatprep.subr.mxu0 0.0
        %920 = vmatpush1.msra.mxu0 0.0
        %921 = vmatprep.subr.mxu0 0.0
        %922 = vmatpush1.msra.mxu0 0.0
        %923 = vmatprep.subr.mxu0 0.0
        %924 = vmatpush1.msra.mxu0 0.0
        %925 = vmatprep.subr.mxu0 0.0
        %926 = vmatpush1.msra.mxu0 0.0
        %927 = vmatprep.subr.mxu0 0.0
        %928 = vmatpush1.msra.mxu0 0.0
        %929 = vmatprep.subr.mxu0 0.0
        %930 = vmatpush1.msra.mxu0 0.0
        %931 = vmatprep.subr.mxu0 0.0
        %932 = vmatpush1.msra.mxu0 0.0
        %933 = vmatprep.subr.mxu0 0.0
        %934 = vmatpush1.msra.mxu0 0.0
        %935 = vmatprep.subr.mxu0 0.0
        %936 = vmatpush1.msra.mxu0 0.0
        %937 = vmatprep.subr.mxu0 0.0
        %938 = vmatpush1.msra.mxu0 0.0
        %939 = vmatprep.subr.mxu0 0.0
        %940 = vmatpush1.msra.mxu0 0.0
        %941 = vmatprep.subr.mxu0 0.0
        %942 = vmatpush1.msra.mxu0 0.0
        %943 = vmatprep.subr.mxu0 0.0
        %944 = vmatpush1.msra.mxu0 0.0
        %945 = vmatprep.subr.mxu0 0.0
        %946 = vmatpush1.msra.mxu0 0.0
        %947 = vmatprep.subr.mxu0 0.0
        %948 = vmatpush1.msra.mxu0 0.0
        %949 = vmatprep.subr.mxu0 0.0
        %950 = vmatpush1.msra.mxu0 0.0
        %951 = vmatprep.subr.mxu0 0.0
        %952 = vmatpush1.msra.mxu0 0.0
        %953 = vmatprep.subr.mxu0 0.0
        %954 = vmatpush1.msra.mxu0 0.0
        %955 = vmatprep.mubr.f32.mxu0 0.0
        %956 = vmatmul.mubr.f32.gmra.mrb[0].mxu0 %v889
        %v957 = vpop.f32.mrb[0].mxu0
        %v958 = vadd.f32 0.0, %v957
        %v959 = vpop.f32.mrb[0].mxu0
        %960 = vdwg.mxu0
        %v962 = vsel %vm624, %v958, 0
        %964 = vmatprep.subr.mxu0 0.0
        %965 = vmatpush1.msra.mxu0 %v618
        %966 = vmatprep.subr.mxu0 0.0
        %967 = vmatpush1.msra.mxu0 0.0
        %968 = vmatprep.subr.mxu0 0.0
        %969 = vmatpush1.msra.mxu0 0.0
        %970 = vmatprep.subr.mxu0 0.0
        %971 = vmatpush1.msra.mxu0 0.0
        %972 = vmatprep.subr.mxu0 0.0
        %973 = vmatpush1.msra.mxu0 0.0
        %974 = vmatprep.subr.mxu0 0.0
        %975 = vmatpush1.msra.mxu0 0.0
        %976 = vmatprep.subr.mxu0 0.0
        %977 = vmatpush1.msra.mxu0 0.0
        %978 = vmatprep.subr.mxu0 0.0
        %979 = vmatpush1.msra.mxu0 0.0
        %980 = vmatprep.subr.mxu0 0.0
        %981 = vmatpush1.msra.mxu0 0.0
        %982 = vmatprep.subr.mxu0 0.0
        %983 = vmatpush1.msra.mxu0 0.0
        %984 = vmatprep.subr.mxu0 0.0
        %985 = vmatpush1.msra.mxu0 0.0
        %986 = vmatprep.subr.mxu0 0.0
        %987 = vmatpush1.msra.mxu0 0.0
        %988 = vmatprep.subr.mxu0 0.0
        %989 = vmatpush1.msra.mxu0 0.0
        %990 = vmatprep.subr.mxu0 0.0
        %991 = vmatpush1.msra.mxu0 0.0
        %992 = vmatprep.subr.mxu0 0.0
        %993 = vmatpush1.msra.mxu0 0.0
        %994 = vmatprep.subr.mxu0 0.0
        %995 = vmatpush1.msra.mxu0 0.0
        %996 = vmatprep.subr.mxu0 0.0
        %997 = vmatpush1.msra.mxu0 0.0
        %998 = vmatprep.subr.mxu0 0.0
        %999 = vmatpush1.msra.mxu0 0.0
        %1000 = vmatprep.subr.mxu0 0.0
        %1001 = vmatpush1.msra.mxu0 0.0
        %1002 = vmatprep.subr.mxu0 0.0
        %1003 = vmatpush1.msra.mxu0 0.0
        %1004 = vmatprep.subr.mxu0 0.0
        %1005 = vmatpush1.msra.mxu0 0.0
        %1006 = vmatprep.subr.mxu0 0.0
        %1007 = vmatpush1.msra.mxu0 0.0
        %1008 = vmatprep.subr.mxu0 0.0
        %1009 = vmatpush1.msra.mxu0 0.0
        %1010 = vmatprep.subr.mxu0 0.0
        %1011 = vmatpush1.msra.mxu0 0.0
        %1012 = vmatprep.subr.mxu0 0.0
        %1013 = vmatpush1.msra.mxu0 0.0
        %1014 = vmatprep.subr.mxu0 0.0
        %1015 = vmatpush1.msra.mxu0 0.0
        %1016 = vmatprep.subr.mxu0 0.0
        %1017 = vmatpush1.msra.mxu0 0.0
        %1018 = vmatprep.subr.mxu0 0.0
        %1019 = vmatpush1.msra.mxu0 0.0
        %1020 = vmatprep.subr.mxu0 0.0
        %1021 = vmatpush1.msra.mxu0 0.0
        %1022 = vmatprep.subr.mxu0 0.0
        %1023 = vmatpush1.msra.mxu0 0.0
        %1024 = vmatprep.subr.mxu0 0.0
        %1025 = vmatpush1.msra.mxu0 0.0
        %1026 = vmatprep.subr.mxu0 0.0
        %1027 = vmatpush1.msra.mxu0 0.0
        %1028 = vmatprep.mubr.f32.mxu0 0.0
        %1029 = vmatmul.mubr.f32.gmra.mrb[0].mxu0 %v962
        %v1030 = vpop.f32.mrb[0].mxu0
        %v1031 = vadd.f32 0.0, %v1030
        %v1032 = vpop.f32.mrb[0].mxu0
        %1033 = vdwg.mxu0
        %v1035 = vsel %vm624, %v791, 0
        %1037 = vmatprep.subr.mxu0 0.0
        %1038 = vmatpush1.msra.mxu0 %v617
        %1039 = vmatprep.subr.mxu0 0.0
        %1040 = vmatpush1.msra.mxu0 0.0
        %1041 = vmatprep.subr.mxu0 0.0
        %1042 = vmatpush1.msra.mxu0 0.0
        %1043 = vmatprep.subr.mxu0 0.0
        %1044 = vmatpush1.msra.mxu0 0.0
        %1045 = vmatprep.subr.mxu0 0.0
        %1046 = vmatpush1.msra.mxu0 0.0
        %1047 = vmatprep.subr.mxu0 0.0
        %1048 = vmatpush1.msra.mxu0 0.0
        %1049 = vmatprep.subr.mxu0 0.0
        %1050 = vmatpush1.msra.mxu0 0.0
        %1051 = vmatprep.subr.mxu0 0.0
        %1052 = vmatpush1.msra.mxu0 0.0
        %1053 = vmatprep.subr.mxu0 0.0
        %1054 = vmatpush1.msra.mxu0 0.0
        %1055 = vmatprep.subr.mxu0 0.0
        %1056 = vmatpush1.msra.mxu0 0.0
        %1057 = vmatprep.subr.mxu0 0.0
        %1058 = vmatpush1.msra.mxu0 0.0
        %1059 = vmatprep.subr.mxu0 0.0
        %1060 = vmatpush1.msra.mxu0 0.0
        %1061 = vmatprep.subr.mxu0 0.0
        %1062 = vmatpush1.msra.mxu0 0.0
        %1063 = vmatprep.subr.mxu0 0.0
        %1064 = vmatpush1.msra.mxu0 0.0
        %1065 = vmatprep.subr.mxu0 0.0
        %1066 = vmatpush1.msra.mxu0 0.0
        %1067 = vmatprep.subr.mxu0 0.0
        %1068 = vmatpush1.msra.mxu0 0.0
        %1069 = vmatprep.subr.mxu0 0.0
        %1070 = vmatpush1.msra.mxu0 0.0
        %1071 = vmatprep.subr.mxu0 0.0
        %1072 = vmatpush1.msra.mxu0 0.0
        %1073 = vmatprep.subr.mxu0 0.0
        %1074 = vmatpush1.msra.mxu0 0.0
        %1075 = vmatprep.subr.mxu0 0.0
        %1076 = vmatpush1.msra.mxu0 0.0
        %1077 = vmatprep.subr.mxu0 0.0
        %1078 = vmatpush1.msra.mxu0 0.0
        %1079 = vmatprep.subr.mxu0 0.0
        %1080 = vmatpush1.msra.mxu0 0.0
        %1081 = vmatprep.subr.mxu0 0.0
        %1082 = vmatpush1.msra.mxu0 0.0
        %1083 = vmatprep.subr.mxu0 0.0
        %1084 = vmatpush1.msra.mxu0 0.0
        %1085 = vmatprep.subr.mxu0 0.0
        %1086 = vmatpush1.msra.mxu0 0.0
        %1087 = vmatprep.subr.mxu0 0.0
        %1088 = vmatpush1.msra.mxu0 0.0
        %1089 = vmatprep.subr.mxu0 0.0
        %1090 = vmatpush1.msra.mxu0 0.0
        %1091 = vmatprep.subr.mxu0 0.0
        %1092 = vmatpush1.msra.mxu0 0.0
        %1093 = vmatprep.subr.mxu0 0.0
        %1094 = vmatpush1.msra.mxu0 0.0
        %1095 = vmatprep.subr.mxu0 0.0
        %1096 = vmatpush1.msra.mxu0 0.0
        %1097 = vmatprep.subr.mxu0 0.0
        %1098 = vmatpush1.msra.mxu0 0.0
        %1099 = vmatprep.subr.mxu0 0.0
        %1100 = vmatpush1.msra.mxu0 0.0
        %1101 = vmatprep.mubr.f32.mxu0 0.0
        %1102 = vmatmul.mubr.f32.gmra.mrb[0].mxu0 %v1035
        %v1103 = vpop.f32.mrb[0].mxu0
        %v1104 = vadd.f32 %v1031, %v1103
        %v1105 = vpop.f32.mrb[0].mxu0
        %1106 = vdwg.mxu0
        %1107 = vrot.lane.b32.xlu0 %v614, 112
        %v1108 = vpop.permute.xlu0 %1107
        %1109 = vrot.lane.b32.xlu0 %v614, 80
        %v1110 = vpop.permute.xlu0 %1109
        %v1111 = vsel %vm624, %v1108, 0
        %v1113 = vsel %vm624, %v1110, 0
        %1115 = vmatprep.subr.mxu0 0.0
        %1116 = vmatpush1.xpose.msra.mxu0 %v1113
        %1117 = vmatprep.subr.mxu0 0.0
        %1118 = vmatpush1.xpose.msra.mxu0 0.0
        %1119 = vmatprep.subr.mxu0 0.0
        %1120 = vmatpush1.xpose.msra.mxu0 0.0
        %1121 = vmatprep.subr.mxu0 0.0
        %1122 = vmatpush1.xpose.msra.mxu0 0.0
        %1123 = vmatprep.subr.mxu0 0.0
        %1124 = vmatpush1.xpose.msra.mxu0 0.0
        %1125 = vmatprep.subr.mxu0 0.0
        %1126 = vmatpush1.xpose.msra.mxu0 0.0
        %1127 = vmatprep.subr.mxu0 0.0
        %1128 = vmatpush1.xpose.msra.mxu0 0.0
        %1129 = vmatprep.subr.mxu0 0.0
        %1130 = vmatpush1.xpose.msra.mxu0 0.0
        %1131 = vmatprep.subr.mxu0 0.0
        %1132 = vmatpush1.xpose.msra.mxu0 0.0
        %1133 = vmatprep.subr.mxu0 0.0
        %1134 = vmatpush1.xpose.msra.mxu0 0.0
        %1135 = vmatprep.subr.mxu0 0.0
        %1136 = vmatpush1.xpose.msra.mxu0 0.0
        %1137 = vmatprep.subr.mxu0 0.0
        %1138 = vmatpush1.xpose.msra.mxu0 0.0
        %1139 = vmatprep.subr.mxu0 0.0
        %1140 = vmatpush1.xpose.msra.mxu0 0.0
        %1141 = vmatprep.subr.mxu0 0.0
        %1142 = vmatpush1.xpose.msra.mxu0 0.0
        %1143 = vmatprep.subr.mxu0 0.0
        %1144 = vmatpush1.xpose.msra.mxu0 0.0
        %1145 = vmatprep.subr.mxu0 0.0
        %1146 = vmatpush1.xpose.msra.mxu0 0.0
        %1147 = vmatprep.subr.mxu0 0.0
        %1148 = vmatpush1.xpose.msra.mxu0 0.0
        %1149 = vmatprep.subr.mxu0 0.0
        %1150 = vmatpush1.xpose.msra.mxu0 0.0
        %1151 = vmatprep.subr.mxu0 0.0
        %1152 = vmatpush1.xpose.msra.mxu0 0.0
        %1153 = vmatprep.subr.mxu0 0.0
        %1154 = vmatpush1.xpose.msra.mxu0 0.0
        %1155 = vmatprep.subr.mxu0 0.0
        %1156 = vmatpush1.xpose.msra.mxu0 0.0
        %1157 = vmatprep.subr.mxu0 0.0
        %1158 = vmatpush1.xpose.msra.mxu0 0.0
        %1159 = vmatprep.subr.mxu0 0.0
        %1160 = vmatpush1.xpose.msra.mxu0 0.0
        %1161 = vmatprep.subr.mxu0 0.0
        %1162 = vmatpush1.xpose.msra.mxu0 0.0
        %1163 = vmatprep.subr.mxu0 0.0
        %1164 = vmatpush1.xpose.msra.mxu0 0.0
        %1165 = vmatprep.subr.mxu0 0.0
        %1166 = vmatpush1.xpose.msra.mxu0 0.0
        %1167 = vmatprep.subr.mxu0 0.0
        %1168 = vmatpush1.xpose.msra.mxu0 0.0
        %1169 = vmatprep.subr.mxu0 0.0
        %1170 = vmatpush1.xpose.msra.mxu0 0.0
        %1171 = vmatprep.subr.mxu0 0.0
        %1172 = vmatpush1.xpose.msra.mxu0 0.0
        %1173 = vmatprep.subr.mxu0 0.0
        %1174 = vmatpush1.xpose.msra.mxu0 0.0
        %1175 = vmatprep.subr.mxu0 0.0
        %1176 = vmatpush1.xpose.msra.mxu0 0.0
        %1177 = vmatprep.subr.mxu0 0.0
        %1178 = vmatpush1.xpose.msra.mxu0 0.0
        %1179 = vmatprep.mubr.f32.mxu0 0.0
        %1180 = vmatmul.mubr.f32.gmra.mrb[0].mxu0 %v1111
        %v1181 = vpop.f32.mrb[0].mxu0
        %v1182 = vadd.f32 0.0, %v1181
        %v1183 = vpop.f32.mrb[0].mxu0
        %1184 = vdwg.mxu0
        %v1185 = vmul.f32 %v1182, 0.35355338
        %v1186 = vadd.f32 %v1185, %v704
        %v1187 = vsel %vm624, %v1186, -inf
        %1188 = vmax.xlane.f32.xlu0 %v1187
        %v1189 = vpop.xlane.xlu0 %1188
        %v1190 = vsub.f32 %v1186, %v1189
        %v1191 = vmul.f32 %v1190, 1.442695
        %v1192 = vpow.pop %v1191
        %v1193 = vsel %vm624, %v1192, 0.0
        %1194 = vadd.xlane.f32.xlu0 %v1193
        %v1195 = vpop.xlane.xlu0 %1194
        %v1196 = vrcp.pop %v1195
        %v1197 = vmul.f32 %v1192, %v1196
        %1198 = vrot.lane.b32.xlu0 %v614, 48
        %v1199 = vpop.permute.xlu0 %1198
        %v1202 = vsel %vm624, %v1197, 0
        %1204 = vmatprep.subr.mxu0 0.0
        %1205 = vmatpush1.msra.mxu0 %v1199
        %1206 = vmatprep.subr.mxu0 0.0
        %1207 = vmatpush1.msra.mxu0 0.0
        %1208 = vmatprep.subr.mxu0 0.0
        %1209 = vmatpush1.msra.mxu0 0.0
        %1210 = vmatprep.subr.mxu0 0.0
        %1211 = vmatpush1.msra.mxu0 0.0
        %1212 = vmatprep.subr.mxu0 0.0
        %1213 = vmatpush1.msra.mxu0 0.0
        %1214 = vmatprep.subr.mxu0 0.0
        %1215 = vmatpush1.msra.mxu0 0.0
        %1216 = vmatprep.subr.mxu0 0.0
        %1217 = vmatpush1.msra.mxu0 0.0
        %1218 = vmatprep.subr.mxu0 0.0
        %1219 = vmatpush1.msra.mxu0 0.0
        %1220 = vmatprep.subr.mxu0 0.0
        %1221 = vmatpush1.msra.mxu0 0.0
        %1222 = vmatprep.subr.mxu0 0.0
        %1223 = vmatpush1.msra.mxu0 0.0
        %1224 = vmatprep.subr.mxu0 0.0
        %1225 = vmatpush1.msra.mxu0 0.0
        %1226 = vmatprep.subr.mxu0 0.0
        %1227 = vmatpush1.msra.mxu0 0.0
        %1228 = vmatprep.subr.mxu0 0.0
        %1229 = vmatpush1.msra.mxu0 0.0
        %1230 = vmatprep.subr.mxu0 0.0
        %1231 = vmatpush1.msra.mxu0 0.0
        %1232 = vmatprep.subr.mxu0 0.0
        %1233 = vmatpush1.msra.mxu0 0.0
        %1234 = vmatprep.subr.mxu0 0.0
        %1235 = vmatpush1.msra.mxu0 0.0
        %1236 = vmatprep.subr.mxu0 0.0
        %1237 = vmatpush1.msra.mxu0 0.0
        %1238 = vmatprep.subr.mxu0 0.0
        %1239 = vmatpush1.msra.mxu0 0.0
        %1240 = vmatprep.subr.mxu0 0.0
        %1241 = vmatpush1.msra.mxu0 0.0
        %1242 = vmatprep.subr.mxu0 0.0
        %1243 = vmatpush1.msra.mxu0 0.0
        %1244 = vmatprep.subr.mxu0 0.0
        %1245 = vmatpush1.msra.mxu0 0.0
        %1246 = vmatprep.subr.mxu0 0.0
        %1247 = vmatpush1.msra.mxu0 0.0
        %1248 = vmatprep.subr.mxu0 0.0
        %1249 = vmatpush1.msra.mxu0 0.0
        %1250 = vmatprep.subr.mxu0 0.0
        %1251 = vmatpush1.msra.mxu0 0.0
        %1252 = vmatprep.subr.mxu0 0.0
        %1253 = vmatpush1.msra.mxu0 0.0
        %1254 = vmatprep.subr.mxu0 0.0
        %1255 = vmatpush1.msra.mxu0 0.0
        %1256 = vmatprep.subr.mxu0 0.0
        %1257 = vmatpush1.msra.mxu0 0.0
        %1258 = vmatprep.subr.mxu0 0.0
        %1259 = vmatpush1.msra.mxu0 0.0
        %1260 = vmatprep.subr.mxu0 0.0
        %1261 = vmatpush1.msra.mxu0 0.0
        %1262 = vmatprep.subr.mxu0 0.0
        %1263 = vmatpush1.msra.mxu0 0.0
        %1264 = vmatprep.subr.mxu0 0.0
        %1265 = vmatpush1.msra.mxu0 0.0
        %1266 = vmatprep.subr.mxu0 0.0
        %1267 = vmatpush1.msra.mxu0 0.0
        %1268 = vmatprep.mubr.f32.mxu0 0.0
        %1269 = vmatmul.mubr.f32.gmra.mrb[0].mxu0 %v1202
        %v1270 = vpop.f32.mrb[0].mxu0
        %v1271 = vadd.f32 0.0, %v1270
        %v1272 = vpop.f32.mrb[0].mxu0
        %1273 = vdwg.mxu0
        %v1275 = vsel %vm624, %v1271, 0
        %1277 = vmatprep.subr.mxu0 0.0
        %1278 = vmatpush1.msra.mxu0 %v619
        %1279 = vmatprep.subr.mxu0 0.0
        %1280 = vmatpush1.msra.mxu0 0.0
        %1281 = vmatprep.subr.mxu0 0.0
        %1282 = vmatpush1.msra.mxu0 0.0
        %1283 = vmatprep.subr.mxu0 0.0
        %1284 = vmatpush1.msra.mxu0 0.0
        %1285 = vmatprep.subr.mxu0 0.0
        %1286 = vmatpush1.msra.mxu0 0.0
        %1287 = vmatprep.subr.mxu0 0.0
        %1288 = vmatpush1.msra.mxu0 0.0
        %1289 = vmatprep.subr.mxu0 0.0
        %1290 = vmatpush1.msra.mxu0 0.0
        %1291 = vmatprep.subr.mxu0 0.0
        %1292 = vmatpush1.msra.mxu0 0.0
        %1293 = vmatprep.subr.mxu0 0.0
        %1294 = vmatpush1.msra.mxu0 0.0
        %1295 = vmatprep.subr.mxu0 0.0
        %1296 = vmatpush1.msra.mxu0 0.0
        %1297 = vmatprep.subr.mxu0 0.0
        %1298 = vmatpush1.msra.mxu0 0.0
        %1299 = vmatprep.subr.mxu0 0.0
        %1300 = vmatpush1.msra.mxu0 0.0
        %1301 = vmatprep.subr.mxu0 0.0
        %1302 = vmatpush1.msra.mxu0 0.0
        %1303 = vmatprep.subr.mxu0 0.0
        %1304 = vmatpush1.msra.mxu0 0.0
        %1305 = vmatprep.subr.mxu0 0.0
        %1306 = vmatpush1.msra.mxu0 0.0
        %1307 = vmatprep.subr.mxu0 0.0
        %1308 = vmatpush1.msra.mxu0 0.0
        %1309 = vmatprep.subr.mxu0 0.0
        %1310 = vmatpush1.msra.mxu0 0.0
        %1311 = vmatprep.subr.mxu0 0.0
        %1312 = vmatpush1.msra.mxu0 0.0
        %1313 = vmatprep.subr.mxu0 0.0
        %1314 = vmatpush1.msra.mxu0 0.0
        %1315 = vmatprep.subr.mxu0 0.0
        %1316 = vmatpush1.msra.mxu0 0.0
        %1317 = vmatprep.subr.mxu0 0.0
        %1318 = vmatpush1.msra.mxu0 0.0
        %1319 = vmatprep.subr.mxu0 0.0
        %1320 = vmatpush1.msra.mxu0 0.0
        %1321 = vmatprep.subr.mxu0 0.0
        %1322 = vmatpush1.msra.mxu0 0.0
        %1323 = vmatprep.subr.mxu0 0.0
        %1324 = vmatpush1.msra.mxu0 0.0
        %1325 = vmatprep.subr.mxu0 0.0
        %1326 = vmatpush1.msra.mxu0 0.0
        %1327 = vmatprep.subr.mxu0 0.0
        %1328 = vmatpush1.msra.mxu0 0.0
        %1329 = vmatprep.subr.mxu0 0.0
        %1330 = vmatpush1.msra.mxu0 0.0
        %1331 = vmatprep.subr.mxu0 0.0
        %1332 = vmatpush1.msra.mxu0 0.0
        %1333 = vmatprep.subr.mxu0 0.0
        %1334 = vmatpush1.msra.mxu0 0.0
        %1335 = vmatprep.subr.mxu0 0.0
        %1336 = vmatpush1.msra.mxu0 0.0
        %1337 = vmatprep.subr.mxu0 0.0
        %1338 = vmatpush1.msra.mxu0 0.0
        %1339 = vmatprep.subr.mxu0 0.0
        %1340 = vmatpush1.msra.mxu0 0.0
        %1341 = vmatprep.mubr.f32.mxu0 0.0
        %1342 = vmatmul.mubr.f32.gmra.mrb[0].mxu0 %v1275
        %v1343 = vpop.f32.mrb[0].mxu0
        %v1344 = vadd.f32 0.0, %v1343
        %v1345 = vpop.f32.mrb[0].mxu0
        %1346 = vdwg.mxu0
        %v1347 = vadd.f32 %v1104, %v1344
        %1348 = vrot.lane.b32.xlu0 %v614, 104
        %v1349 = vpop.permute.xlu0 %1348
        %1350 = vrot.lane.b32.xlu0 %v614, 72
        %v1351 = vpop.permute.xlu0 %1350
        %v1352 = vsel %vm624, %v1349, 0
        %v1354 = vsel %vm624, %v1351, 0
        %1356 = vmatprep.subr.mxu0 0.0
        %1357 = vmatpush1.xpose.msra.mxu0 %v1354
        %1358 = vmatprep.subr.mxu0 0.0
        %1359 = vmatpush1.xpose.msra.mxu0 0.0
        %1360 = vmatprep.subr.mxu0 0.0
        %1361 = vmatpush1.xpose.msra.mxu0 0.0
        %1362 = vmatprep.subr.mxu0 0.0
        %1363 = vmatpush1.xpose.msra.mxu0 0.0
        %1364 = vmatprep.subr.mxu0 0.0
        %1365 = vmatpush1.xpose.msra.mxu0 0.0
        %1366 = vmatprep.subr.mxu0 0.0
        %1367 = vmatpush1.xpose.msra.mxu0 0.0
        %1368 = vmatprep.subr.mxu0 0.0
        %1369 = vmatpush1.xpose.msra.mxu0 0.0
        %1370 = vmatprep.subr.mxu0 0.0
        %1371 = vmatpush1.xpose.msra.mxu0 0.0
        %1372 = vmatprep.subr.mxu0 0.0
        %1373 = vmatpush1.xpose.msra.mxu0 0.0
        %1374 = vmatprep.subr.mxu0 0.0
        %1375 = vmatpush1.xpose.msra.mxu0 0.0
        %1376 = vmatprep.subr.mxu0 0.0
        %1377 = vmatpush1.xpose.msra.mxu0 0.0
        %1378 = vmatprep.subr.mxu0 0.0
        %1379 = vmatpush1.xpose.msra.mxu0 0.0
        %1380 = vmatprep.subr.mxu0 0.0
        %1381 = vmatpush1.xpose.msra.mxu0 0.0
        %1382 = vmatprep.subr.mxu0 0.0
        %1383 = vmatpush1.xpose.msra.mxu0 0.0
        %1384 = vmatprep.subr.mxu0 0.0
        %1385 = vmatpush1.xpose.msra.mxu0 0.0
        %1386 = vmatprep.subr.mxu0 0.0
        %1387 = vmatpush1.xpose.msra.mxu0 0.0
        %1388 = vmatprep.subr.mxu0 0.0
        %1389 = vmatpush1.xpose.msra.mxu0 0.0
        %1390 = vmatprep.subr.mxu0 0.0
        %1391 = vmatpush1.xpose.msra.mxu0 0.0
        %1392 = vmatprep.subr.mxu0 0.0
        %1393 = vmatpush1.xpose.msra.mxu0 0.0
        %1394 = vmatprep.subr.mxu0 0.0
        %1395 = vmatpush1.xpose.msra.mxu0 0.0
        %1396 = vmatprep.subr.mxu0 0.0
        %1397 = vmatpush1.xpose.msra.mxu0 0.0
        %1398 = vmatprep.subr.mxu0 0.0
        %1399 = vmatpush1.xpose.msra.mxu0 0.0
        %1400 = vmatprep.subr.mxu0 0.0
        %1401 = vmatpush1.xpose.msra.mxu0 0.0
        %1402 = vmatprep.subr.mxu0 0.0
        %1403 = vmatpush1.xpose.msra.mxu0 0.0
        %1404 = vmatprep.subr.mxu0 0.0
        %1405 = vmatpush1.xpose.msra.mxu0 0.0
        %1406 = vmatprep.subr.mxu0 0.0
        %1407 = vmatpush1.xpose.msra.mxu0 0.0
        %1408 = vmatprep.subr.mxu0 0.0
        %1409 = vmatpush1.xpose.msra.mxu0 0.0
        %1410 = vmatprep.subr.mxu0 0.0
        %1411 = vmatpush1.xpose.msra.mxu0 0.0
        %1412 = vmatprep.subr.mxu0 0.0
        %1413 = vmatpush1.xpose.msra.mxu0 0.0
        %1414 = vmatprep.subr.mxu0 0.0
        %1415 = vmatpush1.xpose.msra.mxu0 0.0
        %1416 = vmatprep.subr.mxu0 0.0
        %1417 = vmatpush1.xpose.msra.mxu0 0.0
        %1418 = vmatprep.subr.mxu0 0.0
        %1419 = vmatpush1.xpose.msra.mxu0 0.0
        %1420 = vmatprep.mubr.f32.mxu0 0.0
        %1421 = vmatmul.mubr.f32.gmra.mrb[0].mxu0 %v1352
        %v1422 = vpop.f32.mrb[0].mxu0
        %v1423 = vadd.f32 0.0, %v1422
        %v1424 = vpop.f32.mrb[0].mxu0
        %1425 = vdwg.mxu0
        %v1426 = vmul.f32 %v1423, 0.35355338
        %v1427 = vadd.f32 %v1426, %v704
        %v1428 = vsel %vm624, %v1427, -inf
        %1429 = vmax.xlane.f32.xlu0 %v1428
        %v1430 = vpop.xlane.xlu0 %1429
        %v1431 = vsub.f32 %v1427, %v1430
        %v1432 = vmul.f32 %v1431, 1.442695
        %v1433 = vpow.pop %v1432
        %v1434 = vsel %vm624, %v1433, 0.0
        %1435 = vadd.xlane.f32.xlu0 %v1434
        %v1436 = vpop.xlane.xlu0 %1435
        %v1437 = vrcp.pop %v1436
        %v1438 = vmul.f32 %v1433, %v1437
        %1439 = vrot.lane.b32.xlu0 %v614, 40
        %v1440 = vpop.permute.xlu0 %1439
        %v1443 = vsel %vm624, %v1438, 0
        %1445 = vmatprep.subr.mxu0 0.0
        %1446 = vmatpush1.msra.mxu0 %v1440
        %1447 = vmatprep.subr.mxu0 0.0
        %1448 = vmatpush1.msra.mxu0 0.0
        %1449 = vmatprep.subr.mxu0 0.0
        %1450 = vmatpush1.msra.mxu0 0.0
        %1451 = vmatprep.subr.mxu0 0.0
        %1452 = vmatpush1.msra.mxu0 0.0
        %1453 = vmatprep.subr.mxu0 0.0
        %1454 = vmatpush1.msra.mxu0 0.0
        %1455 = vmatprep.subr.mxu0 0.0
        %1456 = vmatpush1.msra.mxu0 0.0
        %1457 = vmatprep.subr.mxu0 0.0
        %1458 = vmatpush1.msra.mxu0 0.0
        %1459 = vmatprep.subr.mxu0 0.0
        %1460 = vmatpush1.msra.mxu0 0.0
        %1461 = vmatprep.subr.mxu0 0.0
        %1462 = vmatpush1.msra.mxu0 0.0
        %1463 = vmatprep.subr.mxu0 0.0
        %1464 = vmatpush1.msra.mxu0 0.0
        %1465 = vmatprep.subr.mxu0 0.0
        %1466 = vmatpush1.msra.mxu0 0.0
        %1467 = vmatprep.subr.mxu0 0.0
        %1468 = vmatpush1.msra.mxu0 0.0
        %1469 = vmatprep.subr.mxu0 0.0
        %1470 = vmatpush1.msra.mxu0 0.0
        %1471 = vmatprep.subr.mxu0 0.0
        %1472 = vmatpush1.msra.mxu0 0.0
        %1473 = vmatprep.subr.mxu0 0.0
        %1474 = vmatpush1.msra.mxu0 0.0
        %1475 = vmatprep.subr.mxu0 0.0
        %1476 = vmatpush1.msra.mxu0 0.0
        %1477 = vmatprep.subr.mxu0 0.0
        %1478 = vmatpush1.msra.mxu0 0.0
        %1479 = vmatprep.subr.mxu0 0.0
        %1480 = vmatpush1.msra.mxu0 0.0
        %1481 = vmatprep.subr.mxu0 0.0
        %1482 = vmatpush1.msra.mxu0 0.0
        %1483 = vmatprep.subr.mxu0 0.0
        %1484 = vmatpush1.msra.mxu0 0.0
        %1485 = vmatprep.subr.mxu0 0.0
        %1486 = vmatpush1.msra.mxu0 0.0
        %1487 = vmatprep.subr.mxu0 0.0
        %1488 = vmatpush1.msra.mxu0 0.0
        %1489 = vmatprep.subr.mxu0 0.0
        %1490 = vmatpush1.msra.mxu0 0.0
        %1491 = vmatprep.subr.mxu0 0.0
        %1492 = vmatpush1.msra.mxu0 0.0
        %1493 = vmatprep.subr.mxu0 0.0
        %1494 = vmatpush1.msra.mxu0 0.0
        %1495 = vmatprep.subr.mxu0 0.0
        %1496 = vmatpush1.msra.mxu0 0.0
        %1497 = vmatprep.subr.mxu0 0.0
        %1498 = vmatpush1.msra.mxu0 0.0
        %1499 = vmatprep.subr.mxu0 0.0
        %1500 = vmatpush1.msra.mxu0 0.0
        %1501 = vmatprep.subr.mxu0 0.0
        %1502 = vmatpush1.msra.mxu0 0.0
        %1503 = vmatprep.subr.mxu0 0.0
        %1504 = vmatpush1.msra.mxu0 0.0
        %1505 = vmatprep.subr.mxu0 0.0
        %1506 = vmatpush1.msra.mxu0 0.0
        %1507 = vmatprep.subr.mxu0 0.0
        %1508 = vmatpush1.msra.mxu0 0.0
        %1509 = vmatprep.mubr.f32.mxu0 0.0
        %1510 = vmatmul.mubr.f32.gmra.mrb[0].mxu0 %v1443
        %v1511 = vpop.f32.mrb[0].mxu0
        %v1512 = vadd.f32 0.0, %v1511
        %v1513 = vpop.f32.mrb[0].mxu0
        %1514 = vdwg.mxu0
        %v1516 = vsel %vm624, %v1512, 0
        %1518 = vmatprep.subr.mxu0 0.0
        %1519 = vmatpush1.msra.mxu0 %v620
        %1520 = vmatprep.subr.mxu0 0.0
        %1521 = vmatpush1.msra.mxu0 0.0
        %1522 = vmatprep.subr.mxu0 0.0
        %1523 = vmatpush1.msra.mxu0 0.0
        %1524 = vmatprep.subr.mxu0 0.0
        %1525 = vmatpush1.msra.mxu0 0.0
        %1526 = vmatprep.subr.mxu0 0.0
        %1527 = vmatpush1.msra.mxu0 0.0
        %1528 = vmatprep.subr.mxu0 0.0
        %1529 = vmatpush1.msra.mxu0 0.0
        %1530 = vmatprep.subr.mxu0 0.0
        %1531 = vmatpush1.msra.mxu0 0.0
        %1532 = vmatprep.subr.mxu0 0.0
        %1533 = vmatpush1.msra.mxu0 0.0
        %1534 = vmatprep.subr.mxu0 0.0
        %1535 = vmatpush1.msra.mxu0 0.0
        %1536 = vmatprep.subr.mxu0 0.0
        %1537 = vmatpush1.msra.mxu0 0.0
        %1538 = vmatprep.subr.mxu0 0.0
        %1539 = vmatpush1.msra.mxu0 0.0
        %1540 = vmatprep.subr.mxu0 0.0
        %1541 = vmatpush1.msra.mxu0 0.0
        %1542 = vmatprep.subr.mxu0 0.0
        %1543 = vmatpush1.msra.mxu0 0.0
        %1544 = vmatprep.subr.mxu0 0.0
        %1545 = vmatpush1.msra.mxu0 0.0
        %1546 = vmatprep.subr.mxu0 0.0
        %1547 = vmatpush1.msra.mxu0 0.0
        %1548 = vmatprep.subr.mxu0 0.0
        %1549 = vmatpush1.msra.mxu0 0.0
        %1550 = vmatprep.subr.mxu0 0.0
        %1551 = vmatpush1.msra.mxu0 0.0
        %1552 = vmatprep.subr.mxu0 0.0
        %1553 = vmatpush1.msra.mxu0 0.0
        %1554 = vmatprep.subr.mxu0 0.0
        %1555 = vmatpush1.msra.mxu0 0.0
        %1556 = vmatprep.subr.mxu0 0.0
        %1557 = vmatpush1.msra.mxu0 0.0
        %1558 = vmatprep.subr.mxu0 0.0
        %1559 = vmatpush1.msra.mxu0 0.0
        %1560 = vmatprep.subr.mxu0 0.0
        %1561 = vmatpush1.msra.mxu0 0.0
        %1562 = vmatprep.subr.mxu0 0.0
        %1563 = vmatpush1.msra.mxu0 0.0
        %1564 = vmatprep.subr.mxu0 0.0
        %1565 = vmatpush1.msra.mxu0 0.0
        %1566 = vmatprep.subr.mxu0 0.0
        %1567 = vmatpush1.msra.mxu0 0.0
        %1568 = vmatprep.subr.mxu0 0.0
        %1569 = vmatpush1.msra.mxu0 0.0
        %1570 = vmatprep.subr.mxu0 0.0
        %1571 = vmatpush1.msra.mxu0 0.0
        %1572 = vmatprep.subr.mxu0 0.0
        %1573 = vmatpush1.msra.mxu0 0.0
        %1574 = vmatprep.subr.mxu0 0.0
        %1575 = vmatpush1.msra.mxu0 0.0
        %1576 = vmatprep.subr.mxu0 0.0
        %1577 = vmatpush1.msra.mxu0 0.0
        %1578 = vmatprep.subr.mxu0 0.0
        %1579 = vmatpush1.msra.mxu0 0.0
        %1580 = vmatprep.subr.mxu0 0.0
        %1581 = vmatpush1.msra.mxu0 0.0
        %1582 = vmatprep.mubr.f32.mxu0 0.0
        %1583 = vmatmul.mubr.f32.gmra.mrb[0].mxu0 %v1516
        %v1584 = vpop.f32.mrb[0].mxu0
        %v1585 = vadd.f32 0.0, %v1584
        %v1586 = vpop.f32.mrb[0].mxu0
        %1587 = vdwg.mxu0
        %v1588 = vadd.f32 %v1347, %v1585
        %v1589 = vld [vmem:[%s5] sm:$0x1]
        %v1591 = vlaneseq
        %v1592 = vshrl.u32 %v1591, 7
        %v1593 = vsub.s32 0, %v1592
        %v1594 = vrot.slane %v1589, %v1593
        %v1596 = vadd.f32 %v1588, %v1594
        %v1597 = vadd.f32 %v530, %v1596
        %v1598 = vsel %vm543, %v1597, 0.0
        %1599 = vadd.xlane.f32.xlu0 %v1598
        %v1600 = vpop.xlane.xlu0 %1599
        %v1601 = vrcp.pop 32.0
        %v1602 = vmul.f32 %v1600, %v1601
        %v1603 = vsub.f32 %v1597, %v1602
        %v1604 = vmul.f32 %v1603, %v1603
        %v1605 = vsel %vm543, %v1604, 0.0
        %1606 = vadd.xlane.f32.xlu0 %v1605
        %v1607 = vpop.xlane.xlu0 %1606
        %v1608 = vmul.f32 %v1607, %v1601
        %v1609 = vadd.f32 %v1608, 1e-05
        %v1610 = vrsqrt.pop %v1609
        %v1611 = vmul.f32 %v1603, %v1610
        %v1612 = vld [vmem:[%s6] sm:$0x1]
        %v1614 = vlaneseq
        %v1615 = vshrl.u32 %v1614, 7
        %v1616 = vsub.s32 0, %v1615
        %v1617 = vrot.slane %v1612, %v1616
        %v1619 = vmul.f32 %v1611, %v1617
        %v1620 = vld [vmem:[%s7] sm:$0x1]
        %v1622 = vlaneseq
        %v1623 = vshrl.u32 %v1622, 7
        %v1624 = vsub.s32 0, %v1623
        %v1625 = vrot.slane %v1620, %v1624
        %v1627 = vadd.f32 %v1619, %v1625
        %v1628 = vld [vmem:[%s8] sm:$0xff]
        %v1629 = vld [vmem:[%s8 + $0x8] sm:$0xff]
        %v1630 = vld [vmem:[%s8 + $0x10] sm:$0xff]
        %v1631 = vld [vmem:[%s8 + $0x18] sm:$0xff]
        %v1632 = vld [vmem:[%s8 + $0x20] sm:$0xff]
        %v1633 = vld [vmem:[%s8 + $0x28] sm:$0xff]
        %v1634 = vld [vmem:[%s8 + $0x30] sm:$0xff]
        %v1635 = vld [vmem:[%s8 + $0x38] sm:$0xff]
        %v1636 = vld [vmem:[%s8 + $0x40] sm:$0xff]
        %v1637 = vld [vmem:[%s8 + $0x48] sm:$0xff]
        %v1638 = vld [vmem:[%s8 + $0x50] sm:$0xff]
        %v1639 = vld [vmem:[%s8 + $0x58] sm:$0xff]
        %v1640 = vld [vmem:[%s8 + $0x60] sm:$0xff]
        %v1641 = vld [vmem:[%s8 + $0x68] sm:$0xff]
        %v1642 = vld [vmem:[%s8 + $0x70] sm:$0xff]
        %v1643 = vld [vmem:[%s8 + $0x78] sm:$0xff]
        %v1644 = vld [vmem:[%s8 + $0x80] sm:$0xff]
        %v1645 = vld [vmem:[%s8 + $0x88] sm:$0xff]
        %v1646 = vld [vmem:[%s8 + $0x90] sm:$0xff]
        %v1647 = vld [vmem:[%s8 + $0x98] sm:$0xff]
        %v1648 = vld [vmem:[%s8 + $0xa0] sm:$0xff]
        %v1649 = vld [vmem:[%s8 + $0xa8] sm:$0xff]
        %v1650 = vld [vmem:[%s8 + $0xb0] sm:$0xff]
        %v1651 = vld [vmem:[%s8 + $0xb8] sm:$0xff]
        %v1652 = vld [vmem:[%s8 + $0xc0] sm:$0xff]
        %v1653 = vld [vmem:[%s8 + $0xc8] sm:$0xff]
        %v1654 = vld [vmem:[%s8 + $0xd0] sm:$0xff]
        %v1655 = vld [vmem:[%s8 + $0xd8] sm:$0xff]
        %v1656 = vld [vmem:[%s8 + $0xe0] sm:$0xff]
        %v1657 = vld [vmem:[%s8 + $0xe8] sm:$0xff]
        %v1658 = vld [vmem:[%s8 + $0xf0] sm:$0xff]
        %v1659 = vld [vmem:[%s8 + $0xf8] sm:$0xff]
        %v1660 = vld [vmem:[%s8 + $0x100] sm:$0xff]
        %v1661 = vld [vmem:[%s8 + $0x108] sm:$0xff]
        %v1662 = vld [vmem:[%s8 + $0x110] sm:$0xff]
        %v1663 = vld [vmem:[%s8 + $0x118] sm:$0xff]
        %v1664 = vld [vmem:[%s8 + $0x120] sm:$0xff]
        %v1665 = vld [vmem:[%s8 + $0x128] sm:$0xff]
        %v1666 = vld [vmem:[%s8 + $0x130] sm:$0xff]
        %v1667 = vld [vmem:[%s8 + $0x138] sm:$0xff]
        %v1668 = vld [vmem:[%s8 + $0x140] sm:$0xff]
        %v1669 = vld [vmem:[%s8 + $0x148] sm:$0xff]
        %v1670 = vld [vmem:[%s8 + $0x150] sm:$0xff]
        %v1671 = vld [vmem:[%s8 + $0x158] sm:$0xff]
        %v1672 = vld [vmem:[%s8 + $0x160] sm:$0xff]
        %v1673 = vld [vmem:[%s8 + $0x168] sm:$0xff]
        %v1674 = vld [vmem:[%s8 + $0x170] sm:$0xff]
        %v1675 = vld [vmem:[%s8 + $0x178] sm:$0xff]
        %v1676 = vld [vmem:[%s8 + $0x180] sm:$0xff]
        %v1677 = vld [vmem:[%s8 + $0x188] sm:$0xff]
        %v1678 = vld [vmem:[%s8 + $0x190] sm:$0xff]
        %v1679 = vld [vmem:[%s8 + $0x198] sm:$0xff]
        %v1680 = vld [vmem:[%s8 + $0x1a0] sm:$0xff]
        %v1681 = vld [vmem:[%s8 + $0x1a8] sm:$0xff]
        %v1682 = vld [vmem:[%s8 + $0x1b0] sm:$0xff]
        %v1683 = vld [vmem:[%s8 + $0x1b8] sm:$0xff]
        %v1684 = vld [vmem:[%s8 + $0x1c0] sm:$0xff]
        %v1685 = vld [vmem:[%s8 + $0x1c8] sm:$0xff]
        %v1686 = vld [vmem:[%s8 + $0x1d0] sm:$0xff]
        %v1687 = vld [vmem:[%s8 + $0x1d8] sm:$0xff]
        %v1688 = vld [vmem:[%s8 + $0x1e0] sm:$0xff]
        %v1689 = vld [vmem:[%s8 + $0x1e8] sm:$0xff]
        %v1690 = vld [vmem:[%s8 + $0x1f0] sm:$0xff]
        %v1691 = vld [vmem:[%s8 + $0x1f8] sm:$0xff]
        %v1692 = vld [vmem:[%s9] sm:$0xff]
        %v1693 = vld [vmem:[%s9 + $0x8] sm:$0xff]
        %v1696 = vlaneseq
        %v1697 = vshrl.u32 %v1696, 7
        %v1698 = vsub.s32 0, %v1697
        %v1699 = vrot.slane %v1692, %v1698
        %v1700 = vlaneseq
        %v1701 = vshrl.u32 %v1700, 7
        %v1702 = vsub.s32 1, %v1701
        %v1703 = vrot.slane %v1692, %v1702
        %v1704 = vlaneseq
        %v1705 = vshrl.u32 %v1704, 7
        %v1706 = vsub.s32 2, %v1705
        %v1707 = vrot.slane %v1692, %v1706
        %v1708 = vlaneseq
        %v1709 = vshrl.u32 %v1708, 7
        %v1710 = vsub.s32 3, %v1709
        %v1711 = vrot.slane %v1692, %v1710
        %v1712 = vlaneseq
        %v1713 = vshrl.u32 %v1712, 7
        %v1714 = vsub.s32 4, %v1713
        %v1715 = vrot.slane %v1692, %v1714
        %v1716 = vlaneseq
        %v1717 = vshrl.u32 %v1716, 7
        %v1718 = vsub.s32 5, %v1717
        %v1719 = vrot.slane %v1692, %v1718
        %v1720 = vlaneseq
        %v1721 = vshrl.u32 %v1720, 7
        %v1722 = vsub.s32 6, %v1721
        %v1723 = vrot.slane %v1692, %v1722
        %v1724 = vlaneseq
        %v1725 = vshrl.u32 %v1724, 7
        %v1726 = vsub.s32 7, %v1725
        %v1727 = vrot.slane %v1692, %v1726
        %v1728 = vlaneseq
        %v1729 = vshrl.u32 %v1728, 7
        %v1730 = vsub.s32 0, %v1729
        %v1731 = vrot.slane %v1693, %v1730
        %v1732 = vlaneseq
        %v1733 = vshrl.u32 %v1732, 7
        %v1734 = vsub.s32 1, %v1733
        %v1735 = vrot.slane %v1693, %v1734
        %v1736 = vlaneseq
        %v1737 = vshrl.u32 %v1736, 7
        %v1738 = vsub.s32 2, %v1737
        %v1739 = vrot.slane %v1693, %v1738
        %v1740 = vlaneseq
        %v1741 = vshrl.u32 %v1740, 7
        %v1742 = vsub.s32 3, %v1741
        %v1743 = vrot.slane %v1693, %v1742
        %v1744 = vlaneseq
        %v1745 = vshrl.u32 %v1744, 7
        %v1746 = vsub.s32 4, %v1745
        %v1747 = vrot.slane %v1693, %v1746
        %v1748 = vlaneseq
        %v1749 = vshrl.u32 %v1748, 7
        %v1750 = vsub.s32 5, %v1749
        %v1751 = vrot.slane %v1693, %v1750
        %v1752 = vlaneseq
        %v1753 = vshrl.u32 %v1752, 7
        %v1754 = vsub.s32 6, %v1753
        %v1755 = vrot.slane %v1693, %v1754
        %v1756 = vlaneseq
        %v1757 = vshrl.u32 %v1756, 7
        %v1758 = vsub.s32 7, %v1757
        %v1759 = vrot.slane %v1693, %v1758
        %v1777 = vsel %vm543, %v1627, 0
        %1779 = vmatprep.subr.mxu0 %v1629
        %1780 = vmatpush1.msra.mxu0 %v1628
        %1781 = vmatprep.subr.mxu0 %v1645
        %1782 = vmatpush1.msra.mxu0 %v1644
        %1783 = vmatprep.subr.mxu0 %v1661
        %1784 = vmatpush1.msra.mxu0 %v1660
        %1785 = vmatprep.subr.mxu0 %v1677
        %1786 = vmatpush1.msra.mxu0 %v1676
        %1787 = vmatprep.subr.mxu0 0.0
        %1788 = vmatpush1.msra.mxu0 0.0
        %1789 = vmatprep.subr.mxu0 0.0
        %1790 = vmatpush1.msra.mxu0 0.0
        %1791 = vmatprep.subr.mxu0 0.0
        %1792 = vmatpush1.msra.mxu0 0.0
        %1793 = vmatprep.subr.mxu0 0.0
        %1794 = vmatpush1.msra.mxu0 0.0
        %1795 = vmatprep.subr.mxu0 0.0
        %1796 = vmatpush1.msra.mxu0 0.0
        %1797 = vmatprep.subr.mxu0 0.0
        %1798 = vmatpush1.msra.mxu0 0.0
        %1799 = vmatprep.subr.mxu0 0.0
        %1800 = vmatpush1.msra.mxu0 0.0
        %1801 = vmatprep.subr.mxu0 0.0
        %1802 = vmatpush1.msra.mxu0 0.0
        %1803 = vmatprep.subr.mxu0 0.0
        %1804 = vmatpush1.msra.mxu0 0.0
        %1805 = vmatprep.subr.mxu0 0.0
        %1806 = vmatpush1.msra.mxu0 0.0
        %1807 = vmatprep.subr.mxu0 0.0
        %1808 = vmatpush1.msra.mxu0 0.0
        %1809 = vmatprep.subr.mxu0 0.0
        %1810 = vmatpush1.msra.mxu0 0.0
        %1811 = vmatprep.subr.mxu0 0.0
        %1812 = vmatpush1.msra.mxu0 0.0
        %1813 = vmatprep.subr.mxu0 0.0
        %1814 = vmatpush1.msra.mxu0 0.0
        %1815 = vmatprep.subr.mxu0 0.0
        %1816 = vmatpush1.msra.mxu0 0.0
        %1817 = vmatprep.subr.mxu0 0.0
        %1818 = vmatpush1.msra.mxu0 0.0
        %1819 = vmatprep.subr.mxu0 0.0
        %1820 = vmatpush1.msra.mxu0 0.0
        %1821 = vmatprep.subr.mxu0 0.0
        %1822 = vmatpush1.msra.mxu0 0.0
        %1823 = vmatprep.subr.mxu0 0.0
        %1824 = vmatpush1.msra.mxu0 0.0
        %1825 = vmatprep.subr.mxu0 0.0
        %1826 = vmatpush1.msra.mxu0 0.0
        %1827 = vmatprep.subr.mxu0 0.0
        %1828 = vmatpush1.msra.mxu0 0.0
        %1829 = vmatprep.subr.mxu0 0.0
        %1830 = vmatpush1.msra.mxu0 0.0
        %1831 = vmatprep.subr.mxu0 0.0
        %1832 = vmatpush1.msra.mxu0 0.0
        %1833 = vmatprep.subr.mxu0 0.0
        %1834 = vmatpush1.msra.mxu0 0.0
        %1835 = vmatprep.subr.mxu0 0.0
        %1836 = vmatpush1.msra.mxu0 0.0
        %1837 = vmatprep.subr.mxu0 0.0
        %1838 = vmatpush1.msra.mxu0 0.0
        %1839 = vmatprep.subr.mxu0 0.0
        %1840 = vmatpush1.msra.mxu0 0.0
        %1841 = vmatprep.subr.mxu0 0.0
        %1842 = vmatpush1.msra.mxu0 0.0
        %1843 = vmatprep.mubr.f32.mxu0 0.0
        %1844 = vmatmul.mubr.f32.gmra.mrb[0].mxu0 %v1777
        %v1845 = vpop.f32.mrb[0].mxu0
        %v1846 = vadd.f32 %v1699, %v1845
        %v1847 = vpop.f32.mrb[0].mxu0
        %v1848 = vadd.f32 %v1703, %v1847
        %1849 = vdwg.mxu0
        %1850 = vmatprep.subr.mxu0 %v1631
        %1851 = vmatpush1.msra.mxu0 %v1630
        %1852 = vmatprep.subr.mxu0 %v1647
        %1853 = vmatpush1.msra.mxu0 %v1646
        %1854 = vmatprep.subr.mxu0 %v1663
        %1855 = vmatpush1.msra.mxu0 %v1662
        %1856 = vmatprep.subr.mxu0 %v1679
        %1857 = vmatpush1.msra.mxu0 %v1678
        %1858 = vmatprep.subr.mxu0 0.0
        %1859 = vmatpush1.msra.mxu0 0.0
        %1860 = vmatprep.subr.mxu0 0.0
        %1861 = vmatpush1.msra.mxu0 0.0
        %1862 = vmatprep.subr.mxu0 0.0
        %1863 = vmatpush1.msra.mxu0 0.0
        %1864 = vmatprep.subr.mxu0 0.0
        %1865 = vmatpush1.msra.mxu0 0.0
        %1866 = vmatprep.subr.mxu0 0.0
        %1867 = vmatpush1.msra.mxu0 0.0
        %1868 = vmatprep.subr.mxu0 0.0
        %1869 = vmatpush1.msra.mxu0 0.0
        %1870 = vmatprep.subr.mxu0 0.0
        %1871 = vmatpush1.msra.mxu0 0.0
        %1872 = vmatprep.subr.mxu0 0.0
        %1873 = vmatpush1.msra.mxu0 0.0
        %1874 = vmatprep.subr.mxu0 0.0
        %1875 = vmatpush1.msra.mxu0 0.0
        %1876 = vmatprep.subr.mxu0 0.0
        %1877 = vmatpush1.msra.mxu0 0.0
        %1878 = vmatprep.subr.mxu0 0.0
        %1879 = vmatpush1.msra.mxu0 0.0
        %1880 = vmatprep.subr.mxu0 0.0
        %1881 = vmatpush1.msra.mxu0 0.0
        %1882 = vmatprep.subr.mxu0 0.0
        %1883 = vmatpush1.msra.mxu0 0.0
        %1884 = vmatprep.subr.mxu0 0.0
        %1885 = vmatpush1.msra.mxu0 0.0
        %1886 = vmatprep.subr.mxu0 0.0
        %1887 = vmatpush1.msra.mxu0 0.0
        %1888 = vmatprep.subr.mxu0 0.0
        %1889 = vmatpush1.msra.mxu0 0.0
        %1890 = vmatprep.subr.mxu0 0.0
        %1891 = vmatpush1.msra.mxu0 0.0
        %1892 = vmatprep.subr.mxu0 0.0
        %1893 = vmatpush1.msra.mxu0 0.0
        %1894 = vmatprep.subr.mxu0 0.0
        %1895 = vmatpush1.msra.mxu0 0.0
        %1896 = vmatprep.subr.mxu0 0.0
        %1897 = vmatpush1.msra.mxu0 0.0
        %1898 = vmatprep.subr.mxu0 0.0
        %1899 = vmatpush1.msra.mxu0 0.0
        %1900 = vmatprep.subr.mxu0 0.0
        %1901 = vmatpush1.msra.mxu0 0.0
        %1902 = vmatprep.subr.mxu0 0.0
        %1903 = vmatpush1.msra.mxu0 0.0
        %1904 = vmatprep.subr.mxu0 0.0
        %1905 = vmatpush1.msra.mxu0 0.0
        %1906 = vmatprep.subr.mxu0 0.0
        %1907 = vmatpush1.msra.mxu0 0.0
        %1908 = vmatprep.subr.mxu0 0.0
        %1909 = vmatpush1.msra.mxu0 0.0
        %1910 = vmatprep.subr.mxu0 0.0
        %1911 = vmatpush1.msra.mxu0 0.0
        %1912 = vmatprep.subr.mxu0 0.0
        %1913 = vmatpush1.msra.mxu0 0.0
        %1914 = vmatprep.mubr.f32.mxu0 0.0
        %1915 = vmatmul.mubr.f32.gmra.mrb[0].mxu0 %v1777
        %v1916 = vpop.f32.mrb[0].mxu0
        %v1917 = vadd.f32 %v1707, %v1916
        %v1918 = vpop.f32.mrb[0].mxu0
        %v1919 = vadd.f32 %v1711, %v1918
        %1920 = vdwg.mxu0
        %1921 = vmatprep.subr.mxu0 %v1633
        %1922 = vmatpush1.msra.mxu0 %v1632
        %1923 = vmatprep.subr.mxu0 %v1649
        %1924 = vmatpush1.msra.mxu0 %v1648
        %1925 = vmatprep.subr.mxu0 %v1665
        %1926 = vmatpush1.msra.mxu0 %v1664
        %1927 = vmatprep.subr.mxu0 %v1681
        %1928 = vmatpush1.msra.mxu0 %v1680
        %1929 = vmatprep.subr.mxu0 0.0
        %1930 = vmatpush1.msra.mxu0 0.0
        %1931 = vmatprep.subr.mxu0 0.0
        %1932 = vmatpush1.msra.mxu0 0.0
        %1933 = vmatprep.subr.mxu0 0.0
        %1934 = vmatpush1.msra.mxu0 0.0
        %1935 = vmatprep.subr.mxu0 0.0
        %1936 = vmatpush1.msra.mxu0 0.0
        %1937 = vmatprep.subr.mxu0 0.0
        %1938 = vmatpush1.msra.mxu0 0.0
        %1939 = vmatprep.subr.mxu0 0.0
        %1940 = vmatpush1.msra.mxu0 0.0
        %1941 = vmatprep.subr.mxu0 0.0
        %1942 = vmatpush1.msra.mxu0 0.0
        %1943 = vmatprep.subr.mxu0 0.0
        %1944 = vmatpush1.msra.mxu0 0.0
        %1945 = vmatprep.subr.mxu0 0.0
        %1946 = vmatpush1.msra.mxu0 0.0
        %1947 = vmatprep.subr.mxu0 0.0
        %1948 = vmatpush1.msra.mxu0 0.0
        %1949 = vmatprep.subr.mxu0 0.0
        %1950 = vmatpush1.msra.mxu0 0.0
        %1951 = vmatprep.subr.mxu0 0.0
        %1952 = vmatpush1.msra.mxu0 0.0
        %1953 = vmatprep.subr.mxu0 0.0
        %1954 = vmatpush1.msra.mxu0 0.0
        %1955 = vmatprep.subr.mxu0 0.0
        %1956 = vmatpush1.msra.mxu0 0.0
        %1957 = vmatprep.subr.mxu0 0.0
        %1958 = vmatpush1.msra.mxu0 0.0
        %1959 = vmatprep.subr.mxu0 0.0
        %1960 = vmatpush1.msra.mxu0 0.0
        %1961 = vmatprep.subr.mxu0 0.0
        %1962 = vmatpush1.msra.mxu0 0.0
        %1963 = vmatprep.subr.mxu0 0.0
        %1964 = vmatpush1.msra.mxu0 0.0
        %1965 = vmatprep.subr.mxu0 0.0
        %1966 = vmatpush1.msra.mxu0 0.0
        %1967 = vmatprep.subr.mxu0 0.0
        %1968 = vmatpush1.msra.mxu0 0.0
        %1969 = vmatprep.subr.mxu0 0.0
        %1970 = vmatpush1.msra.mxu0 0.0
        %1971 = vmatprep.subr.mxu0 0.0
        %1972 = vmatpush1.msra.mxu0 0.0
        %1973 = vmatprep.subr.mxu0 0.0
        %1974 = vmatpush1.msra.mxu0 0.0
        %1975 = vmatprep.subr.mxu0 0.0
        %1976 = vmatpush1.msra.mxu0 0.0
        %1977 = vmatprep.subr.mxu0 0.0
        %1978 = vmatpush1.msra.mxu0 0.0
        %1979 = vmatprep.subr.mxu0 0.0
        %1980 = vmatpush1.msra.mxu0 0.0
        %1981 = vmatprep.subr.mxu0 0.0
        %1982 = vmatpush1.msra.mxu0 0.0
        %1983 = vmatprep.subr.mxu0 0.0
        %1984 = vmatpush1.msra.mxu0 0.0
        %1985 = vmatprep.mubr.f32.mxu0 0.0
        %1986 = vmatmul.mubr.f32.gmra.mrb[0].mxu0 %v1777
        %v1987 = vpop.f32.mrb[0].mxu0
        %v1988 = vadd.f32 %v1715, %v1987
        %v1989 = vpop.f32.mrb[0].mxu0
        %v1990 = vadd.f32 %v1719, %v1989
        %1991 = vdwg.mxu0
        %1992 = vmatprep.subr.mxu0 %v1635
        %1993 = vmatpush1.msra.mxu0 %v1634
        %1994 = vmatprep.subr.mxu0 %v1651
        %1995 = vmatpush1.msra.mxu0 %v1650
        %1996 = vmatprep.subr.mxu0 %v1667
        %1997 = vmatpush1.msra.mxu0 %v1666
        %1998 = vmatprep.subr.mxu0 %v1683
        %1999 = vmatpush1.msra.mxu0 %v1682
        %2000 = vmatprep.subr.mxu0 0.0
        %2001 = vmatpush1.msra.mxu0 0.0
        %2002 = vmatprep.subr.mxu0 0.0
        %2003 = vmatpush1.msra.mxu0 0.0
        %2004 = vmatprep.subr.mxu0 0.0
        %2005 = vmatpush1.msra.mxu0 0.0
        %2006 = vmatprep.subr.mxu0 0.0
        %2007 = vmatpush1.msra.mxu0 0.0
        %2008 = vmatprep.subr.mxu0 0.0
        %2009 = vmatpush1.msra.mxu0 0.0
        %2010 = vmatprep.subr.mxu0 0.0
        %2011 = vmatpush1.msra.mxu0 0.0
        %2012 = vmatprep.subr.mxu0 0.0
        %2013 = vmatpush1.msra.mxu0 0.0
        %2014 = vmatprep.subr.mxu0 0.0
        %2015 = vmatpush1.msra.mxu0 0.0
        %2016 = vmatprep.subr.mxu0 0.0
        %2017 = vmatpush1.msra.mxu0 0.0
        %2018 = vmatprep.subr.mxu0 0.0
        %2019 = vmatpush1.msra.mxu0 0.0
        %2020 = vmatprep.subr.mxu0 0.0
        %2021 = vmatpush1.msra.mxu0 0.0
        %2022 = vmatprep.subr.mxu0 0.0
        %2023 = vmatpush1.msra.mxu0 0.0
        %2024 = vmatprep.subr.mxu0 0.0
        %2025 = vmatpush1.msra.mxu0 0.0
        %2026 = vmatprep.subr.mxu0 0.0
        %2027 = vmatpush1.msra.mxu0 0.0
        %2028 = vmatprep.subr.mxu0 0.0
        %2029 = vmatpush1.msra.mxu0 0.0
        %2030 = vmatprep.subr.mxu0 0.0
        %2031 = vmatpush1.msra.mxu0 0.0
        %2032 = vmatprep.subr.mxu0 0.0
        %2033 = vmatpush1.msra.mxu0 0.0
        %2034 = vmatprep.subr.mxu0 0.0
        %2035 = vmatpush1.msra.mxu0 0.0
        %2036 = vmatprep.subr.mxu0 0.0
        %2037 = vmatpush1.msra.mxu0 0.0
        %2038 = vmatprep.subr.mxu0 0.0
        %2039 = vmatpush1.msra.mxu0 0.0
        %2040 = vmatprep.subr.mxu0 0.0
        %2041 = vmatpush1.msra.mxu0 0.0
        %2042 = vmatprep.subr.mxu0 0.0
        %2043 = vmatpush1.msra.mxu0 0.0
        %2044 = vmatprep.subr.mxu0 0.0
        %2045 = vmatpush1.msra.mxu0 0.0
        %2046 = vmatprep.subr.mxu0 0.0
        %2047 = vmatpush1.msra.mxu0 0.0
        %2048 = vmatprep.subr.mxu0 0.0
        %2049 = vmatpush1.msra.mxu0 0.0
        %2050 = vmatprep.subr.mxu0 0.0
        %2051 = vmatpush1.msra.mxu0 0.0
        %2052 = vmatprep.subr.mxu0 0.0
        %2053 = vmatpush1.msra.mxu0 0.0
        %2054 = vmatprep.subr.mxu0 0.0
        %2055 = vmatpush1.msra.mxu0 0.0
        %2056 = vmatprep.mubr.f32.mxu0 0.0
        %2057 = vmatmul.mubr.f32.gmra.mrb[0].mxu0 %v1777
        %v2058 = vpop.f32.mrb[0].mxu0
        %v2059 = vadd.f32 %v1723, %v2058
        %v2060 = vpop.f32.mrb[0].mxu0
        %v2061 = vadd.f32 %v1727, %v2060
        %2062 = vdwg.mxu0
        %2063 = vmatprep.subr.mxu0 %v1637
        %2064 = vmatpush1.msra.mxu0 %v1636
        %2065 = vmatprep.subr.mxu0 %v1653
        %2066 = vmatpush1.msra.mxu0 %v1652
        %2067 = vmatprep.subr.mxu0 %v1669
        %2068 = vmatpush1.msra.mxu0 %v1668
        %2069 = vmatprep.subr.mxu0 %v1685
        %2070 = vmatpush1.msra.mxu0 %v1684
        %2071 = vmatprep.subr.mxu0 0.0
        %2072 = vmatpush1.msra.mxu0 0.0
        %2073 = vmatprep.subr.mxu0 0.0
        %2074 = vmatpush1.msra.mxu0 0.0
        %2075 = vmatprep.subr.mxu0 0.0
        %2076 = vmatpush1.msra.mxu0 0.0
        %2077 = vmatprep.subr.mxu0 0.0
        %2078 = vmatpush1.msra.mxu0 0.0
        %2079 = vmatprep.subr.mxu0 0.0
        %2080 = vmatpush1.msra.mxu0 0.0
        %2081 = vmatprep.subr.mxu0 0.0
        %2082 = vmatpush1.msra.mxu0 0.0
        %2083 = vmatprep.subr.mxu0 0.0
        %2084 = vmatpush1.msra.mxu0 0.0
        %2085 = vmatprep.subr.mxu0 0.0
        %2086 = vmatpush1.msra.mxu0 0.0
        %2087 = vmatprep.subr.mxu0 0.0
        %2088 = vmatpush1.msra.mxu0 0.0
        %2089 = vmatprep.subr.mxu0 0.0
        %2090 = vmatpush1.msra.mxu0 0.0
        %2091 = vmatprep.subr.mxu0 0.0
        %2092 = vmatpush1.msra.mxu0 0.0
        %2093 = vmatprep.subr.mxu0 0.0
        %2094 = vmatpush1.msra.mxu0 0.0
        %2095 = vmatprep.subr.mxu0 0.0
        %2096 = vmatpush1.msra.mxu0 0.0
        %2097 = vmatprep.subr.mxu0 0.0
        %2098 = vmatpush1.msra.mxu0 0.0
        %2099 = vmatprep.subr.mxu0 0.0
        %2100 = vmatpush1.msra.mxu0 0.0
        %2101 = vmatprep.subr.mxu0 0.0
        %2102 = vmatpush1.msra.mxu0 0.0
        %2103 = vmatprep.subr.mxu0 0.0
        %2104 = vmatpush1.msra.mxu0 0.0
        %2105 = vmatprep.subr.mxu0 0.0
        %2106 = vmatpush1.msra.mxu0 0.0
        %2107 = vmatprep.subr.mxu0 0.0
        %2108 = vmatpush1.msra.mxu0 0.0
        %2109 = vmatprep.subr.mxu0 0.0
        %2110 = vmatpush1.msra.mxu0 0.0
        %2111 = vmatprep.subr.mxu0 0.0
        %2112 = vmatpush1.msra.mxu0 0.0
        %2113 = vmatprep.subr.mxu0 0.0
        %2114 = vmatpush1.msra.mxu0 0.0
        %2115 = vmatprep.subr.mxu0 0.0
        %2116 = vmatpush1.msra.mxu0 0.0
        %2117 = vmatprep.subr.mxu0 0.0
        %2118 = vmatpush1.msra.mxu0 0.0
        %2119 = vmatprep.subr.mxu0 0.0
        %2120 = vmatpush1.msra.mxu0 0.0
        %2121 = vmatprep.subr.mxu0 0.0
        %2122 = vmatpush1.msra.mxu0 0.0
        %2123 = vmatprep.subr.mxu0 0.0
        %2124 = vmatpush1.msra.mxu0 0.0
        %2125 = vmatprep.subr.mxu0 0.0
        %2126 = vmatpush1.msra.mxu0 0.0
        %2127 = vmatprep.mubr.f32.mxu0 0.0
        %2128 = vmatmul.mubr.f32.gmra.mrb[0].mxu0 %v1777
        %v2129 = vpop.f32.mrb[0].mxu0
        %v2130 = vadd.f32 %v1731, %v2129
        %v2131 = vpop.f32.mrb[0].mxu0
        %v2132 = vadd.f32 %v1735, %v2131
        %2133 = vdwg.mxu0
        %2134 = vmatprep.subr.mxu0 %v1639
        %2135 = vmatpush1.msra.mxu0 %v1638
        %2136 = vmatprep.subr.mxu0 %v1655
        %2137 = vmatpush1.msra.mxu0 %v1654
        %2138 = vmatprep.subr.mxu0 %v1671
        %2139 = vmatpush1.msra.mxu0 %v1670
        %2140 = vmatprep.subr.mxu0 %v1687
        %2141 = vmatpush1.msra.mxu0 %v1686
        %2142 = vmatprep.subr.mxu0 0.0
        %2143 = vmatpush1.msra.mxu0 0.0
        %2144 = vmatprep.subr.mxu0 0.0
        %2145 = vmatpush1.msra.mxu0 0.0
        %2146 = vmatprep.subr.mxu0 0.0
        %2147 = vmatpush1.msra.mxu0 0.0
        %2148 = vmatprep.subr.mxu0 0.0
        %2149 = vmatpush1.msra.mxu0 0.0
        %2150 = vmatprep.subr.mxu0 0.0
        %2151 = vmatpush1.msra.mxu0 0.0
        %2152 = vmatprep.subr.mxu0 0.0
        %2153 = vmatpush1.msra.mxu0 0.0
        %2154 = vmatprep.subr.mxu0 0.0
        %2155 = vmatpush1.msra.mxu0 0.0
        %2156 = vmatprep.subr.mxu0 0.0
        %2157 = vmatpush1.msra.mxu0 0.0
        %2158 = vmatprep.subr.mxu0 0.0
        %2159 = vmatpush1.msra.mxu0 0.0
        %2160 = vmatprep.subr.mxu0 0.0
        %2161 = vmatpush1.msra.mxu0 0.0
        %2162 = vmatprep.subr.mxu0 0.0
        %2163 = vmatpush1.msra.mxu0 0.0
        %2164 = vmatprep.subr.mxu0 0.0
        %2165 = vmatpush1.msra.mxu0 0.0
        %2166 = vmatprep.subr.mxu0 0.0
        %2167 = vmatpush1.msra.mxu0 0.0
        %2168 = vmatprep.subr.mxu0 0.0
        %2169 = vmatpush1.msra.mxu0 0.0
        %2170 = vmatprep.subr.mxu0 0.0
        %2171 = vmatpush1.msra.mxu0 0.0
        %2172 = vmatprep.subr.mxu0 0.0
        %2173 = vmatpush1.msra.mxu0 0.0
        %2174 = vmatprep.subr.mxu0 0.0
        %2175 = vmatpush1.msra.mxu0 0.0
        %2176 = vmatprep.subr.mxu0 0.0
        %2177 = vmatpush1.msra.mxu0 0.0
        %2178 = vmatprep.subr.mxu0 0.0
        %2179 = vmatpush1.msra.mxu0 0.0
        %2180 = vmatprep.subr.mxu0 0.0
        %2181 = vmatpush1.msra.mxu0 0.0
        %2182 = vmatprep.subr.mxu0 0.0
        %2183 = vmatpush1.msra.mxu0 0.0
        %2184 = vmatprep.subr.mxu0 0.0
        %2185 = vmatpush1.msra.mxu0 0.0
        %2186 = vmatprep.subr.mxu0 0.0
        %2187 = vmatpush1.msra.mxu0 0.0
        %2188 = vmatprep.subr.mxu0 0.0
        %2189 = vmatpush1.msra.mxu0 0.0
        %2190 = vmatprep.subr.mxu0 0.0
        %2191 = vmatpush1.msra.mxu0 0.0
        %2192 = vmatprep.subr.mxu0 0.0
        %2193 = vmatpush1.msra.mxu0 0.0
        %2194 = vmatprep.subr.mxu0 0.0
        %2195 = vmatpush1.msra.mxu0 0.0
        %2196 = vmatprep.subr.mxu0 0.0
        %2197 = vmatpush1.msra.mxu0 0.0
        %2198 = vmatprep.mubr.f32.mxu0 0.0
        %2199 = vmatmul.mubr.f32.gmra.mrb[0].mxu0 %v1777
        %v2200 = vpop.f32.mrb[0].mxu0
        %v2201 = vadd.f32 %v1739, %v2200
        %v2202 = vpop.f32.mrb[0].mxu0
        %v2203 = vadd.f32 %v1743, %v2202
        %2204 = vdwg.mxu0
        %2205 = vmatprep.subr.mxu0 %v1641
        %2206 = vmatpush1.msra.mxu0 %v1640
        %2207 = vmatprep.subr.mxu0 %v1657
        %2208 = vmatpush1.msra.mxu0 %v1656
        %2209 = vmatprep.subr.mxu0 %v1673
        %2210 = vmatpush1.msra.mxu0 %v1672
        %2211 = vmatprep.subr.mxu0 %v1689
        %2212 = vmatpush1.msra.mxu0 %v1688
        %2213 = vmatprep.subr.mxu0 0.0
        %2214 = vmatpush1.msra.mxu0 0.0
        %2215 = vmatprep.subr.mxu0 0.0
        %2216 = vmatpush1.msra.mxu0 0.0
        %2217 = vmatprep.subr.mxu0 0.0
        %2218 = vmatpush1.msra.mxu0 0.0
        %2219 = vmatprep.subr.mxu0 0.0
        %2220 = vmatpush1.msra.mxu0 0.0
        %2221 = vmatprep.subr.mxu0 0.0
        %2222 = vmatpush1.msra.mxu0 0.0
        %2223 = vmatprep.subr.mxu0 0.0
        %2224 = vmatpush1.msra.mxu0 0.0
        %2225 = vmatprep.subr.mxu0 0.0
        %2226 = vmatpush1.msra.mxu0 0.0
        %2227 = vmatprep.subr.mxu0 0.0
        %2228 = vmatpush1.msra.mxu0 0.0
        %2229 = vmatprep.subr.mxu0 0.0
        %2230 = vmatpush1.msra.mxu0 0.0
        %2231 = vmatprep.subr.mxu0 0.0
        %2232 = vmatpush1.msra.mxu0 0.0
        %2233 = vmatprep.subr.mxu0 0.0
        %2234 = vmatpush1.msra.mxu0 0.0
        %2235 = vmatprep.subr.mxu0 0.0
        %2236 = vmatpush1.msra.mxu0 0.0
        %2237 = vmatprep.subr.mxu0 0.0
        %2238 = vmatpush1.msra.mxu0 0.0
        %2239 = vmatprep.subr.mxu0 0.0
        %2240 = vmatpush1.msra.mxu0 0.0
        %2241 = vmatprep.subr.mxu0 0.0
        %2242 = vmatpush1.msra.mxu0 0.0
        %2243 = vmatprep.subr.mxu0 0.0
        %2244 = vmatpush1.msra.mxu0 0.0
        %2245 = vmatprep.subr.mxu0 0.0
        %2246 = vmatpush1.msra.mxu0 0.0
        %2247 = vmatprep.subr.mxu0 0.0
        %2248 = vmatpush1.msra.mxu0 0.0
        %2249 = vmatprep.subr.mxu0 0.0
        %2250 = vmatpush1.msra.mxu0 0.0
        %2251 = vmatprep.subr.mxu0 0.0
        %2252 = vmatpush1.msra.mxu0 0.0
        %2253 = vmatprep.subr.mxu0 0.0
        %2254 = vmatpush1.msra.mxu0 0.0
        %2255 = vmatprep.subr.mxu0 0.0
        %2256 = vmatpush1.msra.mxu0 0.0
        %2257 = vmatprep.subr.mxu0 0.0
        %2258 = vmatpush1.msra.mxu0 0.0
        %2259 = vmatprep.subr.mxu0 0.0
        %2260 = vmatpush1.msra.mxu0 0.0
        %2261 = vmatprep.subr.mxu0 0.0
        %2262 = vmatpush1.msra.mxu0 0.0
        %2263 = vmatprep.subr.mxu0 0.0
        %2264 = vmatpush1.msra.mxu0 0.0
        %2265 = vmatprep.subr.mxu0 0.0
        %2266 = vmatpush1.msra.mxu0 0.0
        %2267 = vmatprep.subr.mxu0 0.0
        %2268 = vmatpush1.msra.mxu0 0.0
        %2269 = vmatprep.mubr.f32.mxu0 0.0
        %2270 = vmatmul.mubr.f32.gmra.mrb[0].mxu0 %v1777
        %v2271 = vpop.f32.mrb[0].mxu0
        %v2272 = vadd.f32 %v1747, %v2271
        %v2273 = vpop.f32.mrb[0].mxu0
        %v2274 = vadd.f32 %v1751, %v2273
        %2275 = vdwg.mxu0
        %2276 = vmatprep.subr.mxu0 %v1643
        %2277 = vmatpush1.msra.mxu0 %v1642
        %2278 = vmatprep.subr.mxu0 %v1659
        %2279 = vmatpush1.msra.mxu0 %v1658
        %2280 = vmatprep.subr.mxu0 %v1675
        %2281 = vmatpush1.msra.mxu0 %v1674
        %2282 = vmatprep.subr.mxu0 %v1691
        %2283 = vmatpush1.msra.mxu0 %v1690
        %2284 = vmatprep.subr.mxu0 0.0
        %2285 = vmatpush1.msra.mxu0 0.0
        %2286 = vmatprep.subr.mxu0 0.0
        %2287 = vmatpush1.msra.mxu0 0.0
        %2288 = vmatprep.subr.mxu0 0.0
        %2289 = vmatpush1.msra.mxu0 0.0
        %2290 = vmatprep.subr.mxu0 0.0
        %2291 = vmatpush1.msra.mxu0 0.0
        %2292 = vmatprep.subr.mxu0 0.0
        %2293 = vmatpush1.msra.mxu0 0.0
        %2294 = vmatprep.subr.mxu0 0.0
        %2295 = vmatpush1.msra.mxu0 0.0
        %2296 = vmatprep.subr.mxu0 0.0
        %2297 = vmatpush1.msra.mxu0 0.0
        %2298 = vmatprep.subr.mxu0 0.0
        %2299 = vmatpush1.msra.mxu0 0.0
        %2300 = vmatprep.subr.mxu0 0.0
        %2301 = vmatpush1.msra.mxu0 0.0
        %2302 = vmatprep.subr.mxu0 0.0
        %2303 = vmatpush1.msra.mxu0 0.0
        %2304 = vmatprep.subr.mxu0 0.0
        %2305 = vmatpush1.msra.mxu0 0.0
        %2306 = vmatprep.subr.mxu0 0.0
        %2307 = vmatpush1.msra.mxu0 0.0
        %2308 = vmatprep.subr.mxu0 0.0
        %2309 = vmatpush1.msra.mxu0 0.0
        %2310 = vmatprep.subr.mxu0 0.0
        %2311 = vmatpush1.msra.mxu0 0.0
        %2312 = vmatprep.subr.mxu0 0.0
        %2313 = vmatpush1.msra.mxu0 0.0
        %2314 = vmatprep.subr.mxu0 0.0
        %2315 = vmatpush1.msra.mxu0 0.0
        %2316 = vmatprep.subr.mxu0 0.0
        %2317 = vmatpush1.msra.mxu0 0.0
        %2318 = vmatprep.subr.mxu0 0.0
        %2319 = vmatpush1.msra.mxu0 0.0
        %2320 = vmatprep.subr.mxu0 0.0
        %2321 = vmatpush1.msra.mxu0 0.0
        %2322 = vmatprep.subr.mxu0 0.0
        %2323 = vmatpush1.msra.mxu0 0.0
        %2324 = vmatprep.subr.mxu0 0.0
        %2325 = vmatpush1.msra.mxu0 0.0
        %2326 = vmatprep.subr.mxu0 0.0
        %2327 = vmatpush1.msra.mxu0 0.0
        %2328 = vmatprep.subr.mxu0 0.0
        %2329 = vmatpush1.msra.mxu0 0.0
        %2330 = vmatprep.subr.mxu0 0.0
        %2331 = vmatpush1.msra.mxu0 0.0
        %2332 = vmatprep.subr.mxu0 0.0
        %2333 = vmatpush1.msra.mxu0 0.0
        %2334 = vmatprep.subr.mxu0 0.0
        %2335 = vmatpush1.msra.mxu0 0.0
        %2336 = vmatprep.subr.mxu0 0.0
        %2337 = vmatpush1.msra.mxu0 0.0
        %2338 = vmatprep.subr.mxu0 0.0
        %2339 = vmatpush1.msra.mxu0 0.0
        %2340 = vmatprep.mubr.f32.mxu0 0.0
        %2341 = vmatmul.mubr.f32.gmra.mrb[0].mxu0 %v1777
        %v2342 = vpop.f32.mrb[0].mxu0
        %v2343 = vadd.f32 %v1755, %v2342
        %v2344 = vpop.f32.mrb[0].mxu0
        %v2345 = vadd.f32 %v1759, %v2344
        %2346 = vdwg.mxu0
        %v2347 = vmax.f32 %v1846, 0.0
        %v2348 = vmax.f32 %v1848, 0.0
        %v2349 = vmax.f32 %v1917, 0.0
        %v2350 = vmax.f32 %v1919, 0.0
        %v2351 = vmax.f32 %v1988, 0.0
        %v2352 = vmax.f32 %v1990, 0.0
        %v2353 = vmax.f32 %v2059, 0.0
        %v2354 = vmax.f32 %v2061, 0.0
        %v2355 = vmax.f32 %v2130, 0.0
        %v2356 = vmax.f32 %v2132, 0.0
        %v2357 = vmax.f32 %v2201, 0.0
        %v2358 = vmax.f32 %v2203, 0.0
        %v2359 = vmax.f32 %v2272, 0.0
        %v2360 = vmax.f32 %v2274, 0.0
        %v2361 = vmax.f32 %v2343, 0.0
        %v2362 = vmax.f32 %v2345, 0.0
        %v2363 = vld [vmem:[%s10] sm:$0xff]
        %v2364 = vld [vmem:[%s10 + $0x8] sm:$0xff]
        %v2365 = vld [vmem:[%s10 + $0x10] sm:$0xff]
        %v2366 = vld [vmem:[%s10 + $0x18] sm:$0xff]
        %v2367 = vld [vmem:[%s10 + $0x20] sm:$0xff]
        %v2368 = vld [vmem:[%s10 + $0x28] sm:$0xff]
        %v2369 = vld [vmem:[%s10 + $0x30] sm:$0xff]
        %v2370 = vld [vmem:[%s10 + $0x38] sm:$0xff]
        %v2371 = vld [vmem:[%s10 + $0x40] sm:$0xff]
        %v2372 = vld [vmem:[%s10 + $0x48] sm:$0xff]
        %v2373 = vld [vmem:[%s10 + $0x50] sm:$0xff]
        %v2374 = vld [vmem:[%s10 + $0x58] sm:$0xff]
        %v2375 = vld [vmem:[%s10 + $0x60] sm:$0xff]
        %v2376 = vld [vmem:[%s10 + $0x68] sm:$0xff]
        %v2377 = vld [vmem:[%s10 + $0x70] sm:$0xff]
        %v2378 = vld [vmem:[%s10 + $0x78] sm:$0xff]
        %v2379 = vld [vmem:[%s10 + $0x80] sm:$0xff]
        %v2380 = vld [vmem:[%s10 + $0x88] sm:$0xff]
        %v2381 = vld [vmem:[%s10 + $0x90] sm:$0xff]
        %v2382 = vld [vmem:[%s10 + $0x98] sm:$0xff]
        %v2383 = vld [vmem:[%s10 + $0xa0] sm:$0xff]
        %v2384 = vld [vmem:[%s10 + $0xa8] sm:$0xff]
        %v2385 = vld [vmem:[%s10 + $0xb0] sm:$0xff]
        %v2386 = vld [vmem:[%s10 + $0xb8] sm:$0xff]
        %v2387 = vld [vmem:[%s10 + $0xc0] sm:$0xff]
        %v2388 = vld [vmem:[%s10 + $0xc8] sm:$0xff]
        %v2389 = vld [vmem:[%s10 + $0xd0] sm:$0xff]
        %v2390 = vld [vmem:[%s10 + $0xd8] sm:$0xff]
        %v2391 = vld [vmem:[%s10 + $0xe0] sm:$0xff]
        %v2392 = vld [vmem:[%s10 + $0xe8] sm:$0xff]
        %v2393 = vld [vmem:[%s10 + $0xf0] sm:$0xff]
        %v2394 = vld [vmem:[%s10 + $0xf8] sm:$0xff]
        %v2395 = vld [vmem:[%s10 + $0x100] sm:$0xff]
        %v2396 = vld [vmem:[%s10 + $0x108] sm:$0xff]
        %v2397 = vld [vmem:[%s10 + $0x110] sm:$0xff]
        %v2398 = vld [vmem:[%s10 + $0x118] sm:$0xff]
        %v2399 = vld [vmem:[%s10 + $0x120] sm:$0xff]
        %v2400 = vld [vmem:[%s10 + $0x128] sm:$0xff]
        %v2401 = vld [vmem:[%s10 + $0x130] sm:$0xff]
        %v2402 = vld [vmem:[%s10 + $0x138] sm:$0xff]
        %v2403 = vld [vmem:[%s10 + $0x140] sm:$0xff]
        %v2404 = vld [vmem:[%s10 + $0x148] sm:$0xff]
        %v2405 = vld [vmem:[%s10 + $0x150] sm:$0xff]
        %v2406 = vld [vmem:[%s10 + $0x158] sm:$0xff]
        %v2407 = vld [vmem:[%s10 + $0x160] sm:$0xff]
        %v2408 = vld [vmem:[%s10 + $0x168] sm:$0xff]
        %v2409 = vld [vmem:[%s10 + $0x170] sm:$0xff]
        %v2410 = vld [vmem:[%s10 + $0x178] sm:$0xff]
        %v2411 = vld [vmem:[%s10 + $0x180] sm:$0xff]
        %v2412 = vld [vmem:[%s10 + $0x188] sm:$0xff]
        %v2413 = vld [vmem:[%s10 + $0x190] sm:$0xff]
        %v2414 = vld [vmem:[%s10 + $0x198] sm:$0xff]
        %v2415 = vld [vmem:[%s10 + $0x1a0] sm:$0xff]
        %v2416 = vld [vmem:[%s10 + $0x1a8] sm:$0xff]
        %v2417 = vld [vmem:[%s10 + $0x1b0] sm:$0xff]
        %v2418 = vld [vmem:[%s10 + $0x1b8] sm:$0xff]
        %v2419 = vld [vmem:[%s10 + $0x1c0] sm:$0xff]
        %v2420 = vld [vmem:[%s10 + $0x1c8] sm:$0xff]
        %v2421 = vld [vmem:[%s10 + $0x1d0] sm:$0xff]
        %v2422 = vld [vmem:[%s10 + $0x1d8] sm:$0xff]
        %v2423 = vld [vmem:[%s10 + $0x1e0] sm:$0xff]
        %v2424 = vld [vmem:[%s10 + $0x1e8] sm:$0xff]
        %v2425 = vld [vmem:[%s10 + $0x1f0] sm:$0xff]
        %v2426 = vld [vmem:[%s10 + $0x1f8] sm:$0xff]
        %v2427 = vld [vmem:[%s10 + $0x200] sm:$0xff]
        %v2428 = vld [vmem:[%s10 + $0x208] sm:$0xff]
        %v2429 = vld [vmem:[%s10 + $0x210] sm:$0xff]
        %v2430 = vld [vmem:[%s10 + $0x218] sm:$0xff]
        %v2431 = vld [vmem:[%s10 + $0x220] sm:$0xff]
        %v2432 = vld [vmem:[%s10 + $0x228] sm:$0xff]
        %v2433 = vld [vmem:[%s10 + $0x230] sm:$0xff]
        %v2434 = vld [vmem:[%s10 + $0x238] sm:$0xff]
        %v2435 = vld [vmem:[%s10 + $0x240] sm:$0xff]
        %v2436 = vld [vmem:[%s10 + $0x248] sm:$0xff]
        %v2437 = vld [vmem:[%s10 + $0x250] sm:$0xff]
        %v2438 = vld [vmem:[%s10 + $0x258] sm:$0xff]
        %v2439 = vld [vmem:[%s10 + $0x260] sm:$0xff]
        %v2440 = vld [vmem:[%s10 + $0x268] sm:$0xff]
        %v2441 = vld [vmem:[%s10 + $0x270] sm:$0xff]
        %v2442 = vld [vmem:[%s10 + $0x278] sm:$0xff]
        %v2443 = vld [vmem:[%s10 + $0x280] sm:$0xff]
        %v2444 = vld [vmem:[%s10 + $0x288] sm:$0xff]
        %v2445 = vld [vmem:[%s10 + $0x290] sm:$0xff]
        %v2446 = vld [vmem:[%s10 + $0x298] sm:$0xff]
        %v2447 = vld [vmem:[%s10 + $0x2a0] sm:$0xff]
        %v2448 = vld [vmem:[%s10 + $0x2a8] sm:$0xff]
        %v2449 = vld [vmem:[%s10 + $0x2b0] sm:$0xff]
        %v2450 = vld [vmem:[%s10 + $0x2b8] sm:$0xff]
        %v2451 = vld [vmem:[%s10 + $0x2c0] sm:$0xff]
        %v2452 = vld [vmem:[%s10 + $0x2c8] sm:$0xff]
        %v2453 = vld [vmem:[%s10 + $0x2d0] sm:$0xff]
        %v2454 = vld [vmem:[%s10 + $0x2d8] sm:$0xff]
        %v2455 = vld [vmem:[%s10 + $0x2e0] sm:$0xff]
        %v2456 = vld [vmem:[%s10 + $0x2e8] sm:$0xff]
        %v2457 = vld [vmem:[%s10 + $0x2f0] sm:$0xff]
        %v2458 = vld [vmem:[%s10 + $0x2f8] sm:$0xff]
        %v2459 = vld [vmem:[%s10 + $0x300] sm:$0xff]
        %v2460 = vld [vmem:[%s10 + $0x308] sm:$0xff]
        %v2461 = vld [vmem:[%s10 + $0x310] sm:$0xff]
        %v2462 = vld [vmem:[%s10 + $0x318] sm:$0xff]
        %v2463 = vld [vmem:[%s10 + $0x320] sm:$0xff]
        %v2464 = vld [vmem:[%s10 + $0x328] sm:$0xff]
        %v2465 = vld [vmem:[%s10 + $0x330] sm:$0xff]
        %v2466 = vld [vmem:[%s10 + $0x338] sm:$0xff]
        %v2467 = vld [vmem:[%s10 + $0x340] sm:$0xff]
        %v2468 = vld [vmem:[%s10 + $0x348] sm:$0xff]
        %v2469 = vld [vmem:[%s10 + $0x350] sm:$0xff]
        %v2470 = vld [vmem:[%s10 + $0x358] sm:$0xff]
        %v2471 = vld [vmem:[%s10 + $0x360] sm:$0xff]
        %v2472 = vld [vmem:[%s10 + $0x368] sm:$0xff]
        %v2473 = vld [vmem:[%s10 + $0x370] sm:$0xff]
        %v2474 = vld [vmem:[%s10 + $0x378] sm:$0xff]
        %v2475 = vld [vmem:[%s10 + $0x380] sm:$0xff]
        %v2476 = vld [vmem:[%s10 + $0x388] sm:$0xff]
        %v2477 = vld [vmem:[%s10 + $0x390] sm:$0xff]
        %v2478 = vld [vmem:[%s10 + $0x398] sm:$0xff]
        %v2479 = vld [vmem:[%s10 + $0x3a0] sm:$0xff]
        %v2480 = vld [vmem:[%s10 + $0x3a8] sm:$0xff]
        %v2481 = vld [vmem:[%s10 + $0x3b0] sm:$0xff]
        %v2482 = vld [vmem:[%s10 + $0x3b8] sm:$0xff]
        %v2483 = vld [vmem:[%s10 + $0x3c0] sm:$0xff]
        %v2484 = vld [vmem:[%s10 + $0x3c8] sm:$0xff]
        %v2485 = vld [vmem:[%s10 + $0x3d0] sm:$0xff]
        %v2486 = vld [vmem:[%s10 + $0x3d8] sm:$0xff]
        %v2487 = vld [vmem:[%s10 + $0x3e0] sm:$0xff]
        %v2488 = vld [vmem:[%s10 + $0x3e8] sm:$0xff]
        %v2489 = vld [vmem:[%s10 + $0x3f0] sm:$0xff]
        %v2490 = vld [vmem:[%s10 + $0x3f8] sm:$0xff]
        %v2491 = vld [vmem:[%s10 + $0x400] sm:$0xff]
        %v2492 = vld [vmem:[%s10 + $0x408] sm:$0xff]
        %v2493 = vld [vmem:[%s10 + $0x410] sm:$0xff]
        %v2494 = vld [vmem:[%s10 + $0x418] sm:$0xff]
        %v2495 = vld [vmem:[%s10 + $0x420] sm:$0xff]
        %v2496 = vld [vmem:[%s10 + $0x428] sm:$0xff]
        %v2497 = vld [vmem:[%s10 + $0x430] sm:$0xff]
        %v2498 = vld [vmem:[%s10 + $0x438] sm:$0xff]
        %v2499 = vld [vmem:[%s10 + $0x440] sm:$0xff]
        %v2500 = vld [vmem:[%s10 + $0x448] sm:$0xff]
        %v2501 = vld [vmem:[%s10 + $0x450] sm:$0xff]
        %v2502 = vld [vmem:[%s10 + $0x458] sm:$0xff]
        %v2503 = vld [vmem:[%s10 + $0x460] sm:$0xff]
        %v2504 = vld [vmem:[%s10 + $0x468] sm:$0xff]
        %v2505 = vld [vmem:[%s10 + $0x470] sm:$0xff]
        %v2506 = vld [vmem:[%s10 + $0x478] sm:$0xff]
        %v2507 = vld [vmem:[%s10 + $0x480] sm:$0xff]
        %v2508 = vld [vmem:[%s10 + $0x488] sm:$0xff]
        %v2509 = vld [vmem:[%s10 + $0x490] sm:$0xff]
        %v2510 = vld [vmem:[%s10 + $0x498] sm:$0xff]
        %v2511 = vld [vmem:[%s10 + $0x4a0] sm:$0xff]
        %v2512 = vld [vmem:[%s10 + $0x4a8] sm:$0xff]
        %v2513 = vld [vmem:[%s10 + $0x4b0] sm:$0xff]
        %v2514 = vld [vmem:[%s10 + $0x4b8] sm:$0xff]
        %v2515 = vld [vmem:[%s10 + $0x4c0] sm:$0xff]
        %v2516 = vld [vmem:[%s10 + $0x4c8] sm:$0xff]
        %v2517 = vld [vmem:[%s10 + $0x4d0] sm:$0xff]
        %v2518 = vld [vmem:[%s10 + $0x4d8] sm:$0xff]
        %v2519 = vld [vmem:[%s10 + $0x4e0] sm:$0xff]
        %v2520 = vld [vmem:[%s10 + $0x4e8] sm:$0xff]
        %v2521 = vld [vmem:[%s10 + $0x4f0] sm:$0xff]
        %v2522 = vld [vmem:[%s10 + $0x4f8] sm:$0xff]
        %v2523 = vld [vmem:[%s10 + $0x500] sm:$0xff]
        %v2524 = vld [vmem:[%s10 + $0x508] sm:$0xff]
        %v2525 = vld [vmem:[%s10 + $0x510] sm:$0xff]
        %v2526 = vld [vmem:[%s10 + $0x518] sm:$0xff]
        %v2527 = vld [vmem:[%s10 + $0x520] sm:$0xff]
        %v2528 = vld [vmem:[%s10 + $0x528] sm:$0xff]
        %v2529 = vld [vmem:[%s10 + $0x530] sm:$0xff]
        %v2530 = vld [vmem:[%s10 + $0x538] sm:$0xff]
        %v2531 = vld [vmem:[%s10 + $0x540] sm:$0xff]
        %v2532 = vld [vmem:[%s10 + $0x548] sm:$0xff]
        %v2533 = vld [vmem:[%s10 + $0x550] sm:$0xff]
        %v2534 = vld [vmem:[%s10 + $0x558] sm:$0xff]
        %v2535 = vld [vmem:[%s10 + $0x560] sm:$0xff]
        %v2536 = vld [vmem:[%s10 + $0x568] sm:$0xff]
        %v2537 = vld [vmem:[%s10 + $0x570] sm:$0xff]
        %v2538 = vld [vmem:[%s10 + $0x578] sm:$0xff]
        %v2539 = vld [vmem:[%s10 + $0x580] sm:$0xff]
        %v2540 = vld [vmem:[%s10 + $0x588] sm:$0xff]
        %v2541 = vld [vmem:[%s10 + $0x590] sm:$0xff]
        %v2542 = vld [vmem:[%s10 + $0x598] sm:$0xff]
        %v2543 = vld [vmem:[%s10 + $0x5a0] sm:$0xff]
        %v2544 = vld [vmem:[%s10 + $0x5a8] sm:$0xff]
        %v2545 = vld [vmem:[%s10 + $0x5b0] sm:$0xff]
        %v2546 = vld [vmem:[%s10 + $0x5b8] sm:$0xff]
        %v2547 = vld [vmem:[%s10 + $0x5c0] sm:$0xff]
        %v2548 = vld [vmem:[%s10 + $0x5c8] sm:$0xff]
        %v2549 = vld [vmem:[%s10 + $0x5d0] sm:$0xff]
        %v2550 = vld [vmem:[%s10 + $0x5d8] sm:$0xff]
        %v2551 = vld [vmem:[%s10 + $0x5e0] sm:$0xff]
        %v2552 = vld [vmem:[%s10 + $0x5e8] sm:$0xff]
        %v2553 = vld [vmem:[%s10 + $0x5f0] sm:$0xff]
        %v2554 = vld [vmem:[%s10 + $0x5f8] sm:$0xff]
        %v2555 = vld [vmem:[%s10 + $0x600] sm:$0xff]
        %v2556 = vld [vmem:[%s10 + $0x608] sm:$0xff]
        %v2557 = vld [vmem:[%s10 + $0x610] sm:$0xff]
        %v2558 = vld [vmem:[%s10 + $0x618] sm:$0xff]
        %v2559 = vld [vmem:[%s10 + $0x620] sm:$0xff]
        %v2560 = vld [vmem:[%s10 + $0x628] sm:$0xff]
        %v2561 = vld [vmem:[%s10 + $0x630] sm:$0xff]
        %v2562 = vld [vmem:[%s10 + $0x638] sm:$0xff]
        %v2563 = vld [vmem:[%s10 + $0x640] sm:$0xff]
        %v2564 = vld [vmem:[%s10 + $0x648] sm:$0xff]
        %v2565 = vld [vmem:[%s10 + $0x650] sm:$0xff]
        %v2566 = vld [vmem:[%s10 + $0x658] sm:$0xff]
        %v2567 = vld [vmem:[%s10 + $0x660] sm:$0xff]
        %v2568 = vld [vmem:[%s10 + $0x668] sm:$0xff]
        %v2569 = vld [vmem:[%s10 + $0x670] sm:$0xff]
        %v2570 = vld [vmem:[%s10 + $0x678] sm:$0xff]
        %v2571 = vld [vmem:[%s10 + $0x680] sm:$0xff]
        %v2572 = vld [vmem:[%s10 + $0x688] sm:$0xff]
        %v2573 = vld [vmem:[%s10 + $0x690] sm:$0xff]
        %v2574 = vld [vmem:[%s10 + $0x698] sm:$0xff]
        %v2575 = vld [vmem:[%s10 + $0x6a0] sm:$0xff]
        %v2576 = vld [vmem:[%s10 + $0x6a8] sm:$0xff]
        %v2577 = vld [vmem:[%s10 + $0x6b0] sm:$0xff]
        %v2578 = vld [vmem:[%s10 + $0x6b8] sm:$0xff]
        %v2579 = vld [vmem:[%s10 + $0x6c0] sm:$0xff]
        %v2580 = vld [vmem:[%s10 + $0x6c8] sm:$0xff]
        %v2581 = vld [vmem:[%s10 + $0x6d0] sm:$0xff]
        %v2582 = vld [vmem:[%s10 + $0x6d8] sm:$0xff]
        %v2583 = vld [vmem:[%s10 + $0x6e0] sm:$0xff]
        %v2584 = vld [vmem:[%s10 + $0x6e8] sm:$0xff]
        %v2585 = vld [vmem:[%s10 + $0x6f0] sm:$0xff]
        %v2586 = vld [vmem:[%s10 + $0x6f8] sm:$0xff]
        %v2587 = vld [vmem:[%s10 + $0x700] sm:$0xff]
        %v2588 = vld [vmem:[%s10 + $0x708] sm:$0xff]
        %v2589 = vld [vmem:[%s10 + $0x710] sm:$0xff]
        %v2590 = vld [vmem:[%s10 + $0x718] sm:$0xff]
        %v2591 = vld [vmem:[%s10 + $0x720] sm:$0xff]
        %v2592 = vld [vmem:[%s10 + $0x728] sm:$0xff]
        %v2593 = vld [vmem:[%s10 + $0x730] sm:$0xff]
        %v2594 = vld [vmem:[%s10 + $0x738] sm:$0xff]
        %v2595 = vld [vmem:[%s10 + $0x740] sm:$0xff]
        %v2596 = vld [vmem:[%s10 + $0x748] sm:$0xff]
        %v2597 = vld [vmem:[%s10 + $0x750] sm:$0xff]
        %v2598 = vld [vmem:[%s10 + $0x758] sm:$0xff]
        %v2599 = vld [vmem:[%s10 + $0x760] sm:$0xff]
        %v2600 = vld [vmem:[%s10 + $0x768] sm:$0xff]
        %v2601 = vld [vmem:[%s10 + $0x770] sm:$0xff]
        %v2602 = vld [vmem:[%s10 + $0x778] sm:$0xff]
        %v2603 = vld [vmem:[%s10 + $0x780] sm:$0xff]
        %v2604 = vld [vmem:[%s10 + $0x788] sm:$0xff]
        %v2605 = vld [vmem:[%s10 + $0x790] sm:$0xff]
        %v2606 = vld [vmem:[%s10 + $0x798] sm:$0xff]
        %v2607 = vld [vmem:[%s10 + $0x7a0] sm:$0xff]
        %v2608 = vld [vmem:[%s10 + $0x7a8] sm:$0xff]
        %v2609 = vld [vmem:[%s10 + $0x7b0] sm:$0xff]
        %v2610 = vld [vmem:[%s10 + $0x7b8] sm:$0xff]
        %v2611 = vld [vmem:[%s10 + $0x7c0] sm:$0xff]
        %v2612 = vld [vmem:[%s10 + $0x7c8] sm:$0xff]
        %v2613 = vld [vmem:[%s10 + $0x7d0] sm:$0xff]
        %v2614 = vld [vmem:[%s10 + $0x7d8] sm:$0xff]
        %v2615 = vld [vmem:[%s10 + $0x7e0] sm:$0xff]
        %v2616 = vld [vmem:[%s10 + $0x7e8] sm:$0xff]
        %v2617 = vld [vmem:[%s10 + $0x7f0] sm:$0xff]
        %v2618 = vld [vmem:[%s10 + $0x7f8] sm:$0xff]
        %v2619 = vld [vmem:[%s11] sm:$0x1]
        %v2621 = vlaneseq
        %v2622 = vshrl.u32 %v2621, 7
        %v2623 = vsub.s32 0, %v2622
        %v2624 = vrot.slane %v2619, %v2623
        %2626 = vmatprep.subr.mxu0 0.0
        %2627 = vmatpush1.msra.mxu0 %v2363
        %2628 = vmatprep.subr.mxu0 0.0
        %2629 = vmatpush1.msra.mxu0 %v2364
        %2630 = vmatprep.subr.mxu0 0.0
        %2631 = vmatpush1.msra.mxu0 %v2365
        %2632 = vmatprep.subr.mxu0 0.0
        %2633 = vmatpush1.msra.mxu0 %v2366
        %2634 = vmatprep.subr.mxu0 0.0
        %2635 = vmatpush1.msra.mxu0 %v2367
        %2636 = vmatprep.subr.mxu0 0.0
        %2637 = vmatpush1.msra.mxu0 %v2368
        %2638 = vmatprep.subr.mxu0 0.0
        %2639 = vmatpush1.msra.mxu0 %v2369
        %2640 = vmatprep.subr.mxu0 0.0
        %2641 = vmatpush1.msra.mxu0 %v2370
        %2642 = vmatprep.subr.mxu0 0.0
        %2643 = vmatpush1.msra.mxu0 %v2371
        %2644 = vmatprep.subr.mxu0 0.0
        %2645 = vmatpush1.msra.mxu0 %v2372
        %2646 = vmatprep.subr.mxu0 0.0
        %2647 = vmatpush1.msra.mxu0 %v2373
        %2648 = vmatprep.subr.mxu0 0.0
        %2649 = vmatpush1.msra.mxu0 %v2374
        %2650 = vmatprep.subr.mxu0 0.0
        %2651 = vmatpush1.msra.mxu0 %v2375
        %2652 = vmatprep.subr.mxu0 0.0
        %2653 = vmatpush1.msra.mxu0 %v2376
        %2654 = vmatprep.subr.mxu0 0.0
        %2655 = vmatpush1.msra.mxu0 %v2377
        %2656 = vmatprep.subr.mxu0 0.0
        %2657 = vmatpush1.msra.mxu0 %v2378
        %2658 = vmatprep.subr.mxu0 0.0
        %2659 = vmatpush1.msra.mxu0 %v2379
        %2660 = vmatprep.subr.mxu0 0.0
        %2661 = vmatpush1.msra.mxu0 %v2380
        %2662 = vmatprep.subr.mxu0 0.0
        %2663 = vmatpush1.msra.mxu0 %v2381
        %2664 = vmatprep.subr.mxu0 0.0
        %2665 = vmatpush1.msra.mxu0 %v2382
        %2666 = vmatprep.subr.mxu0 0.0
        %2667 = vmatpush1.msra.mxu0 %v2383
        %2668 = vmatprep.subr.mxu0 0.0
        %2669 = vmatpush1.msra.mxu0 %v2384
        %2670 = vmatprep.subr.mxu0 0.0
        %2671 = vmatpush1.msra.mxu0 %v2385
        %2672 = vmatprep.subr.mxu0 0.0
        %2673 = vmatpush1.msra.mxu0 %v2386
        %2674 = vmatprep.subr.mxu0 0.0
        %2675 = vmatpush1.msra.mxu0 %v2387
        %2676 = vmatprep.subr.mxu0 0.0
        %2677 = vmatpush1.msra.mxu0 %v2388
        %2678 = vmatprep.subr.mxu0 0.0
        %2679 = vmatpush1.msra.mxu0 %v2389
        %2680 = vmatprep.subr.mxu0 0.0
        %2681 = vmatpush1.msra.mxu0 %v2390
        %2682 = vmatprep.subr.mxu0 0.0
        %2683 = vmatpush1.msra.mxu0 %v2391
        %2684 = vmatprep.subr.mxu0 0.0
        %2685 = vmatpush1.msra.mxu0 %v2392
        %2686 = vmatprep.subr.mxu0 0.0
        %2687 = vmatpush1.msra.mxu0 %v2393
        %2688 = vmatprep.subr.mxu0 0.0
        %2689 = vmatpush1.msra.mxu0 %v2394
        %2690 = vmatprep.mubr.f32.mxu0 %v2348
        %2691 = vmatmul.mubr.f32.gmra.mrb[0].mxu0 %v2347
        %v2692 = vpop.f32.mrb[0].mxu0
        %v2693 = vadd.f32 %v2624, %v2692
        %v2694 = vpop.f32.mrb[0].mxu0
        %2695 = vdwg.mxu0
        %2696 = vmatprep.subr.mxu0 0.0
        %2697 = vmatpush1.msra.mxu0 %v2395
        %2698 = vmatprep.subr.mxu0 0.0
        %2699 = vmatpush1.msra.mxu0 %v2396
        %2700 = vmatprep.subr.mxu0 0.0
        %2701 = vmatpush1.msra.mxu0 %v2397
        %2702 = vmatprep.subr.mxu0 0.0
        %2703 = vmatpush1.msra.mxu0 %v2398
        %2704 = vmatprep.subr.mxu0 0.0
        %2705 = vmatpush1.msra.mxu0 %v2399
        %2706 = vmatprep.subr.mxu0 0.0
        %2707 = vmatpush1.msra.mxu0 %v2400
        %2708 = vmatprep.subr.mxu0 0.0
        %2709 = vmatpush1.msra.mxu0 %v2401
        %2710 = vmatprep.subr.mxu0 0.0
        %2711 = vmatpush1.msra.mxu0 %v2402
        %2712 = vmatprep.subr.mxu0 0.0
        %2713 = vmatpush1.msra.mxu0 %v2403
        %2714 = vmatprep.subr.mxu0 0.0
        %2715 = vmatpush1.msra.mxu0 %v2404
        %2716 = vmatprep.subr.mxu0 0.0
        %2717 = vmatpush1.msra.mxu0 %v2405
        %2718 = vmatprep.subr.mxu0 0.0
        %2719 = vmatpush1.msra.mxu0 %v2406
        %2720 = vmatprep.subr.mxu0 0.0
        %2721 = vmatpush1.msra.mxu0 %v2407
        %2722 = vmatprep.subr.mxu0 0.0
        %2723 = vmatpush1.msra.mxu0 %v2408
        %2724 = vmatprep.subr.mxu0 0.0
        %2725 = vmatpush1.msra.mxu0 %v2409
        %2726 = vmatprep.subr.mxu0 0.0
        %2727 = vmatpush1.msra.mxu0 %v2410
        %2728 = vmatprep.subr.mxu0 0.0
        %2729 = vmatpush1.msra.mxu0 %v2411
        %2730 = vmatprep.subr.mxu0 0.0
        %2731 = vmatpush1.msra.mxu0 %v2412
        %2732 = vmatprep.subr.mxu0 0.0
        %2733 = vmatpush1.msra.mxu0 %v2413
        %2734 = vmatprep.subr.mxu0 0.0
        %2735 = vmatpush1.msra.mxu0 %v2414
        %2736 = vmatprep.subr.mxu0 0.0
        %2737 = vmatpush1.msra.mxu0 %v2415
        %2738 = vmatprep.subr.mxu0 0.0
        %2739 = vmatpush1.msra.mxu0 %v2416
        %2740 = vmatprep.subr.mxu0 0.0
        %2741 = vmatpush1.msra.mxu0 %v2417
        %2742 = vmatprep.subr.mxu0 0.0
        %2743 = vmatpush1.msra.mxu0 %v2418
        %2744 = vmatprep.subr.mxu0 0.0
        %2745 = vmatpush1.msra.mxu0 %v2419
        %2746 = vmatprep.subr.mxu0 0.0
        %2747 = vmatpush1.msra.mxu0 %v2420
        %2748 = vmatprep.subr.mxu0 0.0
        %2749 = vmatpush1.msra.mxu0 %v2421
        %2750 = vmatprep.subr.mxu0 0.0
        %2751 = vmatpush1.msra.mxu0 %v2422
        %2752 = vmatprep.subr.mxu0 0.0
        %2753 = vmatpush1.msra.mxu0 %v2423
        %2754 = vmatprep.subr.mxu0 0.0
        %2755 = vmatpush1.msra.mxu0 %v2424
        %2756 = vmatprep.subr.mxu0 0.0
        %2757 = vmatpush1.msra.mxu0 %v2425
        %2758 = vmatprep.subr.mxu0 0.0
        %2759 = vmatpush1.msra.mxu0 %v2426
        %2760 = vmatprep.mubr.f32.mxu0 %v2350
        %2761 = vmatmul.mubr.f32.gmra.mrb[0].mxu0 %v2349
        %v2762 = vpop.f32.mrb[0].mxu0
        %v2763 = vadd.f32 %v2693, %v2762
        %v2764 = vpop.f32.mrb[0].mxu0
        %2765 = vdwg.mxu0
        %2766 = vmatprep.subr.mxu0 0.0
        %2767 = vmatpush1.msra.mxu0 %v2427
        %2768 = vmatprep.subr.mxu0 0.0
        %2769 = vmatpush1.msra.mxu0 %v2428
        %2770 = vmatprep.subr.mxu0 0.0
        %2771 = vmatpush1.msra.mxu0 %v2429
        %2772 = vmatprep.subr.mxu0 0.0
        %2773 = vmatpush1.msra.mxu0 %v2430
        %2774 = vmatprep.subr.mxu0 0.0
        %2775 = vmatpush1.msra.mxu0 %v2431
        %2776 = vmatprep.subr.mxu0 0.0
        %2777 = vmatpush1.msra.mxu0 %v2432
        %2778 = vmatprep.subr.mxu0 0.0
        %2779 = vmatpush1.msra.mxu0 %v2433
        %2780 = vmatprep.subr.mxu0 0.0
        %2781 = vmatpush1.msra.mxu0 %v2434
        %2782 = vmatprep.subr.mxu0 0.0
        %2783 = vmatpush1.msra.mxu0 %v2435
        %2784 = vmatprep.subr.mxu0 0.0
        %2785 = vmatpush1.msra.mxu0 %v2436
        %2786 = vmatprep.subr.mxu0 0.0
        %2787 = vmatpush1.msra.mxu0 %v2437
        %2788 = vmatprep.subr.mxu0 0.0
        %2789 = vmatpush1.msra.mxu0 %v2438
        %2790 = vmatprep.subr.mxu0 0.0
        %2791 = vmatpush1.msra.mxu0 %v2439
        %2792 = vmatprep.subr.mxu0 0.0
        %2793 = vmatpush1.msra.mxu0 %v2440
        %2794 = vmatprep.subr.mxu0 0.0
        %2795 = vmatpush1.msra.mxu0 %v2441
        %2796 = vmatprep.subr.mxu0 0.0
        %2797 = vmatpush1.msra.mxu0 %v2442
        %2798 = vmatprep.subr.mxu0 0.0
        %2799 = vmatpush1.msra.mxu0 %v2443
        %2800 = vmatprep.subr.mxu0 0.0
        %2801 = vmatpush1.msra.mxu0 %v2444
        %2802 = vmatprep.subr.mxu0 0.0
        %2803 = vmatpush1.msra.mxu0 %v2445
        %2804 = vmatprep.subr.mxu0 0.0
        %2805 = vmatpush1.msra.mxu0 %v2446
        %2806 = vmatprep.subr.mxu0 0.0
        %2807 = vmatpush1.msra.mxu0 %v2447
        %2808 = vmatprep.subr.mxu0 0.0
        %2809 = vmatpush1.msra.mxu0 %v2448
        %2810 = vmatprep.subr.mxu0 0.0
        %2811 = vmatpush1.msra.mxu0 %v2449
        %2812 = vmatprep.subr.mxu0 0.0
        %2813 = vmatpush1.msra.mxu0 %v2450
        %2814 = vmatprep.subr.mxu0 0.0
        %2815 = vmatpush1.msra.mxu0 %v2451
        %2816 = vmatprep.subr.mxu0 0.0
        %2817 = vmatpush1.msra.mxu0 %v2452
        %2818 = vmatprep.subr.mxu0 0.0
        %2819 = vmatpush1.msra.mxu0 %v2453
        %2820 = vmatprep.subr.mxu0 0.0
        %2821 = vmatpush1.msra.mxu0 %v2454
        %2822 = vmatprep.subr.mxu0 0.0
        %2823 = vmatpush1.msra.mxu0 %v2455
        %2824 = vmatprep.subr.mxu0 0.0
        %2825 = vmatpush1.msra.mxu0 %v2456
        %2826 = vmatprep.subr.mxu0 0.0
        %2827 = vmatpush1.msra.mxu0 %v2457
        %2828 = vmatprep.subr.mxu0 0.0
        %2829 = vmatpush1.msra.mxu0 %v2458
        %2830 = vmatprep.mubr.f32.mxu0 %v2352
        %2831 = vmatmul.mubr.f32.gmra.mrb[0].mxu0 %v2351
        %v2832 = vpop.f32.mrb[0].mxu0
        %v2833 = vadd.f32 %v2763, %v2832
        %v2834 = vpop.f32.mrb[0].mxu0
        %2835 = vdwg.mxu0
        %2836 = vmatprep.subr.mxu0 0.0
        %2837 = vmatpush1.msra.mxu0 %v2459
        %2838 = vmatprep.subr.mxu0 0.0
        %2839 = vmatpush1.msra.mxu0 %v2460
        %2840 = vmatprep.subr.mxu0 0.0
        %2841 = vmatpush1.msra.mxu0 %v2461
        %2842 = vmatprep.subr.mxu0 0.0
        %2843 = vmatpush1.msra.mxu0 %v2462
        %2844 = vmatprep.subr.mxu0 0.0
        %2845 = vmatpush1.msra.mxu0 %v2463
        %2846 = vmatprep.subr.mxu0 0.0
        %2847 = vmatpush1.msra.mxu0 %v2464
        %2848 = vmatprep.subr.mxu0 0.0
        %2849 = vmatpush1.msra.mxu0 %v2465
        %2850 = vmatprep.subr.mxu0 0.0
        %2851 = vmatpush1.msra.mxu0 %v2466
        %2852 = vmatprep.subr.mxu0 0.0
        %2853 = vmatpush1.msra.mxu0 %v2467
        %2854 = vmatprep.subr.mxu0 0.0
        %2855 = vmatpush1.msra.mxu0 %v2468
        %2856 = vmatprep.subr.mxu0 0.0
        %2857 = vmatpush1.msra.mxu0 %v2469
        %2858 = vmatprep.subr.mxu0 0.0
        %2859 = vmatpush1.msra.mxu0 %v2470
        %2860 = vmatprep.subr.mxu0 0.0
        %2861 = vmatpush1.msra.mxu0 %v2471
        %2862 = vmatprep.subr.mxu0 0.0
        %2863 = vmatpush1.msra.mxu0 %v2472
        %2864 = vmatprep.subr.mxu0 0.0
        %2865 = vmatpush1.msra.mxu0 %v2473
        %2866 = vmatprep.subr.mxu0 0.0
        %2867 = vmatpush1.msra.mxu0 %v2474
        %2868 = vmatprep.subr.mxu0 0.0
        %2869 = vmatpush1.msra.mxu0 %v2475
        %2870 = vmatprep.subr.mxu0 0.0
        %2871 = vmatpush1.msra.mxu0 %v2476
        %2872 = vmatprep.subr.mxu0 0.0
        %2873 = vmatpush1.msra.mxu0 %v2477
        %2874 = vmatprep.subr.mxu0 0.0
        %2875 = vmatpush1.msra.mxu0 %v2478
        %2876 = vmatprep.subr.mxu0 0.0
        %2877 = vmatpush1.msra.mxu0 %v2479
        %2878 = vmatprep.subr.mxu0 0.0
        %2879 = vmatpush1.msra.mxu0 %v2480
        %2880 = vmatprep.subr.mxu0 0.0
        %2881 = vmatpush1.msra.mxu0 %v2481
        %2882 = vmatprep.subr.mxu0 0.0
        %2883 = vmatpush1.msra.mxu0 %v2482
        %2884 = vmatprep.subr.mxu0 0.0
        %2885 = vmatpush1.msra.mxu0 %v2483
        %2886 = vmatprep.subr.mxu0 0.0
        %2887 = vmatpush1.msra.mxu0 %v2484
        %2888 = vmatprep.subr.mxu0 0.0
        %2889 = vmatpush1.msra.mxu0 %v2485
        %2890 = vmatprep.subr.mxu0 0.0
        %2891 = vmatpush1.msra.mxu0 %v2486
        %2892 = vmatprep.subr.mxu0 0.0
        %2893 = vmatpush1.msra.mxu0 %v2487
        %2894 = vmatprep.subr.mxu0 0.0
        %2895 = vmatpush1.msra.mxu0 %v2488
        %2896 = vmatprep.subr.mxu0 0.0
        %2897 = vmatpush1.msra.mxu0 %v2489
        %2898 = vmatprep.subr.mxu0 0.0
        %2899 = vmatpush1.msra.mxu0 %v2490
        %2900 = vmatprep.mubr.f32.mxu0 %v2354
        %2901 = vmatmul.mubr.f32.gmra.mrb[0].mxu0 %v2353
        %v2902 = vpop.f32.mrb[0].mxu0
        %v2903 = vadd.f32 %v2833, %v2902
        %v2904 = vpop.f32.mrb[0].mxu0
        %2905 = vdwg.mxu0
        %2906 = vmatprep.subr.mxu0 0.0
        %2907 = vmatpush1.msra.mxu0 %v2491
        %2908 = vmatprep.subr.mxu0 0.0
        %2909 = vmatpush1.msra.mxu0 %v2492
        %2910 = vmatprep.subr.mxu0 0.0
        %2911 = vmatpush1.msra.mxu0 %v2493
        %2912 = vmatprep.subr.mxu0 0.0
        %2913 = vmatpush1.msra.mxu0 %v2494
        %2914 = vmatprep.subr.mxu0 0.0
        %2915 = vmatpush1.msra.mxu0 %v2495
        %2916 = vmatprep.subr.mxu0 0.0
        %2917 = vmatpush1.msra.mxu0 %v2496
        %2918 = vmatprep.subr.mxu0 0.0
        %2919 = vmatpush1.msra.mxu0 %v2497
        %2920 = vmatprep.subr.mxu0 0.0
        %2921 = vmatpush1.msra.mxu0 %v2498
        %2922 = vmatprep.subr.mxu0 0.0
        %2923 = vmatpush1.msra.mxu0 %v2499
        %2924 = vmatprep.subr.mxu0 0.0
        %2925 = vmatpush1.msra.mxu0 %v2500
        %2926 = vmatprep.subr.mxu0 0.0
        %2927 = vmatpush1.msra.mxu0 %v2501
        %2928 = vmatprep.subr.mxu0 0.0
        %2929 = vmatpush1.msra.mxu0 %v2502
        %2930 = vmatprep.subr.mxu0 0.0
        %2931 = vmatpush1.msra.mxu0 %v2503
        %2932 = vmatprep.subr.mxu0 0.0
        %2933 = vmatpush1.msra.mxu0 %v2504
        %2934 = vmatprep.subr.mxu0 0.0
        %2935 = vmatpush1.msra.mxu0 %v2505
        %2936 = vmatprep.subr.mxu0 0.0
        %2937 = vmatpush1.msra.mxu0 %v2506
        %2938 = vmatprep.subr.mxu0 0.0
        %2939 = vmatpush1.msra.mxu0 %v2507
        %2940 = vmatprep.subr.mxu0 0.0
        %2941 = vmatpush1.msra.mxu0 %v2508
        %2942 = vmatprep.subr.mxu0 0.0
        %2943 = vmatpush1.msra.mxu0 %v2509
        %2944 = vmatprep.subr.mxu0 0.0
        %2945 = vmatpush1.msra.mxu0 %v2510
        %2946 = vmatprep.subr.mxu0 0.0
        %2947 = vmatpush1.msra.mxu0 %v2511
        %2948 = vmatprep.subr.mxu0 0.0
        %2949 = vmatpush1.msra.mxu0 %v2512
        %2950 = vmatprep.subr.mxu0 0.0
        %2951 = vmatpush1.msra.mxu0 %v2513
        %2952 = vmatprep.subr.mxu0 0.0
        %2953 = vmatpush1.msra.mxu0 %v2514
        %2954 = vmatprep.subr.mxu0 0.0
        %2955 = vmatpush1.msra.mxu0 %v2515
        %2956 = vmatprep.subr.mxu0 0.0
        %2957 = vmatpush1.msra.mxu0 %v2516
        %2958 = vmatprep.subr.mxu0 0.0
        %2959 = vmatpush1.msra.mxu0 %v2517
        %2960 = vmatprep.subr.mxu0 0.0
        %2961 = vmatpush1.msra.mxu0 %v2518
        %2962 = vmatprep.subr.mxu0 0.0
        %2963 = vmatpush1.msra.mxu0 %v2519
        %2964 = vmatprep.subr.mxu0 0.0
        %2965 = vmatpush1.msra.mxu0 %v2520
        %2966 = vmatprep.subr.mxu0 0.0
        %2967 = vmatpush1.msra.mxu0 %v2521
        %2968 = vmatprep.subr.mxu0 0.0
        %2969 = vmatpush1.msra.mxu0 %v2522
        %2970 = vmatprep.mubr.f32.mxu0 %v2356
        %2971 = vmatmul.mubr.f32.gmra.mrb[0].mxu0 %v2355
        %v2972 = vpop.f32.mrb[0].mxu0
        %v2973 = vadd.f32 %v2903, %v2972
        %v2974 = vpop.f32.mrb[0].mxu0
        %2975 = vdwg.mxu0
        %2976 = vmatprep.subr.mxu0 0.0
        %2977 = vmatpush1.msra.mxu0 %v2523
        %2978 = vmatprep.subr.mxu0 0.0
        %2979 = vmatpush1.msra.mxu0 %v2524
        %2980 = vmatprep.subr.mxu0 0.0
        %2981 = vmatpush1.msra.mxu0 %v2525
        %2982 = vmatprep.subr.mxu0 0.0
        %2983 = vmatpush1.msra.mxu0 %v2526
        %2984 = vmatprep.subr.mxu0 0.0
        %2985 = vmatpush1.msra.mxu0 %v2527
        %2986 = vmatprep.subr.mxu0 0.0
        %2987 = vmatpush1.msra.mxu0 %v2528
        %2988 = vmatprep.subr.mxu0 0.0
        %2989 = vmatpush1.msra.mxu0 %v2529
        %2990 = vmatprep.subr.mxu0 0.0
        %2991 = vmatpush1.msra.mxu0 %v2530
        %2992 = vmatprep.subr.mxu0 0.0
        %2993 = vmatpush1.msra.mxu0 %v2531
        %2994 = vmatprep.subr.mxu0 0.0
        %2995 = vmatpush1.msra.mxu0 %v2532
        %2996 = vmatprep.subr.mxu0 0.0
        %2997 = vmatpush1.msra.mxu0 %v2533
        %2998 = vmatprep.subr.mxu0 0.0
        %2999 = vmatpush1.msra.mxu0 %v2534
        %3000 = vmatprep.subr.mxu0 0.0
        %3001 = vmatpush1.msra.mxu0 %v2535
        %3002 = vmatprep.subr.mxu0 0.0
        %3003 = vmatpush1.msra.mxu0 %v2536
        %3004 = vmatprep.subr.mxu0 0.0
        %3005 = vmatpush1.msra.mxu0 %v2537
        %3006 = vmatprep.subr.mxu0 0.0
        %3007 = vmatpush1.msra.mxu0 %v2538
        %3008 = vmatprep.subr.mxu0 0.0
        %3009 = vmatpush1.msra.mxu0 %v2539
        %3010 = vmatprep.subr.mxu0 0.0
        %3011 = vmatpush1.msra.mxu0 %v2540
        %3012 = vmatprep.subr.mxu0 0.0
        %3013 = vmatpush1.msra.mxu0 %v2541
        %3014 = vmatprep.subr.mxu0 0.0
        %3015 = vmatpush1.msra.mxu0 %v2542
        %3016 = vmatprep.subr.mxu0 0.0
        %3017 = vmatpush1.msra.mxu0 %v2543
        %3018 = vmatprep.subr.mxu0 0.0
        %3019 = vmatpush1.msra.mxu0 %v2544
        %3020 = vmatprep.subr.mxu0 0.0
        %3021 = vmatpush1.msra.mxu0 %v2545
        %3022 = vmatprep.subr.mxu0 0.0
        %3023 = vmatpush1.msra.mxu0 %v2546
        %3024 = vmatprep.subr.mxu0 0.0
        %3025 = vmatpush1.msra.mxu0 %v2547
        %3026 = vmatprep.subr.mxu0 0.0
        %3027 = vmatpush1.msra.mxu0 %v2548
        %3028 = vmatprep.subr.mxu0 0.0
        %3029 = vmatpush1.msra.mxu0 %v2549
        %3030 = vmatprep.subr.mxu0 0.0
        %3031 = vmatpush1.msra.mxu0 %v2550
        %3032 = vmatprep.subr.mxu0 0.0
        %3033 = vmatpush1.msra.mxu0 %v2551
        %3034 = vmatprep.subr.mxu0 0.0
        %3035 = vmatpush1.msra.mxu0 %v2552
        %3036 = vmatprep.subr.mxu0 0.0
        %3037 = vmatpush1.msra.mxu0 %v2553
        %3038 = vmatprep.subr.mxu0 0.0
        %3039 = vmatpush1.msra.mxu0 %v2554
        %3040 = vmatprep.mubr.f32.mxu0 %v2358
        %3041 = vmatmul.mubr.f32.gmra.mrb[0].mxu0 %v2357
        %v3042 = vpop.f32.mrb[0].mxu0
        %v3043 = vadd.f32 %v2973, %v3042
        %v3044 = vpop.f32.mrb[0].mxu0
        %3045 = vdwg.mxu0
        %3046 = vmatprep.subr.mxu0 0.0
        %3047 = vmatpush1.msra.mxu0 %v2555
        %3048 = vmatprep.subr.mxu0 0.0
        %3049 = vmatpush1.msra.mxu0 %v2556
        %3050 = vmatprep.subr.mxu0 0.0
        %3051 = vmatpush1.msra.mxu0 %v2557
        %3052 = vmatprep.subr.mxu0 0.0
        %3053 = vmatpush1.msra.mxu0 %v2558
        %3054 = vmatprep.subr.mxu0 0.0
        %3055 = vmatpush1.msra.mxu0 %v2559
        %3056 = vmatprep.subr.mxu0 0.0
        %3057 = vmatpush1.msra.mxu0 %v2560
        %3058 = vmatprep.subr.mxu0 0.0
        %3059 = vmatpush1.msra.mxu0 %v2561
        %3060 = vmatprep.subr.mxu0 0.0
        %3061 = vmatpush1.msra.mxu0 %v2562
        %3062 = vmatprep.subr.mxu0 0.0
        %3063 = vmatpush1.msra.mxu0 %v2563
        %3064 = vmatprep.subr.mxu0 0.0
        %3065 = vmatpush1.msra.mxu0 %v2564
        %3066 = vmatprep.subr.mxu0 0.0
        %3067 = vmatpush1.msra.mxu0 %v2565
        %3068 = vmatprep.subr.mxu0 0.0
        %3069 = vmatpush1.msra.mxu0 %v2566
        %3070 = vmatprep.subr.mxu0 0.0
        %3071 = vmatpush1.msra.mxu0 %v2567
        %3072 = vmatprep.subr.mxu0 0.0
        %3073 = vmatpush1.msra.mxu0 %v2568
        %3074 = vmatprep.subr.mxu0 0.0
        %3075 = vmatpush1.msra.mxu0 %v2569
        %3076 = vmatprep.subr.mxu0 0.0
        %3077 = vmatpush1.msra.mxu0 %v2570
        %3078 = vmatprep.subr.mxu0 0.0
        %3079 = vmatpush1.msra.mxu0 %v2571
        %3080 = vmatprep.subr.mxu0 0.0
        %3081 = vmatpush1.msra.mxu0 %v2572
        %3082 = vmatprep.subr.mxu0 0.0
        %3083 = vmatpush1.msra.mxu0 %v2573
        %3084 = vmatprep.subr.mxu0 0.0
        %3085 = vmatpush1.msra.mxu0 %v2574
        %3086 = vmatprep.subr.mxu0 0.0
        %3087 = vmatpush1.msra.mxu0 %v2575
        %3088 = vmatprep.subr.mxu0 0.0
        %3089 = vmatpush1.msra.mxu0 %v2576
        %3090 = vmatprep.subr.mxu0 0.0
        %3091 = vmatpush1.msra.mxu0 %v2577
        %3092 = vmatprep.subr.mxu0 0.0
        %3093 = vmatpush1.msra.mxu0 %v2578
        %3094 = vmatprep.subr.mxu0 0.0
        %3095 = vmatpush1.msra.mxu0 %v2579
        %3096 = vmatprep.subr.mxu0 0.0
        %3097 = vmatpush1.msra.mxu0 %v2580
        %3098 = vmatprep.subr.mxu0 0.0
        %3099 = vmatpush1.msra.mxu0 %v2581
        %3100 = vmatprep.subr.mxu0 0.0
        %3101 = vmatpush1.msra.mxu0 %v2582
        %3102 = vmatprep.subr.mxu0 0.0
        %3103 = vmatpush1.msra.mxu0 %v2583
        %3104 = vmatprep.subr.mxu0 0.0
        %3105 = vmatpush1.msra.mxu0 %v2584
        %3106 = vmatprep.subr.mxu0 0.0
        %3107 = vmatpush1.msra.mxu0 %v2585
        %3108 = vmatprep.subr.mxu0 0.0
        %3109 = vmatpush1.msra.mxu0 %v2586
        %3110 = vmatprep.mubr.f32.mxu0 %v2360
        %3111 = vmatmul.mubr.f32.gmra.mrb[0].mxu0 %v2359
        %v3112 = vpop.f32.mrb[0].mxu0
        %v3113 = vadd.f32 %v3043, %v3112
        %v3114 = vpop.f32.mrb[0].mxu0
        %3115 = vdwg.mxu0
        %3116 = vmatprep.subr.mxu0 0.0
        %3117 = vmatpush1.msra.mxu0 %v2587
        %3118 = vmatprep.subr.mxu0 0.0
        %3119 = vmatpush1.msra.mxu0 %v2588
        %3120 = vmatprep.subr.mxu0 0.0
        %3121 = vmatpush1.msra.mxu0 %v2589
        %3122 = vmatprep.subr.mxu0 0.0
        %3123 = vmatpush1.msra.mxu0 %v2590
        %3124 = vmatprep.subr.mxu0 0.0
        %3125 = vmatpush1.msra.mxu0 %v2591
        %3126 = vmatprep.subr.mxu0 0.0
        %3127 = vmatpush1.msra.mxu0 %v2592
        %3128 = vmatprep.subr.mxu0 0.0
        %3129 = vmatpush1.msra.mxu0 %v2593
        %3130 = vmatprep.subr.mxu0 0.0
        %3131 = vmatpush1.msra.mxu0 %v2594
        %3132 = vmatprep.subr.mxu0 0.0
        %3133 = vmatpush1.msra.mxu0 %v2595
        %3134 = vmatprep.subr.mxu0 0.0
        %3135 = vmatpush1.msra.mxu0 %v2596
        %3136 = vmatprep.subr.mxu0 0.0
        %3137 = vmatpush1.msra.mxu0 %v2597
        %3138 = vmatprep.subr.mxu0 0.0
        %3139 = vmatpush1.msra.mxu0 %v2598
        %3140 = vmatprep.subr.mxu0 0.0
        %3141 = vmatpush1.msra.mxu0 %v2599
        %3142 = vmatprep.subr.mxu0 0.0
        %3143 = vmatpush1.msra.mxu0 %v2600
        %3144 = vmatprep.subr.mxu0 0.0
        %3145 = vmatpush1.msra.mxu0 %v2601
        %3146 = vmatprep.subr.mxu0 0.0
        %3147 = vmatpush1.msra.mxu0 %v2602
        %3148 = vmatprep.subr.mxu0 0.0
        %3149 = vmatpush1.msra.mxu0 %v2603
        %3150 = vmatprep.subr.mxu0 0.0
        %3151 = vmatpush1.msra.mxu0 %v2604
        %3152 = vmatprep.subr.mxu0 0.0
        %3153 = vmatpush1.msra.mxu0 %v2605
        %3154 = vmatprep.subr.mxu0 0.0
        %3155 = vmatpush1.msra.mxu0 %v2606
        %3156 = vmatprep.subr.mxu0 0.0
        %3157 = vmatpush1.msra.mxu0 %v2607
        %3158 = vmatprep.subr.mxu0 0.0
        %3159 = vmatpush1.msra.mxu0 %v2608
        %3160 = vmatprep.subr.mxu0 0.0
        %3161 = vmatpush1.msra.mxu0 %v2609
        %3162 = vmatprep.subr.mxu0 0.0
        %3163 = vmatpush1.msra.mxu0 %v2610
        %3164 = vmatprep.subr.mxu0 0.0
        %3165 = vmatpush1.msra.mxu0 %v2611
        %3166 = vmatprep.subr.mxu0 0.0
        %3167 = vmatpush1.msra.mxu0 %v2612
        %3168 = vmatprep.subr.mxu0 0.0
        %3169 = vmatpush1.msra.mxu0 %v2613
        %3170 = vmatprep.subr.mxu0 0.0
        %3171 = vmatpush1.msra.mxu0 %v2614
        %3172 = vmatprep.subr.mxu0 0.0
        %3173 = vmatpush1.msra.mxu0 %v2615
        %3174 = vmatprep.subr.mxu0 0.0
        %3175 = vmatpush1.msra.mxu0 %v2616
        %3176 = vmatprep.subr.mxu0 0.0
        %3177 = vmatpush1.msra.mxu0 %v2617
        %3178 = vmatprep.subr.mxu0 0.0
        %3179 = vmatpush1.msra.mxu0 %v2618
        %3180 = vmatprep.mubr.f32.mxu0 %v2362
        %3181 = vmatmul.mubr.f32.gmra.mrb[0].mxu0 %v2361
        %v3182 = vpop.f32.mrb[0].mxu0
        %v3183 = vadd.f32 %v3113, %v3182
        %v3184 = vpop.f32.mrb[0].mxu0
        %3185 = vdwg.mxu0
        %v3186 = vadd.f32 %v1627, %v3183
        %v3187 = vsel %vm543, %v3186, 0.0
        %3188 = vadd.xlane.f32.xlu0 %v3187
        %v3189 = vpop.xlane.xlu0 %3188
        %v3190 = vmul.f32 %v3189, %v1601
        %v3191 = vsub.f32 %v3186, %v3190
        %v3192 = vmul.f32 %v3191, %v3191
        %v3193 = vsel %vm543, %v3192, 0.0
        %3194 = vadd.xlane.f32.xlu0 %v3193
        %v3195 = vpop.xlane.xlu0 %3194
        %v3196 = vmul.f32 %v3195, %v1601
        %v3197 = vadd.f32 %v3196, 1e-05
        %v3198 = vrsqrt.pop %v3197
        %v3199 = vmul.f32 %v3191, %v3198
        %v3200 = vld [vmem:[%s12] sm:$0x1]
        %v3202 = vlaneseq
        %v3203 = vshrl.u32 %v3202, 7
        %v3204 = vsub.s32 0, %v3203
        %v3205 = vrot.slane %v3200, %v3204
        %v3207 = vmul.f32 %v3199, %v3205
        %v3208 = vld [vmem:[%s13] sm:$0x1]
        %v3210 = vlaneseq
        %v3211 = vshrl.u32 %v3210, 7
        %v3212 = vsub.s32 0, %v3211
        %v3213 = vrot.slane %v3208, %v3212
        %v3215 = vadd.f32 %v3207, %v3213
        %v3216 = vld [vmem:[%s14] sm:$0xff]
        %v3217 = vld [vmem:[%s14 + $0x8] sm:$0xff]
        %v3218 = vld [vmem:[%s14 + $0x10] sm:$0xff]
        %v3219 = vld [vmem:[%s14 + $0x18] sm:$0xff]
        %v3220 = vld [vmem:[%s15] sm:$0x1]
        %v3222 = vsel %vm543, %v3215, 0
        %3224 = vmatprep.subr.mxu0 0.0
        %3225 = vmatpush1.msra.mxu0 %v3216
        %3226 = vmatprep.subr.mxu0 0.0
        %3227 = vmatpush1.msra.mxu0 %v3217
        %3228 = vmatprep.subr.mxu0 0.0
        %3229 = vmatpush1.msra.mxu0 %v3218
        %3230 = vmatprep.subr.mxu0 0.0
        %3231 = vmatpush1.msra.mxu0 %v3219
        %3232 = vmatprep.subr.mxu0 0.0
        %3233 = vmatpush1.msra.mxu0 0.0
        %3234 = vmatprep.subr.mxu0 0.0
        %3235 = vmatpush1.msra.mxu0 0.0
        %3236 = vmatprep.subr.mxu0 0.0
        %3237 = vmatpush1.msra.mxu0 0.0
        %3238 = vmatprep.subr.mxu0 0.0
        %3239 = vmatpush1.msra.mxu0 0.0
        %3240 = vmatprep.subr.mxu0 0.0
        %3241 = vmatpush1.msra.mxu0 0.0
        %3242 = vmatprep.subr.mxu0 0.0
        %3243 = vmatpush1.msra.mxu0 0.0
        %3244 = vmatprep.subr.mxu0 0.0
        %3245 = vmatpush1.msra.mxu0 0.0
        %3246 = vmatprep.subr.mxu0 0.0
        %3247 = vmatpush1.msra.mxu0 0.0
        %3248 = vmatprep.subr.mxu0 0.0
        %3249 = vmatpush1.msra.mxu0 0.0
        %3250 = vmatprep.subr.mxu0 0.0
        %3251 = vmatpush1.msra.mxu0 0.0
        %3252 = vmatprep.subr.mxu0 0.0
        %3253 = vmatpush1.msra.mxu0 0.0
        %3254 = vmatprep.subr.mxu0 0.0
        %3255 = vmatpush1.msra.mxu0 0.0
        %3256 = vmatprep.subr.mxu0 0.0
        %3257 = vmatpush1.msra.mxu0 0.0
        %3258 = vmatprep.subr.mxu0 0.0
        %3259 = vmatpush1.msra.mxu0 0.0
        %3260 = vmatprep.subr.mxu0 0.0
        %3261 = vmatpush1.msra.mxu0 0.0
        %3262 = vmatprep.subr.mxu0 0.0
        %3263 = vmatpush1.msra.mxu0 0.0
        %3264 = vmatprep.subr.mxu0 0.0
        %3265 = vmatpush1.msra.mxu0 0.0
        %3266 = vmatprep.subr.mxu0 0.0
        %3267 = vmatpush1.msra.mxu0 0.0
        %3268 = vmatprep.subr.mxu0 0.0
        %3269 = vmatpush1.msra.mxu0 0.0
        %3270 = vmatprep.subr.mxu0 0.0
        %3271 = vmatpush1.msra.mxu0 0.0
        %3272 = vmatprep.subr.mxu0 0.0
        %3273 = vmatpush1.msra.mxu0 0.0
        %3274 = vmatprep.subr.mxu0 0.0
        %3275 = vmatpush1.msra.mxu0 0.0
        %3276 = vmatprep.subr.mxu0 0.0
        %3277 = vmatpush1.msra.mxu0 0.0
        %3278 = vmatprep.subr.mxu0 0.0
        %3279 = vmatpush1.msra.mxu0 0.0
        %3280 = vmatprep.subr.mxu0 0.0
        %3281 = vmatpush1.msra.mxu0 0.0
        %3282 = vmatprep.subr.mxu0 0.0
        %3283 = vmatpush1.msra.mxu0 0.0
        %3284 = vmatprep.subr.mxu0 0.0
        %3285 = vmatpush1.msra.mxu0 0.0
        %3286 = vmatprep.subr.mxu0 0.0
        %3287 = vmatpush1.msra.mxu0 0.0
        %3288 = vmatprep.mubr.f32.mxu0 0.0
        %3289 = vmatmul.mubr.f32.gmra.mrb[0].mxu0 %v3222
        %v3290 = vpop.f32.mrb[0].mxu0
        %v3291 = vadd.f32 %v3220, %v3290
        %v3292 = vpop.f32.mrb[0].mxu0
        %3293 = vdwg.mxu0
        %3294 = vst [vmem:[%s522] sm:$0x1] %v3291
        %s3295 = sand.u32 %s384, 1
        %s3296 = scalar_lea.sflag [#allocation3], %s3295
        %s3297 = sand.u32 %s384, 1
        %s3298 = scalar_lea.vmem [#allocation2], %s3297
        // Predicated region
        $region85: #{tpu_custom_call.1} parent=83 // pred_check
          %p3299 = pneg %p394
        $region86: #{tpu_custom_call.1} parent=83 // pred_check_branch
          %3301 = sbr.rel (%p3299) target = $region88
        $region87: #{tpu_custom_call.1} parent=83 // pred_region
          %s3303 = ssub.s32 16, 16
          %3304 = vsyncadd %s3296, %s3303
          %s3305 = smul.addr %s30, 16
          %s3306 = scalar_lea.hbm %s16, %s3305
          %s3308 = sshll.u32 %s3298, 4
          %s3309 = int_to_ptr.vmem [resolvable:$true] %s3308
          %3311 = dma.vmem_to_hbm [thread:$0]  %s3309, 16, %s3306, %s3296
        $region88: #{tpu_custom_call.1} parent=83 // pred_fallthru
          _
      $region84: #{tpu_custom_call.1} parent=5 // pred_fallthru
        _
      %p3312 = scmp.le.s32.totalorder 2, %s25
      // Predicated region
      $region89: #{tpu_custom_call.1} parent=5 // pred_check
        %p3313 = pneg %p3312
      $region90: #{tpu_custom_call.1} parent=5 // pred_check_branch
        %3315 = sbr.rel (%p3313) target = $region92
      $region91: #{tpu_custom_call.1} parent=5 // pred_region
        %s3316 = ssub.s32 %s25, 2
        // Predicated region
        $region93: #{tpu_custom_call.1} parent=91 // pred_check
          %p3317 = pneg %p400
        $region94: #{tpu_custom_call.1} parent=91 // pred_check_branch
          %3319 = sbr.rel (%p3317) target = $region96
        $region95: #{tpu_custom_call.1} parent=91 // pred_region
          %s3320 = sand.u32 %s385, 1
          %s3321 = scalar_lea.sflag [#allocation3], %s3320
          %s3322 = sand.u32 %s385, 1
          %s3323 = scalar_lea.vmem [#allocation2], %s3322
          %3324 = dma.done %s3321, 16
        $region96: #{tpu_custom_call.1} parent=91 // pred_fallthru
          _
      $region92: #{tpu_custom_call.1} parent=5 // pred_fallthru
        _
    $region6: #{tpu_custom_call.1} parent=1 // loop_footer
      %s29 = sadd.s32 1, %s25
    $region7: #{tpu_custom_call.1} parent=1 // loop_footer_branch
      %24 = sbr.rel target = $region3
    $region8: #{tpu_custom_call.1} parent=1 // loop_exit
      _
    %3325 = vsyncpa [#allocation3], 1
    %s3326 = scalar_lea.sflag [#allocation3], 1
    %3327 = vsyncpa %s3326, 1

</llo_original>
